<compile_context>
chip_gen: v6e
topology: v6e:2x2x1
jax: 0.10.0
libtpu: 0.0.40
codegen_flags: <defaults>
</compile_context>

<pallas_src>
import jax
import jax.numpy as jnp
import numpy as np
from jax import lax
from jax.experimental import pallas as pl
from jax.experimental.pallas import tpu as pltpu


def _round_up(x, m):
    return (x + m - 1) // m * m


# ------------------------------ fused kernel ----------------------------------
def _make_bottleneck_kernel(TT, H, W, Cp, Pp, Cop, Wp2):
    """TT = frames per tile, Cp/Pp/Cop = padded inplanes / planes / planes*exp."""
    HW = H * W
    M = TT * HW
    f32 = jnp.float32
    bf16 = jnp.bfloat16

    def kernel(x_ref, xprev_ref, xnext_ref, w1_ref, w2_ref, w3_ref,
               sb1_ref, sb2_ref, sb3_ref, o_ref, acc1_ref, y1p_ref):
        t = pl.program_id(1)
        nt = pl.num_programs(1)

        x = x_ref[...]                                    # (TT, H, W, Cp) bf16
        x_flat = x.reshape(M, Cp)

        # ---- conv1: 3x1x1 temporal conv as accumulated per-tap dots ----------
        w1_prev = w1_ref[0:Cp, :]                         # tap k=0 -> x[t-1]
        w1_cent = w1_ref[Cp:2 * Cp, :]                    # tap k=1 -> x[t]
        w1_next = w1_ref[2 * Cp:3 * Cp, :]                # tap k=2 -> x[t+1]

        acc1_ref[...] = jnp.dot(x_flat, w1_cent, preferred_element_type=f32)

        if TT > 1:
            # interior frames of the tile: +-1 frame == +-HW row shift
            acc1_ref[HW:M, :] += jnp.dot(x_flat[:M - HW], w1_prev,
                                         preferred_element_type=f32)
            acc1_ref[0:M - HW, :] += jnp.dot(x_flat[HW:], w1_next,
                                             preferred_element_type=f32)

        @pl.when(t > 0)                                   # x[t-1] of 1st frame
        def _():
            hp = xprev_ref[...].reshape(HW, Cp)
            acc1_ref[0:HW, :] += jnp.dot(hp, w1_prev, preferred_element_type=f32)

        @pl.when(t < nt - 1)                              # x[t+1] of last frame
        def _():
            hn = xnext_ref[...].reshape(HW, Cp)
            acc1_ref[M - HW:M, :] += jnp.dot(hn, w1_next,
                                             preferred_element_type=f32)

        sb1 = sb1_ref[...]                                # (2, Pp) f32
        y1 = jnp.maximum(acc1_ref[...] * sb1[0:1, :] + sb1[1:2, :], 0.0)
        y1 = y1.astype(bf16).reshape(TT, H, W, Pp)        # downcast ONCE, pre-taps

        # ---- conv2: 1x3x3 spatial conv via padded VMEM scratch + 3 deep dots --
        # zero only the halo strips the tap views read, then write the interior
        y1p_ref[:, 0:1, :, :] = jnp.zeros((TT, 1, Wp2, Pp), bf16)
        y1p_ref[:, H + 1:H + 2, :, :] = jnp.zeros((TT, 1, Wp2, Pp), bf16)
        y1p_ref[:, 1:H + 1, 0:1, :] = jnp.zeros((TT, H, 1, Pp), bf16)
        y1p_ref[:, 1:H + 1, W + 1:W + 2, :] = jnp.zeros((TT, H, 1, Pp), bf16)
        y1p_ref[:, 1:H + 1, 1:W + 1, :] = y1

        acc2 = None
        for kh in range(3):
            slab = y1p_ref[:, kh:kh + H, :, :]            # (TT, H, Wp2, Pp) bf16
            g = jnp.concatenate(
                [slab[:, :, kw:kw + W, :] for kw in range(3)],
                axis=-1).reshape(M, 3 * Pp)               # (M, 3*Pp) bf16
            w2_kh = w2_ref[kh * 3 * Pp:(kh + 1) * 3 * Pp, :]
            part = jnp.dot(g, w2_kh, preferred_element_type=f32)
            acc2 = part if acc2 is None else acc2 + part

        sb2 = sb2_ref[...]
        y2 = jnp.maximum(acc2 * sb2[0:1, :] + sb2[1:2, :], 0.0).astype(bf16)

        # ---- conv3: 1x1x1 + BN, fused identity-residual add + final ReLU ------
        acc3 = jnp.dot(y2, w3_ref[...], preferred_element_type=f32)
        sb3 = sb3_ref[...]
        out = jnp.maximum(acc3 * sb3[0:1, :] + sb3[1:2, :] + x_flat, 0.0)
        o_ref[...] = out.reshape(TT, H, W, Cop).astype(bf16)

    return kernel


# ------------------------------ wrapper ----------------------------------------
def _pick_t_tile(T, H, W, Cp, budget_bytes=4 << 20):
    """Largest divisor of T whose bf16 tile fits the budget, preferring >=2 tiles."""
    divs = [d for d in range(1, T + 1) if T % d == 0]
    fits = [d for d in divs if d * H * W * Cp * 2 <= budget_bytes] or [1]
    multi = [d for d in fits if T // d >= 2]
    return max(multi) if multi else max(fits)


def bottleneck3d_forward(x_ncdhw, p):
    """Forward pass of Bottleneck3d at its default configuration."""
    N, Cin, T, H, W = x_ncdhw.shape
    planes, expansion = p['planes'], p['expansion']
    assert Cin == planes * expansion, \
        "identity residual requires inplanes == planes * expansion"
    Cp, Pp, Cop = p['Cp'], p['Pp'], p['Cop']
    assert Cop == Cp

    TT = _pick_t_tile(T, H, W, Cp)
    nT = T // TT
    Wp2 = _round_up(W + 2, 8)
    HW, M = H * W, TT * H * W

    # NCDHW -> channels-last, pad channels to lane-dense 128 multiple, bf16.
    x = jnp.transpose(x_ncdhw, (0, 2, 3, 4, 1))
    x = jnp.pad(x, ((0, 0), (0, 0), (0, 0), (0, 0), (0, Cp - Cin)))
    x = x.astype(jnp.bfloat16)

    kernel = _make_bottleneck_kernel(TT, H, W, Cp, Pp, Cop, Wp2)

    # --- VMEM footprint -> explicit scoped-VMEM limit (with headroom, capped).
    bpe = 2
    io = TT * HW * (Cp + Cop) * bpe + 2 * HW * Cp * bpe        # x tile + halos + out
    wts = (3 * Cp * Pp + 9 * Pp * Pp + Pp * Cop) * bpe + 6 * (Pp + Cop) * 4
    scr = M * Pp * 4 + TT * (H + 2) * Wp2 * Pp * bpe
    tmp = M * 3 * Pp * bpe + 4 * M * max(Pp, Cop) * 4           # conv2 group + f32 temps
    vmem_limit = int(min(64 << 20, max(16 << 20, 2 * (io + wts) + scr + tmp)))

    flops = 2 * N * T * HW * (3 * Cp * Pp + 9 * Pp * Pp + Pp * Cop)
    bytes_accessed = (N * T * HW * (Cp + Cop)) * bpe \
        + (3 * Cp * Pp + 9 * Pp * Pp + Pp * Cop) * bpe
    cost = pl.CostEstimate(flops=flops, transcendentals=0,
                           bytes_accessed=bytes_accessed)

    out = pl.pallas_call(
        kernel,
        out_shape=jax.ShapeDtypeStruct((N, T, H, W, Cop), jnp.bfloat16),
        grid=(N, nT),
        in_specs=[
            # current T-tile of the input
            pl.BlockSpec((None, TT, H, W, Cp), lambda n, t: (n, t, 0, 0, 0)),
            # +-1 frame halos (index clamped at the sample boundary; the clamped
            # fetches are never used because pl.when masks them in the kernel)
            pl.BlockSpec((None, 1, H, W, Cp),
                         lambda n, t: (n, jnp.maximum(t * TT - 1, 0), 0, 0, 0)),
            pl.BlockSpec((None, 1, H, W, Cp),
                         lambda n, t: (n, jnp.minimum((t + 1) * TT, T - 1), 0, 0, 0)),
            # folded weights / BN scale-bias: constant index maps -> resident
            pl.BlockSpec((3 * Cp, Pp), lambda n, t: (0, 0)),   # conv1 taps folded
            pl.BlockSpec((9 * Pp, Pp), lambda n, t: (0, 0)),   # conv2 taps folded
            pl.BlockSpec((Pp, Cop), lambda n, t: (0, 0)),      # conv3
            pl.BlockSpec((2, Pp), lambda n, t: (0, 0)),        # bn1 scale/bias
            pl.BlockSpec((2, Pp), lambda n, t: (0, 0)),        # bn2 scale/bias
            pl.BlockSpec((2, Cop), lambda n, t: (0, 0)),       # bn3 scale/bias
        ],
        out_specs=pl.BlockSpec((None, TT, H, W, Cop), lambda n, t: (n, t, 0, 0, 0)),
        scratch_shapes=[
            pltpu.VMEM((M, Pp), jnp.float32),                  # conv1 accumulator
            pltpu.VMEM((TT, H + 2, Wp2, Pp), jnp.bfloat16),    # padded y1 (aligned W)
        ],
        compiler_params=pltpu.CompilerParams(
            dimension_semantics=("parallel", "parallel"),
            vmem_limit_bytes=vmem_limit),
        cost_estimate=cost,
    )(x, x, x, p['w1f'], p['w2f'], p['w3f'], p['sb1'], p['sb2'], p['sb3'])

    out = out[..., :Cin].astype(jnp.float32)          # drop channel padding
    return jnp.transpose(out, (0, 4, 1, 2, 3))        # back to NCDHW


# -------------------------- deterministic parameters ----------------------------
def init_params(key, inplanes, planes, expansion=4, eps=1e-5):
    ks = jax.random.split(key, 6)
    # PyTorch conv weight layout: (Cout, Cin, kT, kH, kW)
    w1 = 0.1 * jax.random.normal(ks[0], (planes, inplanes, 3, 1, 1), jnp.float32)
    w2 = 0.1 * jax.random.normal(ks[1], (planes, planes, 1, 3, 3), jnp.float32)
    w3 = 0.1 * jax.random.normal(ks[2], (planes * expansion, planes, 1, 1, 1),
                                 jnp.float32)

    def bn_params(k, c):
        k1, k2, k3, k4 = jax.random.split(k, 4)
        gamma = 1.0 + 0.1 * jax.random.normal(k1, (c,), jnp.float32)
        beta = 0.1 * jax.random.normal(k2, (c,), jnp.float32)
        mean = 0.1 * jax.random.normal(k3, (c,), jnp.float32)
        var = jnp.abs(jax.random.normal(k4, (c,), jnp.float32)) + 0.5
        return gamma, beta, mean, var

    bn1 = bn_params(ks[3], planes)
    bn2 = bn_params(ks[4], planes)
    bn3 = bn_params(ks[5], planes * expansion)

    def fold(bn):
        g, b, m, v = bn
        s = g / jnp.sqrt(v + eps)
        return s, b - m * s

    # Channel padding to 128 lanes.  (Note: round_up(c,128) already pads real
    # channel counts in (128,256] to 256, which feeds the 256-wide v6e/v7x MXU.)
    Cp = _round_up(inplanes, 128)
    Pp = _round_up(planes, 128)
    Cop = _round_up(planes * expansion, 128)

    # conv1 (3x1x1): folded (3*Cp, Pp); row k*Cp + c holds w1[p, c, k, 0, 0]
    w1f = jnp.zeros((3 * Cp, Pp), jnp.float32)
    for k in range(3):
        w1f = w1f.at[k * Cp:k * Cp + inplanes, :planes].set(w1[:, :, k, 0, 0].T)

    # conv2 (1x3x3): folded (9*Pp, Pp); row (kh*3+kw)*Pp + c holds w2[p, c, 0, kh, kw]
    w2f = jnp.zeros((9 * Pp, Pp), jnp.float32)
    for kh in range(3):
        for kw in range(3):
            t = kh * 3 + kw
            w2f = w2f.at[t * Pp:t * Pp + planes, :planes].set(w2[:, :, 0, kh, kw].T)

    # conv3 (1x1x1): (Pp, Cop)
    w3f = jnp.zeros((Pp, Cop), jnp.float32)
    w3f = w3f.at[:planes, :planes * expansion].set(w3[:, :, 0, 0, 0].T)

    def pad_sb(scale, bias, cpad):
        c = scale.shape[0]
        sb = jnp.zeros((2, cpad), jnp.float32)
        sb = sb.at[0, :c].set(scale)
        sb = sb.at[1, :c].set(bias)
        return sb

    s1, b1 = fold(bn1)
    s2, b2 = fold(bn2)
    s3, b3 = fold(bn3)

    return dict(
        planes=planes, expansion=expansion, Cp=Cp, Pp=Pp, Cop=Cop,
        w1=w1, w2=w2, w3=w3, bn1=bn1, bn2=bn2, bn3=bn3,
        w1f=w1f.astype(jnp.bfloat16), w2f=w2f.astype(jnp.bfloat16),
        w3f=w3f.astype(jnp.bfloat16),
        sb1=pad_sb(s1, b1, Pp), sb2=pad_sb(s2, b2, Pp), sb3=pad_sb(s3, b3, Cop),
    )


# ---------------------------- pure-JAX reference --------------------------------
def reference_forward(x, p, eps=1e-5):
    def bn(y, bnp):
        g, b, m, v = bnp
        s = g / jnp.sqrt(v + eps)
        return y * s[None, :, None, None, None] + (b - m * s)[None, :, None, None, None]

    dn = ('NCDHW', 'OIDHW', 'NCDHW')
    y = lax.conv_general_dilated(x, p['w1'], (1, 1, 1),
                                 ((1, 1), (0, 0), (0, 0)), dimension_numbers=dn)
    y = jax.nn.relu(bn(y, p['bn1']))
    y = lax.conv_general_dilated(y, p['w2'], (1, 1, 1),
                                 ((0, 0), (1, 1), (1, 1)), dimension_numbers=dn)
    y = jax.nn.relu(bn(y, p['bn2']))
    y = lax.conv_general_dilated(y, p['w3'], (1, 1, 1),
                                 ((0, 0), (0, 0), (0, 0)), dimension_numbers=dn)
    y = bn(y, p['bn3'])
    return jax.nn.relu(y + x)


# ----------------------------------- main ----------------------------------------
if __name__ == "__main__":
    key = jax.random.PRNGKey(0)
    k_x, k_p = jax.random.split(key)

    N, T, H, W = 2, 4, 8, 8
    planes = 4
    inplanes = planes * 4  # == planes * expansion so identity residual is valid

    x = jax.random.normal(k_x, (N, inplanes, T, H, W), jnp.float32)
    params = init_params(k_p, inplanes, planes)

    out = jax.block_until_ready(bottleneck3d_forward(x, params))
    ref = jax.block_until_ready(reference_forward(x, params))

    # bf16 MXU inputs + bf16 output with f32 accumulation -> relaxed tolerance.
    np.testing.assert_allclose(np.asarray(out), np.asarray(ref),
                               rtol=5e-2, atol=1e-1)
    assert out.shape == (N, inplanes, T, H, W)

    print("KERNEL_OK")
</pallas_src>

<mosaic_0001>
module attributes {stable_mosaic.version = 11 : i64} {
  func.func @kernel(%arg0: i32, %arg1: i32, %arg2: memref<1x2x8x8x128xbf16, #tpu.memory_space<vmem>>, %arg3: memref<1x1x8x8x128xbf16, #tpu.memory_space<vmem>>, %arg4: memref<1x1x8x8x128xbf16, #tpu.memory_space<vmem>>, %arg5: memref<384x128xbf16, #tpu.memory_space<vmem>>, %arg6: memref<1152x128xbf16, #tpu.memory_space<vmem>>, %arg7: memref<128x128xbf16, #tpu.memory_space<vmem>>, %arg8: memref<2x128xf32, #tpu.memory_space<vmem>>, %arg9: memref<2x128xf32, #tpu.memory_space<vmem>>, %arg10: memref<2x128xf32, #tpu.memory_space<vmem>>, %arg11: memref<1x2x8x8x128xbf16, #tpu.memory_space<vmem>>, %arg12: memref<128x128xf32, #tpu.memory_space<vmem>>, %arg13: memref<2x10x16x128xbf16, #tpu.memory_space<vmem>>) attributes {dimension_semantics = [#tpu.dimension_semantics<parallel>, #tpu.dimension_semantics<parallel>], iteration_bounds = array<i64: 2, 2>, scalar_prefetch = 0 : i64, scratch_operands = 2 : i64, tpu.core_type = #tpu.core_type<tc>, window_params = [{transform_indices = @transform_0, window_bounds = array<i64: 1, 2, 8, 8, 128>}, {transform_indices = @transform_1, window_bounds = array<i64: 1, 1, 8, 8, 128>}, {transform_indices = @transform_2, window_bounds = array<i64: 1, 1, 8, 8, 128>}, {pipeline_mode = #tpu.pipeline_mode<synchronous>, transform_indices = @transform_3, window_bounds = array<i64: 384, 128>}, {pipeline_mode = #tpu.pipeline_mode<synchronous>, transform_indices = @transform_4, window_bounds = array<i64: 1152, 128>}, {pipeline_mode = #tpu.pipeline_mode<synchronous>, transform_indices = @transform_5, window_bounds = array<i64: 128, 128>}, {pipeline_mode = #tpu.pipeline_mode<synchronous>, transform_indices = @transform_6, window_bounds = array<i64: 2, 128>}, {pipeline_mode = #tpu.pipeline_mode<synchronous>, transform_indices = @transform_7, window_bounds = array<i64: 2, 128>}, {pipeline_mode = #tpu.pipeline_mode<synchronous>, transform_indices = @transform_8, window_bounds = array<i64: 2, 128>}, {transform_indices = @transform_9, window_bounds = array<i64: 1, 2, 8, 8, 128>}]} {
    %c0 = arith.constant 0 : index
    %c0_0 = arith.constant 0 : index
    %c0_1 = arith.constant 0 : index
    %c0_2 = arith.constant 0 : index
    %c0_3 = arith.constant 0 : index
    %0 = vector.load %arg2[%c0, %c0_0, %c0_1, %c0_2, %c0_3] : memref<1x2x8x8x128xbf16, #tpu.memory_space<vmem>>, vector<1x2x8x8x128xbf16>
    %1 = vector.shape_cast %0 : vector<1x2x8x8x128xbf16> to vector<2x8x8x128xbf16>
    %2 = vector.shape_cast %1 : vector<2x8x8x128xbf16> to vector<128x128xbf16>
    %c0_4 = arith.constant 0 : index
    %c0_5 = arith.constant 0 : index
    %3 = vector.load %arg5[%c0_4, %c0_5] : memref<384x128xbf16, #tpu.memory_space<vmem>>, vector<128x128xbf16>
    %c128 = arith.constant 128 : index
    %c0_6 = arith.constant 0 : index
    %4 = vector.load %arg5[%c128, %c0_6] : memref<384x128xbf16, #tpu.memory_space<vmem>>, vector<128x128xbf16>
    %c256 = arith.constant 256 : index
    %c0_7 = arith.constant 0 : index
    %5 = vector.load %arg5[%c256, %c0_7] : memref<384x128xbf16, #tpu.memory_space<vmem>>, vector<128x128xbf16>
    %cst = arith.constant dense<0.000000e+00> : vector<128x128xf32>
    %6 = tpu.matmul %2, %4, %cst {dimension_numbers = #tpu.dot_dimension_numbers<[1], [0], [0], [1], [0, 0, 1, 1], [], []>} : vector<128x128xbf16>, vector<128x128xbf16>, vector<128x128xf32> -> vector<128x128xf32>
    %c0_8 = arith.constant 0 : index
    %c0_9 = arith.constant 0 : index
    %7 = vector.load %arg12[%c0_8, %c0_9] : memref<128x128xf32, #tpu.memory_space<vmem>>, vector<128x128xf32>
    tpu.vector_store %arg12[%c0_8, %c0_9], %6 {strides = array<i32>} : memref<128x128xf32, #tpu.memory_space<vmem>>, vector<128x128xf32>,
    %c64 = arith.constant 64 : index
    %c0_10 = arith.constant 0 : index
    %8 = vector.load %arg12[%c64, %c0_10] : memref<128x128xf32, #tpu.memory_space<vmem>>, vector<64x128xf32>
    %9 = vector.extract_strided_slice %2 {offsets = [0, 0], sizes = [64, 128], strides = [1, 1]} : vector<128x128xbf16> to vector<64x128xbf16>
    %cst_11 = arith.constant dense<0.000000e+00> : vector<64x128xf32>
    %10 = tpu.matmul %9, %3, %cst_11 {dimension_numbers = #tpu.dot_dimension_numbers<[1], [0], [0], [1], [0, 0, 1, 1], [], []>} : vector<64x128xbf16>, vector<128x128xbf16>, vector<64x128xf32> -> vector<64x128xf32>
    %11 = arith.addf %8, %10 : vector<64x128xf32>
    %c64_12 = arith.constant 64 : index
    %c0_13 = arith.constant 0 : index
    %12 = vector.load %arg12[%c64_12, %c0_13] : memref<128x128xf32, #tpu.memory_space<vmem>>, vector<64x128xf32>
    tpu.vector_store %arg12[%c64_12, %c0_13], %11 {strides = array<i32>} : memref<128x128xf32, #tpu.memory_space<vmem>>, vector<64x128xf32>,
    %c0_14 = arith.constant 0 : index
    %c0_15 = arith.constant 0 : index
    %13 = vector.load %arg12[%c0_14, %c0_15] : memref<128x128xf32, #tpu.memory_space<vmem>>, vector<64x128xf32>
    %14 = vector.extract_strided_slice %2 {offsets = [64, 0], sizes = [64, 128], strides = [1, 1]} : vector<128x128xbf16> to vector<64x128xbf16>
    %cst_16 = arith.constant dense<0.000000e+00> : vector<64x128xf32>
    %15 = tpu.matmul %14, %5, %cst_16 {dimension_numbers = #tpu.dot_dimension_numbers<[1], [0], [0], [1], [0, 0, 1, 1], [], []>} : vector<64x128xbf16>, vector<128x128xbf16>, vector<64x128xf32> -> vector<64x128xf32>
    %16 = arith.addf %13, %15 : vector<64x128xf32>
    %c0_17 = arith.constant 0 : index
    %c0_18 = arith.constant 0 : index
    %17 = vector.load %arg12[%c0_17, %c0_18] : memref<128x128xf32, #tpu.memory_space<vmem>>, vector<64x128xf32>
    tpu.vector_store %arg12[%c0_17, %c0_18], %16 {strides = array<i32>} : memref<128x128xf32, #tpu.memory_space<vmem>>, vector<64x128xf32>,
    %c0_i32 = arith.constant 0 : i32
    %18 = arith.cmpi sgt, %arg1, %c0_i32 : i32
    %19 = arith.extui %18 : i1 to i32
    %c0_i32_19 = arith.constant 0 : i32
    %20 = arith.cmpi ne, %19, %c0_i32_19 : i32
    scf.if %20 {
      %c0_80 = arith.constant 0 : index
      %c0_81 = arith.constant 0 : index
      %c0_82 = arith.constant 0 : index
      %c0_83 = arith.constant 0 : index
      %c0_84 = arith.constant 0 : index
      %99 = vector.load %arg3[%c0_80, %c0_81, %c0_82, %c0_83, %c0_84] : memref<1x1x8x8x128xbf16, #tpu.memory_space<vmem>>, vector<1x1x8x8x128xbf16>
      %100 = vector.shape_cast %99 : vector<1x1x8x8x128xbf16> to vector<1x8x8x128xbf16>
      %101 = vector.shape_cast %100 : vector<1x8x8x128xbf16> to vector<64x128xbf16>
      %c0_85 = arith.constant 0 : index
      %c0_86 = arith.constant 0 : index
      %102 = vector.load %arg12[%c0_85, %c0_86] : memref<128x128xf32, #tpu.memory_space<vmem>>, vector<64x128xf32>
      %cst_87 = arith.constant dense<0.000000e+00> : vector<64x128xf32>
      %103 = tpu.matmul %101, %3, %cst_87 {dimension_numbers = #tpu.dot_dimension_numbers<[1], [0], [0], [1], [0, 0, 1, 1], [], []>} : vector<64x128xbf16>, vector<128x128xbf16>, vector<64x128xf32> -> vector<64x128xf32>
      %104 = arith.addf %102, %103 : vector<64x128xf32>
      %c0_88 = arith.constant 0 : index
      %c0_89 = arith.constant 0 : index
      %105 = vector.load %arg12[%c0_88, %c0_89] : memref<128x128xf32, #tpu.memory_space<vmem>>, vector<64x128xf32>
      tpu.vector_store %arg12[%c0_88, %c0_89], %104 {strides = array<i32>} : memref<128x128xf32, #tpu.memory_space<vmem>>, vector<64x128xf32>,
    } else {
    }
    %c1_i32 = arith.constant 1 : i32
    %21 = arith.cmpi slt, %arg1, %c1_i32 : i32
    %22 = arith.extui %21 : i1 to i32
    %c0_i32_20 = arith.constant 0 : i32
    %23 = arith.cmpi ne, %22, %c0_i32_20 : i32
    scf.if %23 {
      %c0_80 = arith.constant 0 : index
      %c0_81 = arith.constant 0 : index
      %c0_82 = arith.constant 0 : index
      %c0_83 = arith.constant 0 : index
      %c0_84 = arith.constant 0 : index
      %99 = vector.load %arg4[%c0_80, %c0_81, %c0_82, %c0_83, %c0_84] : memref<1x1x8x8x128xbf16, #tpu.memory_space<vmem>>, vector<1x1x8x8x128xbf16>
      %100 = vector.shape_cast %99 : vector<1x1x8x8x128xbf16> to vector<1x8x8x128xbf16>
      %101 = vector.shape_cast %100 : vector<1x8x8x128xbf16> to vector<64x128xbf16>
      %c64_85 = arith.constant 64 : index
      %c0_86 = arith.constant 0 : index
      %102 = vector.load %arg12[%c64_85, %c0_86] : memref<128x128xf32, #tpu.memory_space<vmem>>, vector<64x128xf32>
      %cst_87 = arith.constant dense<0.000000e+00> : vector<64x128xf32>
      %103 = tpu.matmul %101, %5, %cst_87 {dimension_numbers = #tpu.dot_dimension_numbers<[1], [0], [0], [1], [0, 0, 1, 1], [], []>} : vector<64x128xbf16>, vector<128x128xbf16>, vector<64x128xf32> -> vector<64x128xf32>
      %104 = arith.addf %102, %103 : vector<64x128xf32>
      %c64_88 = arith.constant 64 : index
      %c0_89 = arith.constant 0 : index
      %105 = vector.load %arg12[%c64_88, %c0_89] : memref<128x128xf32, #tpu.memory_space<vmem>>, vector<64x128xf32>
      tpu.vector_store %arg12[%c64_88, %c0_89], %104 {strides = array<i32>} : memref<128x128xf32, #tpu.memory_space<vmem>>, vector<64x128xf32>,
    } else {
    }
    %c0_21 = arith.constant 0 : index
    %c0_22 = arith.constant 0 : index
    %24 = vector.load %arg8[%c0_21, %c0_22] : memref<2x128xf32, #tpu.memory_space<vmem>>, vector<2x128xf32>
    %c0_23 = arith.constant 0 : index
    %c0_24 = arith.constant 0 : index
    %25 = vector.load %arg12[%c0_23, %c0_24] : memref<128x128xf32, #tpu.memory_space<vmem>>, vector<128x128xf32>
    %26 = vector.extract_strided_slice %24 {offsets = [0, 0], sizes = [1, 128], strides = [1, 1]} : vector<2x128xf32> to vector<1x128xf32>
    %27 = vector.broadcast %26 : vector<1x128xf32> to vector<128x128xf32>
    %28 = arith.mulf %25, %27 : vector<128x128xf32>
    %29 = vector.extract_strided_slice %24 {offsets = [1, 0], sizes = [1, 128], strides = [1, 1]} : vector<2x128xf32> to vector<1x128xf32>
    %30 = vector.broadcast %29 : vector<1x128xf32> to vector<128x128xf32>
    %31 = arith.addf %28, %30 : vector<128x128xf32>
    %cst_25 = arith.constant 0.000000e+00 : f32
    %32 = vector.broadcast %cst_25 : f32 to vector<128x128xf32>
    %33 = arith.maximumf %31, %32 : vector<128x128xf32>
    %34 = arith.truncf %33 : vector<128x128xf32> to vector<128x128xbf16>
    %35 = vector.shape_cast %34 : vector<128x128xbf16> to vector<2x8x8x128xbf16>
    %cst_26 = arith.constant 0.000000e+00 : bf16
    %36 = vector.broadcast %cst_26 : bf16 to vector<2x1x16x128xbf16>
    %c0_27 = arith.constant 0 : index
    %c0_28 = arith.constant 0 : index
    %c0_29 = arith.constant 0 : index
    %c0_30 = arith.constant 0 : index
    %37 = vector.load %arg13[%c0_27, %c0_28, %c0_29, %c0_30] : memref<2x10x16x128xbf16, #tpu.memory_space<vmem>>, vector<2x1x16x128xbf16>
    tpu.vector_store %arg13[%c0_27, %c0_28, %c0_29, %c0_30], %36 {strides = array<i32>} : memref<2x10x16x128xbf16, #tpu.memory_space<vmem>>, vector<2x1x16x128xbf16>,
    %cst_31 = arith.constant 0.000000e+00 : bf16
    %38 = vector.broadcast %cst_31 : bf16 to vector<2x1x16x128xbf16>
    %c0_32 = arith.constant 0 : index
    %c9 = arith.constant 9 : index
    %c0_33 = arith.constant 0 : index
    %c0_34 = arith.constant 0 : index
    %39 = vector.load %arg13[%c0_32, %c9, %c0_33, %c0_34] : memref<2x10x16x128xbf16, #tpu.memory_space<vmem>>, vector<2x1x16x128xbf16>
    tpu.vector_store %arg13[%c0_32, %c9, %c0_33, %c0_34], %38 {strides = array<i32>} : memref<2x10x16x128xbf16, #tpu.memory_space<vmem>>, vector<2x1x16x128xbf16>,
    %cst_35 = arith.constant 0.000000e+00 : bf16
    %40 = vector.broadcast %cst_35 : bf16 to vector<2x8x1x128xbf16>
    %c0_36 = arith.constant 0 : index
    %c1 = arith.constant 1 : index
    %c0_37 = arith.constant 0 : index
    %c0_38 = arith.constant 0 : index
    %41 = vector.load %arg13[%c0_36, %c1, %c0_37, %c0_38] : memref<2x10x16x128xbf16, #tpu.memory_space<vmem>>, vector<2x8x1x128xbf16>
    tpu.vector_store %arg13[%c0_36, %c1, %c0_37, %c0_38], %40 {strides = array<i32>} : memref<2x10x16x128xbf16, #tpu.memory_space<vmem>>, vector<2x8x1x128xbf16>,
    %cst_39 = arith.constant 0.000000e+00 : bf16
    %42 = vector.broadcast %cst_39 : bf16 to vector<2x8x1x128xbf16>
    %c0_40 = arith.constant 0 : index
    %c1_41 = arith.constant 1 : index
    %c9_42 = arith.constant 9 : index
    %c0_43 = arith.constant 0 : index
    %43 = vector.load %arg13[%c0_40, %c1_41, %c9_42, %c0_43] : memref<2x10x16x128xbf16, #tpu.memory_space<vmem>>, vector<2x8x1x128xbf16>
    tpu.vector_store %arg13[%c0_40, %c1_41, %c9_42, %c0_43], %42 {strides = array<i32>} : memref<2x10x16x128xbf16, #tpu.memory_space<vmem>>, vector<2x8x1x128xbf16>,
    %c0_44 = arith.constant 0 : index
    %c1_45 = arith.constant 1 : index
    %c1_46 = arith.constant 1 : index
    %c0_47 = arith.constant 0 : index
    %44 = vector.load %arg13[%c0_44, %c1_45, %c1_46, %c0_47] : memref<2x10x16x128xbf16, #tpu.memory_space<vmem>>, vector<2x8x8x128xbf16>
    tpu.vector_store %arg13[%c0_44, %c1_45, %c1_46, %c0_47], %35 {strides = array<i32>} : memref<2x10x16x128xbf16, #tpu.memory_space<vmem>>, vector<2x8x8x128xbf16>,
    %c0_48 = arith.constant 0 : index
    %c0_49 = arith.constant 0 : index
    %c0_50 = arith.constant 0 : index
    %c0_51 = arith.constant 0 : index
    %45 = vector.load %arg13[%c0_48, %c0_49, %c0_50, %c0_51] : memref<2x10x16x128xbf16, #tpu.memory_space<vmem>>, vector<2x8x16x128xbf16>
    %46 = vector.extract_strided_slice %45 {offsets = [0, 0, 0, 0], sizes = [2, 8, 8, 128], strides = [1, 1, 1, 1]} : vector<2x8x16x128xbf16> to vector<2x8x8x128xbf16>
    %47 = vector.extract_strided_slice %45 {offsets = [0, 0, 1, 0], sizes = [2, 8, 8, 128], strides = [1, 1, 1, 1]} : vector<2x8x16x128xbf16> to vector<2x8x8x128xbf16>
    %48 = vector.extract_strided_slice %45 {offsets = [0, 0, 2, 0], sizes = [2, 8, 8, 128], strides = [1, 1, 1, 1]} : vector<2x8x16x128xbf16> to vector<2x8x8x128xbf16>
    %49 = tpu.concatenate %46, %47, %48 in 3 : vector<2x8x8x128xbf16>, vector<2x8x8x128xbf16>, vector<2x8x8x128xbf16> -> vector<2x8x8x384xbf16>
    %50 = vector.shape_cast %49 : vector<2x8x8x384xbf16> to vector<128x384xbf16>
    %c0_52 = arith.constant 0 : index
    %c0_53 = arith.constant 0 : index
    %51 = vector.load %arg6[%c0_52, %c0_53] : memref<1152x128xbf16, #tpu.memory_space<vmem>>, vector<384x128xbf16>
    %cst_54 = arith.constant dense<0.000000e+00> : vector<128x128xf32>
    %52 = tpu.matmul %50, %51, %cst_54 {dimension_numbers = #tpu.dot_dimension_numbers<[1], [0], [0], [1], [0, 0, 1, 1], [], []>} : vector<128x384xbf16>, vector<384x128xbf16>, vector<128x128xf32> -> vector<128x128xf32>
    %c0_55 = arith.constant 0 : index
    %c1_56 = arith.constant 1 : index
    %c0_57 = arith.constant 0 : index
    %c0_58 = arith.constant 0 : index
    %53 = vector.load %arg13[%c0_55, %c1_56, %c0_57, %c0_58] : memref<2x10x16x128xbf16, #tpu.memory_space<vmem>>, vector<2x8x16x128xbf16>
    %54 = vector.extract_strided_slice %53 {offsets = [0, 0, 0, 0], sizes = [2, 8, 8, 128], strides = [1, 1, 1, 1]} : vector<2x8x16x128xbf16> to vector<2x8x8x128xbf16>
    %55 = vector.extract_strided_slice %53 {offsets = [0, 0, 1, 0], sizes = [2, 8, 8, 128], strides = [1, 1, 1, 1]} : vector<2x8x16x128xbf16> to vector<2x8x8x128xbf16>
    %56 = vector.extract_strided_slice %53 {offsets = [0, 0, 2, 0], sizes = [2, 8, 8, 128], strides = [1, 1, 1, 1]} : vector<2x8x16x128xbf16> to vector<2x8x8x128xbf16>
    %57 = tpu.concatenate %54, %55, %56 in 3 : vector<2x8x8x128xbf16>, vector<2x8x8x128xbf16>, vector<2x8x8x128xbf16> -> vector<2x8x8x384xbf16>
    %58 = vector.shape_cast %57 : vector<2x8x8x384xbf16> to vector<128x384xbf16>
    %c384 = arith.constant 384 : index
    %c0_59 = arith.constant 0 : index
    %59 = vector.load %arg6[%c384, %c0_59] : memref<1152x128xbf16, #tpu.memory_space<vmem>>, vector<384x128xbf16>
    %cst_60 = arith.constant dense<0.000000e+00> : vector<128x128xf32>
    %60 = tpu.matmul %58, %59, %cst_60 {dimension_numbers = #tpu.dot_dimension_numbers<[1], [0], [0], [1], [0, 0, 1, 1], [], []>} : vector<128x384xbf16>, vector<384x128xbf16>, vector<128x128xf32> -> vector<128x128xf32>
    %61 = arith.addf %52, %60 : vector<128x128xf32>
    %c0_61 = arith.constant 0 : index
    %c2 = arith.constant 2 : index
    %c0_62 = arith.constant 0 : index
    %c0_63 = arith.constant 0 : index
    %62 = vector.load %arg13[%c0_61, %c2, %c0_62, %c0_63] : memref<2x10x16x128xbf16, #tpu.memory_space<vmem>>, vector<2x8x16x128xbf16>
    %63 = vector.extract_strided_slice %62 {offsets = [0, 0, 0, 0], sizes = [2, 8, 8, 128], strides = [1, 1, 1, 1]} : vector<2x8x16x128xbf16> to vector<2x8x8x128xbf16>
    %64 = vector.extract_strided_slice %62 {offsets = [0, 0, 1, 0], sizes = [2, 8, 8, 128], strides = [1, 1, 1, 1]} : vector<2x8x16x128xbf16> to vector<2x8x8x128xbf16>
    %65 = vector.extract_strided_slice %62 {offsets = [0, 0, 2, 0], sizes = [2, 8, 8, 128], strides = [1, 1, 1, 1]} : vector<2x8x16x128xbf16> to vector<2x8x8x128xbf16>
    %66 = tpu.concatenate %63, %64, %65 in 3 : vector<2x8x8x128xbf16>, vector<2x8x8x128xbf16>, vector<2x8x8x128xbf16> -> vector<2x8x8x384xbf16>
    %67 = vector.shape_cast %66 : vector<2x8x8x384xbf16> to vector<128x384xbf16>
    %c768 = arith.constant 768 : index
    %c0_64 = arith.constant 0 : index
    %68 = vector.load %arg6[%c768, %c0_64] : memref<1152x128xbf16, #tpu.memory_space<vmem>>, vector<384x128xbf16>
    %cst_65 = arith.constant dense<0.000000e+00> : vector<128x128xf32>
    %69 = tpu.matmul %67, %68, %cst_65 {dimension_numbers = #tpu.dot_dimension_numbers<[1], [0], [0], [1], [0, 0, 1, 1], [], []>} : vector<128x384xbf16>, vector<384x128xbf16>, vector<128x128xf32> -> vector<128x128xf32>
    %70 = arith.addf %61, %69 : vector<128x128xf32>
    %c0_66 = arith.constant 0 : index
    %c0_67 = arith.constant 0 : index
    %71 = vector.load %arg9[%c0_66, %c0_67] : memref<2x128xf32, #tpu.memory_space<vmem>>, vector<2x128xf32>
    %72 = vector.extract_strided_slice %71 {offsets = [0, 0], sizes = [1, 128], strides = [1, 1]} : vector<2x128xf32> to vector<1x128xf32>
    %73 = vector.broadcast %72 : vector<1x128xf32> to vector<128x128xf32>
    %74 = arith.mulf %70, %73 : vector<128x128xf32>
    %75 = vector.extract_strided_slice %71 {offsets = [1, 0], sizes = [1, 128], strides = [1, 1]} : vector<2x128xf32> to vector<1x128xf32>
    %76 = vector.broadcast %75 : vector<1x128xf32> to vector<128x128xf32>
    %77 = arith.addf %74, %76 : vector<128x128xf32>
    %cst_68 = arith.constant 0.000000e+00 : f32
    %78 = vector.broadcast %cst_68 : f32 to vector<128x128xf32>
    %79 = arith.maximumf %77, %78 : vector<128x128xf32>
    %80 = arith.truncf %79 : vector<128x128xf32> to vector<128x128xbf16>
    %c0_69 = arith.constant 0 : index
    %c0_70 = arith.constant 0 : index
    %81 = vector.load %arg7[%c0_69, %c0_70] : memref<128x128xbf16, #tpu.memory_space<vmem>>, vector<128x128xbf16>
    %cst_71 = arith.constant dense<0.000000e+00> : vector<128x128xf32>
    %82 = tpu.matmul %80, %81, %cst_71 {dimension_numbers = #tpu.dot_dimension_numbers<[1], [0], [0], [1], [0, 0, 1, 1], [], []>} : vector<128x128xbf16>, vector<128x128xbf16>, vector<128x128xf32> -> vector<128x128xf32>
    %c0_72 = arith.constant 0 : index
    %c0_73 = arith.constant 0 : index
    %83 = vector.load %arg10[%c0_72, %c0_73] : memref<2x128xf32, #tpu.memory_space<vmem>>, vector<2x128xf32>
    %84 = vector.extract_strided_slice %83 {offsets = [0, 0], sizes = [1, 128], strides = [1, 1]} : vector<2x128xf32> to vector<1x128xf32>
    %85 = vector.broadcast %84 : vector<1x128xf32> to vector<128x128xf32>
    %86 = arith.mulf %82, %85 : vector<128x128xf32>
    %87 = vector.extract_strided_slice %83 {offsets = [1, 0], sizes = [1, 128], strides = [1, 1]} : vector<2x128xf32> to vector<1x128xf32>
    %88 = vector.broadcast %87 : vector<1x128xf32> to vector<128x128xf32>
    %89 = arith.addf %86, %88 : vector<128x128xf32>
    %90 = arith.extf %2 : vector<128x128xbf16> to vector<128x128xf32>
    %91 = arith.addf %89, %90 : vector<128x128xf32>
    %cst_74 = arith.constant 0.000000e+00 : f32
    %92 = vector.broadcast %cst_74 : f32 to vector<128x128xf32>
    %93 = arith.maximumf %91, %92 : vector<128x128xf32>
    %94 = vector.shape_cast %93 : vector<128x128xf32> to vector<2x8x8x128xf32>
    %95 = arith.truncf %94 : vector<2x8x8x128xf32> to vector<2x8x8x128xbf16>
    %c0_75 = arith.constant 0 : index
    %c0_76 = arith.constant 0 : index
    %c0_77 = arith.constant 0 : index
    %c0_78 = arith.constant 0 : index
    %c0_79 = arith.constant 0 : index
    %96 = vector.load %arg11[%c0_75, %c0_76, %c0_77, %c0_78, %c0_79] : memref<1x2x8x8x128xbf16, #tpu.memory_space<vmem>>, vector<1x2x8x8x128xbf16>
    %97 = vector.shape_cast %96 : vector<1x2x8x8x128xbf16> to vector<2x8x8x128xbf16>
    %98 = vector.shape_cast %95 : vector<2x8x8x128xbf16> to vector<1x2x8x8x128xbf16>
    tpu.vector_store %arg11[%c0_75, %c0_76, %c0_77, %c0_78, %c0_79], %98 {strides = array<i32>} : memref<1x2x8x8x128xbf16, #tpu.memory_space<vmem>>, vector<1x2x8x8x128xbf16>,
    return
  }
  func.func @transform_0(%arg0: i32, %arg1: i32) -> (i32, i32, i32, i32, i32) {
    %c0_i32 = arith.constant 0 : i32
    %c0_i32_0 = arith.constant 0 : i32
    %c0_i32_1 = arith.constant 0 : i32
    %c0_i32_2 = arith.constant 0 : i32
    return %arg0, %arg1, %c0_i32, %c0_i32_0, %c0_i32_1 : i32, i32, i32, i32, i32
  }
  func.func @transform_1(%arg0: i32, %arg1: i32) -> (i32, i32, i32, i32, i32) {
    %c2_i32 = arith.constant 2 : i32
    %0 = arith.muli %arg1, %c2_i32 : i32
    %c1_i32 = arith.constant 1 : i32
    %1 = arith.subi %0, %c1_i32 : i32
    %c0_i32 = arith.constant 0 : i32
    %2 = arith.maxsi %1, %c0_i32 : i32
    %c0_i32_0 = arith.constant 0 : i32
    %c0_i32_1 = arith.constant 0 : i32
    %c0_i32_2 = arith.constant 0 : i32
    %c0_i32_3 = arith.constant 0 : i32
    return %arg0, %2, %c0_i32_0, %c0_i32_1, %c0_i32_2 : i32, i32, i32, i32, i32
  }
  func.func @transform_2(%arg0: i32, %arg1: i32) -> (i32, i32, i32, i32, i32) {
    %c1_i32 = arith.constant 1 : i32
    %0 = arith.addi %arg1, %c1_i32 : i32
    %c2_i32 = arith.constant 2 : i32
    %1 = arith.muli %0, %c2_i32 : i32
    %c3_i32 = arith.constant 3 : i32
    %2 = arith.minsi %1, %c3_i32 : i32
    %c0_i32 = arith.constant 0 : i32
    %c0_i32_0 = arith.constant 0 : i32
    %c0_i32_1 = arith.constant 0 : i32
    %c0_i32_2 = arith.constant 0 : i32
    return %arg0, %2, %c0_i32, %c0_i32_0, %c0_i32_1 : i32, i32, i32, i32, i32
  }
  func.func @transform_3(%arg0: i32, %arg1: i32) -> (i32, i32) {
    %c0_i32 = arith.constant 0 : i32
    %c0_i32_0 = arith.constant 0 : i32
    %c0_i32_1 = arith.constant 0 : i32
    return %c0_i32, %c0_i32_0 : i32, i32
  }
  func.func @transform_4(%arg0: i32, %arg1: i32) -> (i32, i32) {
    %c0_i32 = arith.constant 0 : i32
    %c0_i32_0 = arith.constant 0 : i32
    %c0_i32_1 = arith.constant 0 : i32
    return %c0_i32, %c0_i32_0 : i32, i32
  }
  func.func @transform_5(%arg0: i32, %arg1: i32) -> (i32, i32) {
    %c0_i32 = arith.constant 0 : i32
    %c0_i32_0 = arith.constant 0 : i32
    %c0_i32_1 = arith.constant 0 : i32
    return %c0_i32, %c0_i32_0 : i32, i32
  }
  func.func @transform_6(%arg0: i32, %arg1: i32) -> (i32, i32) {
    %c0_i32 = arith.constant 0 : i32
    %c0_i32_0 = arith.constant 0 : i32
    %c0_i32_1 = arith.constant 0 : i32
    return %c0_i32, %c0_i32_0 : i32, i32
  }
  func.func @transform_7(%arg0: i32, %arg1: i32) -> (i32, i32) {
    %c0_i32 = arith.constant 0 : i32
    %c0_i32_0 = arith.constant 0 : i32
    %c0_i32_1 = arith.constant 0 : i32
    return %c0_i32, %c0_i32_0 : i32, i32
  }
  func.func @transform_8(%arg0: i32, %arg1: i32) -> (i32, i32) {
    %c0_i32 = arith.constant 0 : i32
    %c0_i32_0 = arith.constant 0 : i32
    %c0_i32_1 = arith.constant 0 : i32
    return %c0_i32, %c0_i32_0 : i32, i32
  }
  func.func @transform_9(%arg0: i32, %arg1: i32) -> (i32, i32, i32, i32, i32) {
    %c0_i32 = arith.constant 0 : i32
    %c0_i32_0 = arith.constant 0 : i32
    %c0_i32_1 = arith.constant 0 : i32
    %c0_i32_2 = arith.constant 0 : i32
    return %arg0, %arg1, %c0_i32, %c0_i32_0, %c0_i32_1 : i32, i32, i32, i32, i32
  }
}

</mosaic_0001>

<llo_original>
// kernel: tpu_custom_call.1
$region0: #{tpu_custom_call.1}
  #allocation0 [shape = 'u32[]', space=smem, size = 0x4, offset = 0x4, fixed_abs, tag = 'smem constant byte address 0x4 - core index']
  #allocation1 [shape = 'u32[144,128]{1,0:T(1,128)}', space=vmem, size = 0x12000, scoped, tag = 'internal scratch']
  #allocation2 [shape = 'f32[128,128]{1,0:T(8,128)}', space=vmem, size = 0x10000, scoped, tag = 'scratch operand']
  #allocation3 [shape = 'bf16[2,10,16,128]{3,2,1,0:T(8,128)(2,1)}', space=vmem, size = 0x14000, scoped, tag = 'scratch operand']
  %s0 = inlined_call_operand.hbm [shape: bf16[2,4,8,8,128], index: 0, kind: input, shape index: {}]
  %s1 = inlined_call_operand.hbm [shape: bf16[2,4,8,8,128], index: 1, kind: input, shape index: {}]
  %s2 = inlined_call_operand.hbm [shape: bf16[2,4,8,8,128], index: 2, kind: input, shape index: {}]
  %s3 = inlined_call_operand.hbm [shape: bf16[384,128], index: 3, kind: input, shape index: {}]
  %s4 = inlined_call_operand.hbm [shape: bf16[1152,128], index: 4, kind: input, shape index: {}]
  %s5 = inlined_call_operand.hbm [shape: bf16[128,128], index: 5, kind: input, shape index: {}]
  %s6 = inlined_call_operand.vmem [shape: f32[2,128], index: 6, kind: input, shape index: {}]
  %s7 = inlined_call_operand.vmem [shape: f32[2,128], index: 7, kind: input, shape index: {}]
  %s8 = inlined_call_operand.vmem [shape: f32[2,128], index: 8, kind: input, shape index: {}]
  %s9 = inlined_call_operand.hbm [shape: bf16[2,4,8,8,128], index: 9, kind: output, shape index: {}]
  %s10 = sld [smem:[#allocation0]]
  $region101: #{tpu_custom_call.1} parent=0
    _
  %s12 = ssub.s32 1, %s10
  %s13 = scalar_select 0, %s12, %s10
  $region1: #{tpu_custom_call.1} parent=0
    #allocation4 [shape = 'u8[65536]{0}', space=vmem, size = 0x10000, scoped, tag = 'input window, operand 0']
    #allocation5 [shape = 's32[2]{0}', space=sflag, size = 0x8, scoped, tag = 'scoped memory for tpu_custom_call.1']
    #allocation6 [shape = 's32[2]{0}', space=sflag, size = 0x8, scoped, tag = 'scoped memory for tpu_custom_call.1']
    #allocation7 [shape = 'u8[32768]{0}', space=vmem, size = 0x8000, scoped, tag = 'input window, operand 1']
    #allocation8 [shape = 's32[2]{0}', space=sflag, size = 0x8, scoped, tag = 'scoped memory for tpu_custom_call.1']
    #allocation9 [shape = 'u8[32768]{0}', space=vmem, size = 0x8000, scoped, tag = 'input window, operand 2']
    #allocation10 [shape = 'u8[98304]{0}', space=vmem, size = 0x18000, scoped, tag = 'input window, operand 3, single buffered']
    #allocation11 [shape = 's32[1]{0}', space=sflag, size = 0x4, scoped, tag = 'scoped memory for tpu_custom_call.1']
    #allocation12 [shape = 'u8[294912]{0}', space=vmem, size = 0x48000, scoped, tag = 'input window, operand 4, single buffered']
    #allocation13 [shape = 'u8[32768]{0}', space=vmem, size = 0x8000, scoped, tag = 'input window, operand 5, single buffered']
    #allocation14 [shape = 's32[1]{0}', space=sflag, size = 0x4, scoped, tag = 'scoped memory for tpu_custom_call.1']
    #allocation15 [shape = 'u8[65536]{0}', space=vmem, size = 0x10000, scoped, tag = 'output window, operand 0']
    %14 = vsyncpa [#allocation5], 0
    %s15 = scalar_lea.sflag [#allocation5], 1
    %16 = vsyncpa %s15, 0
    %17 = vsyncpa [#allocation8], 0
    %s18 = scalar_lea.sflag [#allocation8], 1
    %19 = vsyncpa %s18, 0
    %20 = vsyncpa [#allocation11], 0
    %21 = vsyncpa [#allocation14], 0
    %22 = vsyncpa [#allocation6], 0
    %s23 = scalar_lea.sflag [#allocation6], 1
    %24 = vsyncpa %s23, 0
    loop: start=0, step=1, limit=6
    $region2: #{tpu_custom_call.1} parent=1 // loop_pre_header
      _
    $region3: #{tpu_custom_call.1} parent=1 // loop_header
      %s26 = sphi 0, %s30
      %p27 = scmp.ge.s32.totalorder %s26, 6
      %s33 = sphi 0, %s45
      %s34 = sphi 0, %s41
      %s35 = sphi 0, %s33
      %s36 = sphi 0, %s34
      %s37 = sphi 0, %s35
      %s38 = sphi 0, %s36
      %s50 = sphi 0, %s52
      %s53 = sphi 0, %s50
      %s54 = sphi 0, %s53
      %s70 = sphi 0, %s54
      %s86 = sphi 0, %s88
      %s89 = sphi 0, %s86
      %s90 = sphi 0, %s89
      %s106 = sphi 0, %s90
      %s122 = sphi 0, %s124
      %s125 = sphi 0, %s122
      %s126 = sphi 0, %s125
      %s142 = sphi 0, %s126
      %s146 = sphi 0, %s146
      %s148 = sphi 0, %s146
      %s149 = sphi 0, %s148
      %s163 = sphi 0, %s149
      %s167 = sphi 0, %s167
      %s169 = sphi 0, %s167
      %s170 = sphi 0, %s169
      %s184 = sphi 0, %s170
      %s188 = sphi 0, %s188
      %s190 = sphi 0, %s188
      %s191 = sphi 0, %s190
      %s205 = sphi 0, %s191
      %s209 = sphi 0, %s209
      %s211 = sphi 0, %s209
      %s212 = sphi 0, %s211
      %s226 = sphi 0, %s212
      %s230 = sphi 0, %s230
      %s232 = sphi 0, %s230
      %s233 = sphi 0, %s232
      %s247 = sphi 0, %s233
      %s251 = sphi 0, %s251
      %s253 = sphi 0, %s251
      %s254 = sphi 0, %s253
      %s268 = sphi 0, %s254
      %s276 = sphi 0, %s278
      %s279 = sphi 0, %s276
      %s280 = sphi 0, %s279
      %s296 = sphi 0, %s280
    $region4: #{tpu_custom_call.1} parent=1 // loop_header_branch
      %29 = sbr.rel (%p27) target = $region8
    $region5: #{tpu_custom_call.1} parent=1 // loop_body
      %s31 = ssub.s32 %s26, 1
      %s32 = ssub.s32 %s26, 2
      %s39 = sadd.s32 1, %s34
      %p40 = scmp.ge.s32.totalorder %s39, 2
      %s41 = scalar_select %p40, 0, %s39
      %s42 = sadd.s32 1, %s33
      %s43 = scalar_select %p40, %s42, %s33
      %p44 = scmp.ge.s32.totalorder %s43, 2
      %s45 = scalar_select %p44, 0, %s43
      %s46 = ssub.s32 %s33, %s45
      %s47 = ssub.s32 %s34, %s41
      %s48 = sor.u32 %s46, %s47
      %p49 = scmp.eq.s32.totalorder %s48, 0
      %s51 = sadd.s32 %s50, 1
      %s52 = scalar_select %p49, %s50, %s51
      %p55 = pneg %p49
      %p56 = scmp.eq.s32.totalorder %s26, 3
      %p57 = por %p55, %p56
      %p58 = scmp.ne.s32.totalorder %s50, %s53
      %p59 = scmp.eq.s32.totalorder %s26, 0
      %p60 = por %p58, %p59
      %p61 = scmp.ne.s32.totalorder %s50, %s53
      %p62 = scmp.eq.s32.totalorder %s31, 3
      %p63 = por %p61, %p62
      %p64 = scmp.ne.s32.totalorder %s53, %s54
      %p65 = scmp.eq.s32.totalorder %s31, 0
      %p66 = por %p64, %p65
      %p67 = scmp.ne.s32.totalorder %s53, %s54
      %p68 = scmp.eq.s32.totalorder %s32, 3
      %p69 = por %p67, %p68
      %p71 = scmp.ne.s32.totalorder %s54, %s70
      %p72 = scmp.eq.s32.totalorder %s32, 0
      %p73 = por %p71, %p72
      %s74 = smul.u32 %s34, 2
      %s75 = ssub.s32 %s74, 1
      %p76 = scmp.gt.s32.totalorder %s75, 0
      %s77 = scalar_select %p76, %s75, 0
      %s78 = smul.u32 %s41, 2
      %s79 = ssub.s32 %s78, 1
      %p80 = scmp.gt.s32.totalorder %s79, 0
      %s81 = scalar_select %p80, %s79, 0
      %s82 = ssub.s32 %s33, %s45
      %s83 = ssub.s32 %s77, %s81
      %s84 = sor.u32 %s82, %s83
      %p85 = scmp.eq.s32.totalorder %s84, 0
      %s87 = sadd.s32 %s86, 1
      %s88 = scalar_select %p85, %s86, %s87
      %p91 = pneg %p85
      %p92 = scmp.eq.s32.totalorder %s26, 3
      %p93 = por %p91, %p92
      %p94 = scmp.ne.s32.totalorder %s86, %s89
      %p95 = scmp.eq.s32.totalorder %s26, 0
      %p96 = por %p94, %p95
      %p97 = scmp.ne.s32.totalorder %s86, %s89
      %p98 = scmp.eq.s32.totalorder %s31, 3
      %p99 = por %p97, %p98
      %p100 = scmp.ne.s32.totalorder %s89, %s90
      %p101 = scmp.eq.s32.totalorder %s31, 0
      %p102 = por %p100, %p101
      %p103 = scmp.ne.s32.totalorder %s89, %s90
      %p104 = scmp.eq.s32.totalorder %s32, 3
      %p105 = por %p103, %p104
      %p107 = scmp.ne.s32.totalorder %s90, %s106
      %p108 = scmp.eq.s32.totalorder %s32, 0
      %p109 = por %p107, %p108
      %s110 = sadd.s32 %s34, 1
      %s111 = smul.u32 %s110, 2
      %p112 = scmp.lt.s32.totalorder %s111, 3
      %s113 = scalar_select %p112, %s111, 3
      %s114 = sadd.s32 %s41, 1
      %s115 = smul.u32 %s114, 2
      %p116 = scmp.lt.s32.totalorder %s115, 3
      %s117 = scalar_select %p116, %s115, 3
      %s118 = ssub.s32 %s33, %s45
      %s119 = ssub.s32 %s113, %s117
      %s120 = sor.u32 %s118, %s119
      %p121 = scmp.eq.s32.totalorder %s120, 0
      %s123 = sadd.s32 %s122, 1
      %s124 = scalar_select %p121, %s122, %s123
      %p127 = pneg %p121
      %p128 = scmp.eq.s32.totalorder %s26, 3
      %p129 = por %p127, %p128
      %p130 = scmp.ne.s32.totalorder %s122, %s125
      %p131 = scmp.eq.s32.totalorder %s26, 0
      %p132 = por %p130, %p131
      %p133 = scmp.ne.s32.totalorder %s122, %s125
      %p134 = scmp.eq.s32.totalorder %s31, 3
      %p135 = por %p133, %p134
      %p136 = scmp.ne.s32.totalorder %s125, %s126
      %p137 = scmp.eq.s32.totalorder %s31, 0
      %p138 = por %p136, %p137
      %p139 = scmp.ne.s32.totalorder %s125, %s126
      %p140 = scmp.eq.s32.totalorder %s32, 3
      %p141 = por %p139, %p140
      %p143 = scmp.ne.s32.totalorder %s126, %s142
      %p144 = scmp.eq.s32.totalorder %s32, 0
      %p145 = por %p143, %p144
      %s147 = sadd.s32 %s146, 1
      %p150 = scmp.eq.s32.totalorder %s26, 3
      %p151 = scmp.ne.s32.totalorder %s146, %s148
      %p152 = scmp.eq.s32.totalorder %s26, 0
      %p153 = por %p151, %p152
      %p154 = scmp.ne.s32.totalorder %s146, %s148
      %p155 = scmp.eq.s32.totalorder %s31, 3
      %p156 = por %p154, %p155
      %p157 = scmp.ne.s32.totalorder %s148, %s149
      %p158 = scmp.eq.s32.totalorder %s31, 0
      %p159 = por %p157, %p158
      %p160 = scmp.ne.s32.totalorder %s148, %s149
      %p161 = scmp.eq.s32.totalorder %s32, 3
      %p162 = por %p160, %p161
      %p164 = scmp.ne.s32.totalorder %s149, %s163
      %p165 = scmp.eq.s32.totalorder %s32, 0
      %p166 = por %p164, %p165
      %s168 = sadd.s32 %s167, 1
      %p171 = scmp.eq.s32.totalorder %s26, 3
      %p172 = scmp.ne.s32.totalorder %s167, %s169
      %p173 = scmp.eq.s32.totalorder %s26, 0
      %p174 = por %p172, %p173
      %p175 = scmp.ne.s32.totalorder %s167, %s169
      %p176 = scmp.eq.s32.totalorder %s31, 3
      %p177 = por %p175, %p176
      %p178 = scmp.ne.s32.totalorder %s169, %s170
      %p179 = scmp.eq.s32.totalorder %s31, 0
      %p180 = por %p178, %p179
      %p181 = scmp.ne.s32.totalorder %s169, %s170
      %p182 = scmp.eq.s32.totalorder %s32, 3
      %p183 = por %p181, %p182
      %p185 = scmp.ne.s32.totalorder %s170, %s184
      %p186 = scmp.eq.s32.totalorder %s32, 0
      %p187 = por %p185, %p186
      %s189 = sadd.s32 %s188, 1
      %p192 = scmp.eq.s32.totalorder %s26, 3
      %p193 = scmp.ne.s32.totalorder %s188, %s190
      %p194 = scmp.eq.s32.totalorder %s26, 0
      %p195 = por %p193, %p194
      %p196 = scmp.ne.s32.totalorder %s188, %s190
      %p197 = scmp.eq.s32.totalorder %s31, 3
      %p198 = por %p196, %p197
      %p199 = scmp.ne.s32.totalorder %s190, %s191
      %p200 = scmp.eq.s32.totalorder %s31, 0
      %p201 = por %p199, %p200
      %p202 = scmp.ne.s32.totalorder %s190, %s191
      %p203 = scmp.eq.s32.totalorder %s32, 3
      %p204 = por %p202, %p203
      %p206 = scmp.ne.s32.totalorder %s191, %s205
      %p207 = scmp.eq.s32.totalorder %s32, 0
      %p208 = por %p206, %p207
      %s210 = sadd.s32 %s209, 1
      %p213 = scmp.eq.s32.totalorder %s26, 3
      %p214 = scmp.ne.s32.totalorder %s209, %s211
      %p215 = scmp.eq.s32.totalorder %s26, 0
      %p216 = por %p214, %p215
      %p217 = scmp.ne.s32.totalorder %s209, %s211
      %p218 = scmp.eq.s32.totalorder %s31, 3
      %p219 = por %p217, %p218
      %p220 = scmp.ne.s32.totalorder %s211, %s212
      %p221 = scmp.eq.s32.totalorder %s31, 0
      %p222 = por %p220, %p221
      %p223 = scmp.ne.s32.totalorder %s211, %s212
      %p224 = scmp.eq.s32.totalorder %s32, 3
      %p225 = por %p223, %p224
      %p227 = scmp.ne.s32.totalorder %s212, %s226
      %p228 = scmp.eq.s32.totalorder %s32, 0
      %p229 = por %p227, %p228
      %s231 = sadd.s32 %s230, 1
      %p234 = scmp.eq.s32.totalorder %s26, 3
      %p235 = scmp.ne.s32.totalorder %s230, %s232
      %p236 = scmp.eq.s32.totalorder %s26, 0
      %p237 = por %p235, %p236
      %p238 = scmp.ne.s32.totalorder %s230, %s232
      %p239 = scmp.eq.s32.totalorder %s31, 3
      %p240 = por %p238, %p239
      %p241 = scmp.ne.s32.totalorder %s232, %s233
      %p242 = scmp.eq.s32.totalorder %s31, 0
      %p243 = por %p241, %p242
      %p244 = scmp.ne.s32.totalorder %s232, %s233
      %p245 = scmp.eq.s32.totalorder %s32, 3
      %p246 = por %p244, %p245
      %p248 = scmp.ne.s32.totalorder %s233, %s247
      %p249 = scmp.eq.s32.totalorder %s32, 0
      %p250 = por %p248, %p249
      %s252 = sadd.s32 %s251, 1
      %p255 = scmp.eq.s32.totalorder %s26, 3
      %p256 = scmp.ne.s32.totalorder %s251, %s253
      %p257 = scmp.eq.s32.totalorder %s26, 0
      %p258 = por %p256, %p257
      %p259 = scmp.ne.s32.totalorder %s251, %s253
      %p260 = scmp.eq.s32.totalorder %s31, 3
      %p261 = por %p259, %p260
      %p262 = scmp.ne.s32.totalorder %s253, %s254
      %p263 = scmp.eq.s32.totalorder %s31, 0
      %p264 = por %p262, %p263
      %p265 = scmp.ne.s32.totalorder %s253, %s254
      %p266 = scmp.eq.s32.totalorder %s32, 3
      %p267 = por %p265, %p266
      %p269 = scmp.ne.s32.totalorder %s254, %s268
      %p270 = scmp.eq.s32.totalorder %s32, 0
      %p271 = por %p269, %p270
      %s272 = ssub.s32 %s33, %s45
      %s273 = ssub.s32 %s34, %s41
      %s274 = sor.u32 %s272, %s273
      %p275 = scmp.eq.s32.totalorder %s274, 0
      %s277 = sadd.s32 %s276, 1
      %s278 = scalar_select %p275, %s276, %s277
      %p281 = pneg %p275
      %p282 = scmp.eq.s32.totalorder %s26, 3
      %p283 = por %p281, %p282
      %p284 = scmp.ne.s32.totalorder %s276, %s279
      %p285 = scmp.eq.s32.totalorder %s26, 0
      %p286 = por %p284, %p285
      %p287 = scmp.ne.s32.totalorder %s276, %s279
      %p288 = scmp.eq.s32.totalorder %s31, 3
      %p289 = por %p287, %p288
      %p290 = scmp.ne.s32.totalorder %s279, %s280
      %p291 = scmp.eq.s32.totalorder %s31, 0
      %p292 = por %p290, %p291
      %p293 = scmp.ne.s32.totalorder %s279, %s280
      %p294 = scmp.eq.s32.totalorder %s32, 3
      %p295 = por %p293, %p294
      %p297 = scmp.ne.s32.totalorder %s280, %s296
      %p298 = scmp.eq.s32.totalorder %s32, 0
      %p299 = por %p297, %p298
      %p300 = scmp.le.s32.totalorder 1, %s26
      %p301 = scmp.lt.s32.totalorder %s26, 5
      %p302 = pnand %p300, %p301
      %p303 = pneg %p302
      // Predicated region
      $region9: #{tpu_custom_call.1} parent=5 // pred_check
        _
      $region10: #{tpu_custom_call.1} parent=5 // pred_check_branch
        %305 = sbr.rel (%p302) target = $region12
      $region11: #{tpu_custom_call.1} parent=5 // pred_region
        %s306 = ssub.s32 %s26, 1
        // Predicated region
        $region13: #{tpu_custom_call.1} parent=11 // pred_check
          %p307 = pneg %p159
        $region14: #{tpu_custom_call.1} parent=11 // pred_check_branch
          %309 = sbr.rel (%p307) target = $region16
        $region15: #{tpu_custom_call.1} parent=11 // pred_region
          %s311 = ssub.s32 3072, 3072
          %312 = vsyncadd [#allocation11], %s311
          %s313 = sshll.u32 [#allocation10], 4
          %s314 = int_to_ptr.vmem [resolvable:$true] %s313
          %319 = dma.hbm_to_vmem [thread:$0]  %s3, 3072, %s314, [#allocation11], 64, 64, 4
        $region16: #{tpu_custom_call.1} parent=11 // pred_fallthru
          _
        // Predicated region
        $region17: #{tpu_custom_call.1} parent=11 // pred_check
          %p320 = pneg %p180
        $region18: #{tpu_custom_call.1} parent=11 // pred_check_branch
          %322 = sbr.rel (%p320) target = $region20
        $region19: #{tpu_custom_call.1} parent=11 // pred_region
          %s324 = ssub.s32 9216, 9216
          %325 = vsyncadd [#allocation11], %s324
          %s326 = sshll.u32 [#allocation12], 4
          %s327 = int_to_ptr.vmem [resolvable:$true] %s326
          %332 = dma.hbm_to_vmem [thread:$0]  %s4, 9216, %s327, [#allocation11], 64, 64, 4
        $region20: #{tpu_custom_call.1} parent=11 // pred_fallthru
          _
        // Predicated region
        $region21: #{tpu_custom_call.1} parent=11 // pred_check
          %p333 = pneg %p201
        $region22: #{tpu_custom_call.1} parent=11 // pred_check_branch
          %335 = sbr.rel (%p333) target = $region24
        $region23: #{tpu_custom_call.1} parent=11 // pred_region
          %s337 = ssub.s32 1024, 1024
          %338 = vsyncadd [#allocation14], %s337
          %s339 = sshll.u32 [#allocation13], 4
          %s340 = int_to_ptr.vmem [resolvable:$true] %s339
          %345 = dma.hbm_to_vmem [thread:$0]  %s5, 1024, %s340, [#allocation14], 64, 64, 4
        $region24: #{tpu_custom_call.1} parent=11 // pred_fallthru
          _
        // Predicated region
        $region25: #{tpu_custom_call.1} parent=11 // pred_check
          %p346 = pneg %p222
        $region26: #{tpu_custom_call.1} parent=11 // pred_check_branch
          %348 = sbr.rel (%p346) target = $region28
        $region27: #{tpu_custom_call.1} parent=11 // pred_region
          _
        $region28: #{tpu_custom_call.1} parent=11 // pred_fallthru
          _
        // Predicated region
        $region29: #{tpu_custom_call.1} parent=11 // pred_check
          %p349 = pneg %p243
        $region30: #{tpu_custom_call.1} parent=11 // pred_check_branch
          %351 = sbr.rel (%p349) target = $region32
        $region31: #{tpu_custom_call.1} parent=11 // pred_region
          _
        $region32: #{tpu_custom_call.1} parent=11 // pred_fallthru
          _
        // Predicated region
        $region33: #{tpu_custom_call.1} parent=11 // pred_check
          %p352 = pneg %p264
        $region34: #{tpu_custom_call.1} parent=11 // pred_check_branch
          %354 = sbr.rel (%p352) target = $region36
        $region35: #{tpu_custom_call.1} parent=11 // pred_region
          _
        $region36: #{tpu_custom_call.1} parent=11 // pred_fallthru
          _
      $region12: #{tpu_custom_call.1} parent=5 // pred_fallthru
        _
      %p355 = scmp.lt.s32.totalorder %s26, 4
      // Predicated region
      $region37: #{tpu_custom_call.1} parent=5 // pred_check
        %p356 = pneg %p355
      $region38: #{tpu_custom_call.1} parent=5 // pred_check_branch
        %358 = sbr.rel (%p356) target = $region40
      $region39: #{tpu_custom_call.1} parent=5 // pred_region
        // Predicated region
        $region41: #{tpu_custom_call.1} parent=39 // pred_check
          %p359 = pneg %p60
        $region42: #{tpu_custom_call.1} parent=39 // pred_check_branch
          %361 = sbr.rel (%p359) target = $region44
        $region43: #{tpu_custom_call.1} parent=39 // pred_region
          %s362 = sand.u32 %s50, 1
          %s363 = scalar_lea.sflag [#allocation5], %s362
          %s364 = sand.u32 %s50, 1
          %s365 = smul.addr %s364, 64
          %s366 = scalar_lea.vmem [#allocation4], %s365
          %s367 = smul.u32 2, %s34
          %s369 = ssub.s32 1024, 1024
          %370 = vsyncadd %s363, %s369
          %s371 = smul.addr %s367, 8
          %s372 = smul.addr %s33, 32
          %s373 = sadd.s32 %s371, %s372
          %s374 = smul.addr %s373, 64
          %s375 = scalar_lea.hbm %s0, %s374
          %s376 = sshll.u32 %s366, 4
          %s377 = int_to_ptr.vmem [resolvable:$true] %s376
          %382 = dma.hbm_to_vmem [thread:$0]  %s375, 1024, %s377, %s363, 64, 64, 4
        $region44: #{tpu_custom_call.1} parent=39 // pred_fallthru
          _
        // Predicated region
        $region45: #{tpu_custom_call.1} parent=39 // pred_check
          %p383 = pneg %p96
        $region46: #{tpu_custom_call.1} parent=39 // pred_check_branch
          %385 = sbr.rel (%p383) target = $region48
        $region47: #{tpu_custom_call.1} parent=39 // pred_region
          %s386 = sand.u32 %s26, 1
          %s387 = scalar_lea.sflag [#allocation8], %s386
          %s388 = sand.u32 %s86, 1
          %s389 = smul.addr %s388, 32
          %s390 = scalar_lea.vmem [#allocation7], %s389
          %s391 = smul.u32 %s34, 2
          %s392 = ssub.s32 %s391, 1
          %p393 = scmp.gt.s32.totalorder %s392, 0
          %s394 = scalar_select %p393, %s392, 0
          %s396 = ssub.s32 512, 512
          %397 = vsyncadd %s387, %s396
          %s398 = smul.addr %s394, 8
          %s399 = smul.addr %s33, 32
          %s400 = sadd.s32 %s398, %s399
          %s401 = smul.addr %s400, 64
          %s402 = scalar_lea.hbm %s1, %s401
          %s403 = sshll.u32 %s390, 4
          %s404 = int_to_ptr.vmem [resolvable:$true] %s403
          %409 = dma.hbm_to_vmem [thread:$0]  %s402, 512, %s404, %s387, 64, 64, 4
        $region48: #{tpu_custom_call.1} parent=39 // pred_fallthru
          _
        // Predicated region
        $region49: #{tpu_custom_call.1} parent=39 // pred_check
          %p410 = pneg %p132
        $region50: #{tpu_custom_call.1} parent=39 // pred_check_branch
          %412 = sbr.rel (%p410) target = $region52
        $region51: #{tpu_custom_call.1} parent=39 // pred_region
          %s413 = sand.u32 %s26, 1
          %s414 = scalar_lea.sflag [#allocation8], %s413
          %s415 = sand.u32 %s122, 1
          %s416 = smul.addr %s415, 32
          %s417 = scalar_lea.vmem [#allocation9], %s416
          %s418 = sadd.s32 %s34, 1
          %s419 = smul.u32 %s418, 2
          %p420 = scmp.lt.s32.totalorder %s419, 3
          %s421 = scalar_select %p420, %s419, 3
          %s423 = ssub.s32 512, 512
          %424 = vsyncadd %s414, %s423
          %s425 = smul.addr %s421, 8
          %s426 = smul.addr %s33, 32
          %s427 = sadd.s32 %s425, %s426
          %s428 = smul.addr %s427, 64
          %s429 = scalar_lea.hbm %s2, %s428
          %s430 = sshll.u32 %s417, 4
          %s431 = int_to_ptr.vmem [resolvable:$true] %s430
          %436 = dma.hbm_to_vmem [thread:$0]  %s429, 512, %s431, %s414, 64, 64, 4
        $region52: #{tpu_custom_call.1} parent=39 // pred_fallthru
          _
      $region40: #{tpu_custom_call.1} parent=5 // pred_fallthru
        _
      %p437 = scmp.le.s32.totalorder 1, %s26
      %p438 = scmp.lt.s32.totalorder %s26, 5
      %p439 = pnand %p437, %p438
      %p440 = pneg %p439
      // Predicated region
      $region53: #{tpu_custom_call.1} parent=5 // pred_check
        _
      $region54: #{tpu_custom_call.1} parent=5 // pred_check_branch
        %442 = sbr.rel (%p439) target = $region56
      $region55: #{tpu_custom_call.1} parent=5 // pred_region
        %s443 = ssub.s32 %s26, 1
        %s444 = sand.u32 %s53, 1
        %s445 = scalar_lea.sflag [#allocation5], %s444
        %s446 = sand.u32 %s53, 1
        %s447 = smul.addr %s446, 64
        %s448 = scalar_lea.vmem [#allocation4], %s447
        // Predicated region
        $region57: #{tpu_custom_call.1} parent=55 // pred_check
          %p449 = pneg %p66
        $region58: #{tpu_custom_call.1} parent=55 // pred_check_branch
          %451 = sbr.rel (%p449) target = $region60
        $region59: #{tpu_custom_call.1} parent=55 // pred_region
          %452 = dma.done %s445, 1024
        $region60: #{tpu_custom_call.1} parent=55 // pred_fallthru
          _
        %s453 = sand.u32 %s31, 1
        %s454 = scalar_lea.sflag [#allocation8], %s453
        %s455 = sand.u32 %s89, 1
        %s456 = smul.addr %s455, 32
        %s457 = scalar_lea.vmem [#allocation7], %s456
        // Predicated region
        $region61: #{tpu_custom_call.1} parent=55 // pred_check
          %p458 = pneg %p102
        $region62: #{tpu_custom_call.1} parent=55 // pred_check_branch
          %460 = sbr.rel (%p458) target = $region64
        $region63: #{tpu_custom_call.1} parent=55 // pred_region
          %461 = dma.done %s454, 512
        $region64: #{tpu_custom_call.1} parent=55 // pred_fallthru
          _
        %s462 = sand.u32 %s31, 1
        %s463 = scalar_lea.sflag [#allocation8], %s462
        %s464 = sand.u32 %s125, 1
        %s465 = smul.addr %s464, 32
        %s466 = scalar_lea.vmem [#allocation9], %s465
        // Predicated region
        $region65: #{tpu_custom_call.1} parent=55 // pred_check
          %p467 = pneg %p138
        $region66: #{tpu_custom_call.1} parent=55 // pred_check_branch
          %469 = sbr.rel (%p467) target = $region68
        $region67: #{tpu_custom_call.1} parent=55 // pred_region
          %470 = dma.done %s463, 512
        $region68: #{tpu_custom_call.1} parent=55 // pred_fallthru
          _
        // Predicated region
        $region69: #{tpu_custom_call.1} parent=55 // pred_check
          %p471 = pneg %p159
        $region70: #{tpu_custom_call.1} parent=55 // pred_check_branch
          %473 = sbr.rel (%p471) target = $region72
        $region71: #{tpu_custom_call.1} parent=55 // pred_region
          %474 = dma.done [#allocation11], 3072
        $region72: #{tpu_custom_call.1} parent=55 // pred_fallthru
          _
        // Predicated region
        $region73: #{tpu_custom_call.1} parent=55 // pred_check
          %p475 = pneg %p180
        $region74: #{tpu_custom_call.1} parent=55 // pred_check_branch
          %477 = sbr.rel (%p475) target = $region76
        $region75: #{tpu_custom_call.1} parent=55 // pred_region
          %478 = dma.done [#allocation11], 9216
        $region76: #{tpu_custom_call.1} parent=55 // pred_fallthru
          _
        // Predicated region
        $region77: #{tpu_custom_call.1} parent=55 // pred_check
          %p479 = pneg %p201
        $region78: #{tpu_custom_call.1} parent=55 // pred_check_branch
          %481 = sbr.rel (%p479) target = $region80
        $region79: #{tpu_custom_call.1} parent=55 // pred_region
          %482 = dma.done [#allocation14], 1024
        $region80: #{tpu_custom_call.1} parent=55 // pred_fallthru
          _
        %s483 = sand.u32 %s53, 1
        %s484 = scalar_lea.sflag [#allocation5], %s483
        %s485 = sand.u32 %s53, 1
        %s486 = smul.addr %s485, 64
        %s487 = scalar_lea.vmem [#allocation4], %s486
        %p488 = pneg %p66
        %p489 = pneg %p63
        %s490 = sand.u32 %s31, 1
        %s491 = scalar_lea.sflag [#allocation8], %s490
        %s492 = sand.u32 %s89, 1
        %s493 = smul.addr %s492, 32
        %s494 = scalar_lea.vmem [#allocation7], %s493
        %p495 = pneg %p102
        %p496 = pneg %p99
        %s497 = sand.u32 %s31, 1
        %s498 = scalar_lea.sflag [#allocation8], %s497
        %s499 = sand.u32 %s125, 1
        %s500 = smul.addr %s499, 32
        %s501 = scalar_lea.vmem [#allocation9], %s500
        %p502 = pneg %p138
        %p503 = pneg %p135
        %p504 = pneg %p159
        %p505 = pneg %p156
        %p506 = pneg %p180
        %p507 = pneg %p177
        %p508 = pneg %p201
        %p509 = pneg %p198
        %p510 = pneg %p222
        %p511 = pneg %p219
        %p512 = pneg %p243
        %p513 = pneg %p240
        %p514 = pneg %p264
        %p515 = pneg %p261
        %p516 = pneg %p292
        %p517 = pneg %p289
        %s518 = sand.u32 %s279, 1
        %s519 = scalar_lea.sflag [#allocation6], %s518
        %s520 = sand.u32 %s279, 1
        %s521 = smul.addr %s520, 64
        %s522 = scalar_lea.vmem [#allocation15], %s521
        %s523 = smul.u32 2, %s36
        %s524 = smul.u32 %s36, 2
        %s525 = ssub.s32 %s524, 1
        %p526 = scmp.gt.s32.totalorder %s525, 0
        %s527 = scalar_select %p526, %s525, 0
        %s528 = sadd.s32 %s36, 1
        %s529 = smul.u32 %s528, 2
        %p530 = scmp.lt.s32.totalorder %s529, 3
        %s531 = scalar_select %p530, %s529, 3
        %s532 = smul.u32 2, %s36
        %v534 = vld [vmem:[%s448] sm:$0xf]
        %v535 = vld [vmem:[%s448 + $0x4] sm:$0xf]
        %v536 = vld [vmem:[%s448 + $0x8] sm:$0xf]
        %v537 = vld [vmem:[%s448 + $0xc] sm:$0xf]
        %v538 = vld [vmem:[%s448 + $0x10] sm:$0xf]
        %v539 = vld [vmem:[%s448 + $0x14] sm:$0xf]
        %v540 = vld [vmem:[%s448 + $0x18] sm:$0xf]
        %v541 = vld [vmem:[%s448 + $0x1c] sm:$0xf]
        %v542 = vld [vmem:[%s448 + $0x20] sm:$0xf]
        %v543 = vld [vmem:[%s448 + $0x24] sm:$0xf]
        %v544 = vld [vmem:[%s448 + $0x28] sm:$0xf]
        %v545 = vld [vmem:[%s448 + $0x2c] sm:$0xf]
        %v546 = vld [vmem:[%s448 + $0x30] sm:$0xf]
        %v547 = vld [vmem:[%s448 + $0x34] sm:$0xf]
        %v548 = vld [vmem:[%s448 + $0x38] sm:$0xf]
        %v549 = vld [vmem:[%s448 + $0x3c] sm:$0xf]
        %v550 = vld [vmem:[#allocation10] sm:$0xf]
        %v551 = vld [vmem:[#allocation10 + $0x4] sm:$0xf]
        %v552 = vld [vmem:[#allocation10 + $0x8] sm:$0xf]
        %v553 = vld [vmem:[#allocation10 + $0xc] sm:$0xf]
        %v554 = vld [vmem:[#allocation10 + $0x10] sm:$0xf]
        %v555 = vld [vmem:[#allocation10 + $0x14] sm:$0xf]
        %v556 = vld [vmem:[#allocation10 + $0x18] sm:$0xf]
        %v557 = vld [vmem:[#allocation10 + $0x1c] sm:$0xf]
        %v558 = vld [vmem:[#allocation10 + $0x20] sm:$0xf]
        %v559 = vld [vmem:[#allocation10 + $0x24] sm:$0xf]
        %v560 = vld [vmem:[#allocation10 + $0x28] sm:$0xf]
        %v561 = vld [vmem:[#allocation10 + $0x2c] sm:$0xf]
        %v562 = vld [vmem:[#allocation10 + $0x30] sm:$0xf]
        %v563 = vld [vmem:[#allocation10 + $0x34] sm:$0xf]
        %v564 = vld [vmem:[#allocation10 + $0x38] sm:$0xf]
        %v565 = vld [vmem:[#allocation10 + $0x3c] sm:$0xf]
        %v566 = vld [vmem:[#allocation10 + $0x40] sm:$0xf]
        %v567 = vld [vmem:[#allocation10 + $0x44] sm:$0xf]
        %v568 = vld [vmem:[#allocation10 + $0x48] sm:$0xf]
        %v569 = vld [vmem:[#allocation10 + $0x4c] sm:$0xf]
        %v570 = vld [vmem:[#allocation10 + $0x50] sm:$0xf]
        %v571 = vld [vmem:[#allocation10 + $0x54] sm:$0xf]
        %v572 = vld [vmem:[#allocation10 + $0x58] sm:$0xf]
        %v573 = vld [vmem:[#allocation10 + $0x5c] sm:$0xf]
        %v574 = vld [vmem:[#allocation10 + $0x60] sm:$0xf]
        %v575 = vld [vmem:[#allocation10 + $0x64] sm:$0xf]
        %v576 = vld [vmem:[#allocation10 + $0x68] sm:$0xf]
        %v577 = vld [vmem:[#allocation10 + $0x6c] sm:$0xf]
        %v578 = vld [vmem:[#allocation10 + $0x70] sm:$0xf]
        %v579 = vld [vmem:[#allocation10 + $0x74] sm:$0xf]
        %v580 = vld [vmem:[#allocation10 + $0x78] sm:$0xf]
        %v581 = vld [vmem:[#allocation10 + $0x7c] sm:$0xf]
        %v582 = vld [vmem:[#allocation10 + $0x80] sm:$0xf]
        %v583 = vld [vmem:[#allocation10 + $0x84] sm:$0xf]
        %v584 = vld [vmem:[#allocation10 + $0x88] sm:$0xf]
        %v585 = vld [vmem:[#allocation10 + $0x8c] sm:$0xf]
        %v586 = vld [vmem:[#allocation10 + $0x90] sm:$0xf]
        %v587 = vld [vmem:[#allocation10 + $0x94] sm:$0xf]
        %v588 = vld [vmem:[#allocation10 + $0x98] sm:$0xf]
        %v589 = vld [vmem:[#allocation10 + $0x9c] sm:$0xf]
        %v590 = vld [vmem:[#allocation10 + $0xa0] sm:$0xf]
        %v591 = vld [vmem:[#allocation10 + $0xa4] sm:$0xf]
        %v592 = vld [vmem:[#allocation10 + $0xa8] sm:$0xf]
        %v593 = vld [vmem:[#allocation10 + $0xac] sm:$0xf]
        %v594 = vld [vmem:[#allocation10 + $0xb0] sm:$0xf]
        %v595 = vld [vmem:[#allocation10 + $0xb4] sm:$0xf]
        %v596 = vld [vmem:[#allocation10 + $0xb8] sm:$0xf]
        %v597 = vld [vmem:[#allocation10 + $0xbc] sm:$0xf]
        %v614 = vunpack.c.l.b16 %v534
        %v615 = vunpack.c.l.b16 %v535
        %v616 = vunpack.c.l.b16 %v536
        %v617 = vunpack.c.l.b16 %v537
        %v618 = vunpack.c.l.b16 %v538
        %v619 = vunpack.c.l.b16 %v539
        %v620 = vunpack.c.l.b16 %v540
        %v621 = vunpack.c.l.b16 %v541
        %v622 = vunpack.c.l.b16 %v542
        %v623 = vunpack.c.l.b16 %v543
        %v624 = vunpack.c.l.b16 %v544
        %v625 = vunpack.c.l.b16 %v545
        %v626 = vunpack.c.l.b16 %v546
        %v627 = vunpack.c.l.b16 %v547
        %v628 = vunpack.c.l.b16 %v548
        %v629 = vunpack.c.l.b16 %v549
        %v630 = vpack.c.b16 %v615, %v614
        %v631 = vpack.c.b16 %v617, %v616
        %v632 = vpack.c.b16 %v619, %v618
        %v633 = vpack.c.b16 %v621, %v620
        %v634 = vpack.c.b16 %v623, %v622
        %v635 = vpack.c.b16 %v625, %v624
        %v636 = vpack.c.b16 %v627, %v626
        %v637 = vpack.c.b16 %v629, %v628
        %v662 = vunpack.c.l.b16 %v566
        %v663 = vunpack.c.l.b16 %v567
        %v664 = vunpack.c.l.b16 %v568
        %v665 = vunpack.c.l.b16 %v569
        %v666 = vunpack.c.l.b16 %v570
        %v667 = vunpack.c.l.b16 %v571
        %v668 = vunpack.c.l.b16 %v572
        %v669 = vunpack.c.l.b16 %v573
        %v670 = vunpack.c.l.b16 %v574
        %v671 = vunpack.c.l.b16 %v575
        %v672 = vunpack.c.l.b16 %v576
        %v673 = vunpack.c.l.b16 %v577
        %v674 = vunpack.c.l.b16 %v578
        %v675 = vunpack.c.l.b16 %v579
        %v676 = vunpack.c.l.b16 %v580
        %v677 = vunpack.c.l.b16 %v581
        %v678 = vpack.c.b16 %v663, %v662
        %v679 = vpack.c.b16 %v665, %v664
        %v680 = vpack.c.b16 %v667, %v666
        %v681 = vpack.c.b16 %v669, %v668
        %v682 = vpack.c.b16 %v671, %v670
        %v683 = vpack.c.b16 %v673, %v672
        %v684 = vpack.c.b16 %v675, %v674
        %v685 = vpack.c.b16 %v677, %v676
        %694 = vmatprep.subr.bf16.mxu0 0
        %695 = vmatpush1.bf16.msra.mxu0 %v685
        %696 = vmatprep.subr.bf16.mxu0 0
        %697 = vmatpush1.bf16.msra.mxu0 %v684
        %698 = vmatprep.subr.bf16.mxu0 0
        %699 = vmatpush1.bf16.msra.mxu0 %v683
        %700 = vmatprep.subr.bf16.mxu0 0
        %701 = vmatpush1.bf16.msra.mxu0 %v682
        %702 = vmatprep.subr.bf16.mxu0 0
        %703 = vmatpush1.bf16.msra.mxu0 %v681
        %704 = vmatprep.subr.bf16.mxu0 0
        %705 = vmatpush1.bf16.msra.mxu0 %v680
        %706 = vmatprep.subr.bf16.mxu0 0
        %707 = vmatpush1.bf16.msra.mxu0 %v679
        %708 = vmatprep.subr.bf16.mxu0 0
        %709 = vmatpush1.bf16.msra.mxu0 %v678
        %710 = vmatprep.subr.bf16.mxu0 0
        %711 = vmatpush2.bf16.msra.mxu0 0
        %712 = vmatprep.subr.bf16.mxu0 0
        %713 = vmatpush2.bf16.msra.mxu0 0
        %714 = vmatprep.subr.bf16.mxu0 0
        %715 = vmatpush2.bf16.msra.mxu0 0
        %716 = vmatprep.subr.bf16.mxu0 0
        %717 = vmatpush2.bf16.msra.mxu0 0
        %718 = vmatprep.subr.bf16.mxu0 0
        %719 = vmatpush2.bf16.msra.mxu0 0
        %720 = vmatprep.subr.bf16.mxu0 0
        %721 = vmatpush2.bf16.msra.mxu0 0
        %722 = vmatprep.subr.bf16.mxu0 0
        %723 = vmatpush2.bf16.msra.mxu0 0
        %724 = vmatprep.subr.bf16.mxu0 0
        %725 = vmatpush2.bf16.msra.mxu0 0
        %726 = vmatprep.mubr.bf16.mxu0 0
        %727 = vmatmul.mubr.bf16.gmra.mxu0 %v630
        %v728 = vpop.f32.mrf.mxu0
        %v729 = vadd.f32 0.0, %v728
        %v730 = vpop.f32.mrf.mxu0
        %v731 = vpop.f32.mrf.mxu0
        %v732 = vadd.f32 0.0, %v731
        %v733 = vpop.f32.mrf.mxu0
        %734 = vmatprep.mubr.bf16.mxu0 0
        %735 = vmatmul.mubr.bf16.gmra.mxu0 %v631
        %v736 = vpop.f32.mrf.mxu0
        %v737 = vadd.f32 0.0, %v736
        %v738 = vpop.f32.mrf.mxu0
        %v739 = vpop.f32.mrf.mxu0
        %v740 = vadd.f32 0.0, %v739
        %v741 = vpop.f32.mrf.mxu0
        %742 = vmatprep.mubr.bf16.mxu0 0
        %743 = vmatmul.mubr.bf16.gmra.mxu0 %v632
        %v744 = vpop.f32.mrf.mxu0
        %v745 = vadd.f32 0.0, %v744
        %v746 = vpop.f32.mrf.mxu0
        %v747 = vpop.f32.mrf.mxu0
        %v748 = vadd.f32 0.0, %v747
        %v749 = vpop.f32.mrf.mxu0
        %750 = vmatprep.mubr.bf16.mxu0 0
        %751 = vmatmul.mubr.bf16.gmra.mxu0 %v633
        %v752 = vpop.f32.mrf.mxu0
        %v753 = vadd.f32 0.0, %v752
        %v754 = vpop.f32.mrf.mxu0
        %v755 = vpop.f32.mrf.mxu0
        %v756 = vadd.f32 0.0, %v755
        %v757 = vpop.f32.mrf.mxu0
        %758 = vmatprep.mubr.bf16.mxu0 0
        %759 = vmatmul.mubr.bf16.gmra.mxu0 %v634
        %v760 = vpop.f32.mrf.mxu0
        %v761 = vadd.f32 0.0, %v760
        %v762 = vpop.f32.mrf.mxu0
        %v763 = vpop.f32.mrf.mxu0
        %v764 = vadd.f32 0.0, %v763
        %v765 = vpop.f32.mrf.mxu0
        %766 = vmatprep.mubr.bf16.mxu0 0
        %767 = vmatmul.mubr.bf16.gmra.mxu0 %v635
        %v768 = vpop.f32.mrf.mxu0
        %v769 = vadd.f32 0.0, %v768
        %v770 = vpop.f32.mrf.mxu0
        %v771 = vpop.f32.mrf.mxu0
        %v772 = vadd.f32 0.0, %v771
        %v773 = vpop.f32.mrf.mxu0
        %774 = vmatprep.mubr.bf16.mxu0 0
        %775 = vmatmul.mubr.bf16.gmra.mxu0 %v636
        %v776 = vpop.f32.mrf.mxu0
        %v777 = vadd.f32 0.0, %v776
        %v778 = vpop.f32.mrf.mxu0
        %v779 = vpop.f32.mrf.mxu0
        %v780 = vadd.f32 0.0, %v779
        %v781 = vpop.f32.mrf.mxu0
        %782 = vmatprep.mubr.bf16.mxu0 0
        %783 = vmatmul.mubr.bf16.gmra.mxu0 %v637
        %v784 = vpop.f32.mrf.mxu0
        %v785 = vadd.f32 0.0, %v784
        %v786 = vpop.f32.mrf.mxu0
        %v787 = vpop.f32.mrf.mxu0
        %v788 = vadd.f32 0.0, %v787
        %v789 = vpop.f32.mrf.mxu0
        %790 = vdwg.mxu0
        %791 = vst [vmem:[#allocation2] sm:$0xff] %v729
        %792 = vst [vmem:[#allocation2 + $0x8] sm:$0xff] %v732
        %793 = vst [vmem:[#allocation2 + $0x10] sm:$0xff] %v737
        %794 = vst [vmem:[#allocation2 + $0x18] sm:$0xff] %v740
        %795 = vst [vmem:[#allocation2 + $0x20] sm:$0xff] %v745
        %796 = vst [vmem:[#allocation2 + $0x28] sm:$0xff] %v748
        %797 = vst [vmem:[#allocation2 + $0x30] sm:$0xff] %v753
        %798 = vst [vmem:[#allocation2 + $0x38] sm:$0xff] %v756
        %799 = vst [vmem:[#allocation2 + $0x40] sm:$0xff] %v761
        %800 = vst [vmem:[#allocation2 + $0x48] sm:$0xff] %v764
        %801 = vst [vmem:[#allocation2 + $0x50] sm:$0xff] %v769
        %802 = vst [vmem:[#allocation2 + $0x58] sm:$0xff] %v772
        %803 = vst [vmem:[#allocation2 + $0x60] sm:$0xff] %v777
        %804 = vst [vmem:[#allocation2 + $0x68] sm:$0xff] %v780
        %805 = vst [vmem:[#allocation2 + $0x70] sm:$0xff] %v785
        %806 = vst [vmem:[#allocation2 + $0x78] sm:$0xff] %v788
        %v807 = vld [vmem:[#allocation2 + $0x40] sm:$0xff]
        %v808 = vld [vmem:[#allocation2 + $0x48] sm:$0xff]
        %v809 = vld [vmem:[#allocation2 + $0x50] sm:$0xff]
        %v810 = vld [vmem:[#allocation2 + $0x58] sm:$0xff]
        %v811 = vld [vmem:[#allocation2 + $0x60] sm:$0xff]
        %v812 = vld [vmem:[#allocation2 + $0x68] sm:$0xff]
        %v813 = vld [vmem:[#allocation2 + $0x70] sm:$0xff]
        %v814 = vld [vmem:[#allocation2 + $0x78] sm:$0xff]
        %v831 = vunpack.c.l.b16 %v550
        %v832 = vunpack.c.l.b16 %v551
        %v833 = vunpack.c.l.b16 %v552
        %v834 = vunpack.c.l.b16 %v553
        %v835 = vunpack.c.l.b16 %v554
        %v836 = vunpack.c.l.b16 %v555
        %v837 = vunpack.c.l.b16 %v556
        %v838 = vunpack.c.l.b16 %v557
        %v839 = vunpack.c.l.b16 %v558
        %v840 = vunpack.c.l.b16 %v559
        %v841 = vunpack.c.l.b16 %v560
        %v842 = vunpack.c.l.b16 %v561
        %v843 = vunpack.c.l.b16 %v562
        %v844 = vunpack.c.l.b16 %v563
        %v845 = vunpack.c.l.b16 %v564
        %v846 = vunpack.c.l.b16 %v565
        %v847 = vpack.c.b16 %v832, %v831
        %v848 = vpack.c.b16 %v834, %v833
        %v849 = vpack.c.b16 %v836, %v835
        %v850 = vpack.c.b16 %v838, %v837
        %v851 = vpack.c.b16 %v840, %v839
        %v852 = vpack.c.b16 %v842, %v841
        %v853 = vpack.c.b16 %v844, %v843
        %v854 = vpack.c.b16 %v846, %v845
        %863 = vmatprep.subr.bf16.mxu0 0
        %864 = vmatpush1.bf16.msra.mxu0 %v854
        %865 = vmatprep.subr.bf16.mxu0 0
        %866 = vmatpush1.bf16.msra.mxu0 %v853
        %867 = vmatprep.subr.bf16.mxu0 0
        %868 = vmatpush1.bf16.msra.mxu0 %v852
        %869 = vmatprep.subr.bf16.mxu0 0
        %870 = vmatpush1.bf16.msra.mxu0 %v851
        %871 = vmatprep.subr.bf16.mxu0 0
        %872 = vmatpush1.bf16.msra.mxu0 %v850
        %873 = vmatprep.subr.bf16.mxu0 0
        %874 = vmatpush1.bf16.msra.mxu0 %v849
        %875 = vmatprep.subr.bf16.mxu0 0
        %876 = vmatpush1.bf16.msra.mxu0 %v848
        %877 = vmatprep.subr.bf16.mxu0 0
        %878 = vmatpush1.bf16.msra.mxu0 %v847
        %879 = vmatprep.subr.bf16.mxu0 0
        %880 = vmatpush2.bf16.msra.mxu0 0
        %881 = vmatprep.subr.bf16.mxu0 0
        %882 = vmatpush2.bf16.msra.mxu0 0
        %883 = vmatprep.subr.bf16.mxu0 0
        %884 = vmatpush2.bf16.msra.mxu0 0
        %885 = vmatprep.subr.bf16.mxu0 0
        %886 = vmatpush2.bf16.msra.mxu0 0
        %887 = vmatprep.subr.bf16.mxu0 0
        %888 = vmatpush2.bf16.msra.mxu0 0
        %889 = vmatprep.subr.bf16.mxu0 0
        %890 = vmatpush2.bf16.msra.mxu0 0
        %891 = vmatprep.subr.bf16.mxu0 0
        %892 = vmatpush2.bf16.msra.mxu0 0
        %893 = vmatprep.subr.bf16.mxu0 0
        %894 = vmatpush2.bf16.msra.mxu0 0
        %895 = vmatprep.mubr.bf16.mxu0 0
        %896 = vmatmul.mubr.bf16.gmra.mxu0 %v630
        %v897 = vpop.f32.mrf.mxu0
        %v898 = vadd.f32 0.0, %v897
        %v899 = vpop.f32.mrf.mxu0
        %v900 = vpop.f32.mrf.mxu0
        %v901 = vadd.f32 0.0, %v900
        %v902 = vpop.f32.mrf.mxu0
        %903 = vmatprep.mubr.bf16.mxu0 0
        %904 = vmatmul.mubr.bf16.gmra.mxu0 %v631
        %v905 = vpop.f32.mrf.mxu0
        %v906 = vadd.f32 0.0, %v905
        %v907 = vpop.f32.mrf.mxu0
        %v908 = vpop.f32.mrf.mxu0
        %v909 = vadd.f32 0.0, %v908
        %v910 = vpop.f32.mrf.mxu0
        %911 = vmatprep.mubr.bf16.mxu0 0
        %912 = vmatmul.mubr.bf16.gmra.mxu0 %v632
        %v913 = vpop.f32.mrf.mxu0
        %v914 = vadd.f32 0.0, %v913
        %v915 = vpop.f32.mrf.mxu0
        %v916 = vpop.f32.mrf.mxu0
        %v917 = vadd.f32 0.0, %v916
        %v918 = vpop.f32.mrf.mxu0
        %919 = vmatprep.mubr.bf16.mxu0 0
        %920 = vmatmul.mubr.bf16.gmra.mxu0 %v633
        %v921 = vpop.f32.mrf.mxu0
        %v922 = vadd.f32 0.0, %v921
        %v923 = vpop.f32.mrf.mxu0
        %v924 = vpop.f32.mrf.mxu0
        %v925 = vadd.f32 0.0, %v924
        %v926 = vpop.f32.mrf.mxu0
        %927 = vdwg.mxu0
        %v928 = vadd.f32 %v807, %v898
        %v929 = vadd.f32 %v808, %v901
        %v930 = vadd.f32 %v809, %v906
        %v931 = vadd.f32 %v810, %v909
        %v932 = vadd.f32 %v811, %v914
        %v933 = vadd.f32 %v812, %v917
        %v934 = vadd.f32 %v813, %v922
        %v935 = vadd.f32 %v814, %v925
        %936 = vst [vmem:[#allocation2 + $0x40] sm:$0xff] %v928
        %937 = vst [vmem:[#allocation2 + $0x48] sm:$0xff] %v929
        %938 = vst [vmem:[#allocation2 + $0x50] sm:$0xff] %v930
        %939 = vst [vmem:[#allocation2 + $0x58] sm:$0xff] %v931
        %940 = vst [vmem:[#allocation2 + $0x60] sm:$0xff] %v932
        %941 = vst [vmem:[#allocation2 + $0x68] sm:$0xff] %v933
        %942 = vst [vmem:[#allocation2 + $0x70] sm:$0xff] %v934
        %943 = vst [vmem:[#allocation2 + $0x78] sm:$0xff] %v935
        %v944 = vld [vmem:[#allocation2] sm:$0xff]
        %v945 = vld [vmem:[#allocation2 + $0x8] sm:$0xff]
        %v946 = vld [vmem:[#allocation2 + $0x10] sm:$0xff]
        %v947 = vld [vmem:[#allocation2 + $0x18] sm:$0xff]
        %v948 = vld [vmem:[#allocation2 + $0x20] sm:$0xff]
        %v949 = vld [vmem:[#allocation2 + $0x28] sm:$0xff]
        %v950 = vld [vmem:[#allocation2 + $0x30] sm:$0xff]
        %v951 = vld [vmem:[#allocation2 + $0x38] sm:$0xff]
        %v968 = vunpack.c.l.b16 %v582
        %v969 = vunpack.c.l.b16 %v583
        %v970 = vunpack.c.l.b16 %v584
        %v971 = vunpack.c.l.b16 %v585
        %v972 = vunpack.c.l.b16 %v586
        %v973 = vunpack.c.l.b16 %v587
        %v974 = vunpack.c.l.b16 %v588
        %v975 = vunpack.c.l.b16 %v589
        %v976 = vunpack.c.l.b16 %v590
        %v977 = vunpack.c.l.b16 %v591
        %v978 = vunpack.c.l.b16 %v592
        %v979 = vunpack.c.l.b16 %v593
        %v980 = vunpack.c.l.b16 %v594
        %v981 = vunpack.c.l.b16 %v595
        %v982 = vunpack.c.l.b16 %v596
        %v983 = vunpack.c.l.b16 %v597
        %v984 = vpack.c.b16 %v969, %v968
        %v985 = vpack.c.b16 %v971, %v970
        %v986 = vpack.c.b16 %v973, %v972
        %v987 = vpack.c.b16 %v975, %v974
        %v988 = vpack.c.b16 %v977, %v976
        %v989 = vpack.c.b16 %v979, %v978
        %v990 = vpack.c.b16 %v981, %v980
        %v991 = vpack.c.b16 %v983, %v982
        %1000 = vmatprep.subr.bf16.mxu0 0
        %1001 = vmatpush1.bf16.msra.mxu0 %v991
        %1002 = vmatprep.subr.bf16.mxu0 0
        %1003 = vmatpush1.bf16.msra.mxu0 %v990
        %1004 = vmatprep.subr.bf16.mxu0 0
        %1005 = vmatpush1.bf16.msra.mxu0 %v989
        %1006 = vmatprep.subr.bf16.mxu0 0
        %1007 = vmatpush1.bf16.msra.mxu0 %v988
        %1008 = vmatprep.subr.bf16.mxu0 0
        %1009 = vmatpush1.bf16.msra.mxu0 %v987
        %1010 = vmatprep.subr.bf16.mxu0 0
        %1011 = vmatpush1.bf16.msra.mxu0 %v986
        %1012 = vmatprep.subr.bf16.mxu0 0
        %1013 = vmatpush1.bf16.msra.mxu0 %v985
        %1014 = vmatprep.subr.bf16.mxu0 0
        %1015 = vmatpush1.bf16.msra.mxu0 %v984
        %1016 = vmatprep.subr.bf16.mxu0 0
        %1017 = vmatpush2.bf16.msra.mxu0 0
        %1018 = vmatprep.subr.bf16.mxu0 0
        %1019 = vmatpush2.bf16.msra.mxu0 0
        %1020 = vmatprep.subr.bf16.mxu0 0
        %1021 = vmatpush2.bf16.msra.mxu0 0
        %1022 = vmatprep.subr.bf16.mxu0 0
        %1023 = vmatpush2.bf16.msra.mxu0 0
        %1024 = vmatprep.subr.bf16.mxu0 0
        %1025 = vmatpush2.bf16.msra.mxu0 0
        %1026 = vmatprep.subr.bf16.mxu0 0
        %1027 = vmatpush2.bf16.msra.mxu0 0
        %1028 = vmatprep.subr.bf16.mxu0 0
        %1029 = vmatpush2.bf16.msra.mxu0 0
        %1030 = vmatprep.subr.bf16.mxu0 0
        %1031 = vmatpush2.bf16.msra.mxu0 0
        %1032 = vmatprep.mubr.bf16.mxu0 0
        %1033 = vmatmul.mubr.bf16.gmra.mxu0 %v634
        %v1034 = vpop.f32.mrf.mxu0
        %v1035 = vadd.f32 0.0, %v1034
        %v1036 = vpop.f32.mrf.mxu0
        %v1037 = vpop.f32.mrf.mxu0
        %v1038 = vadd.f32 0.0, %v1037
        %v1039 = vpop.f32.mrf.mxu0
        %1040 = vmatprep.mubr.bf16.mxu0 0
        %1041 = vmatmul.mubr.bf16.gmra.mxu0 %v635
        %v1042 = vpop.f32.mrf.mxu0
        %v1043 = vadd.f32 0.0, %v1042
        %v1044 = vpop.f32.mrf.mxu0
        %v1045 = vpop.f32.mrf.mxu0
        %v1046 = vadd.f32 0.0, %v1045
        %v1047 = vpop.f32.mrf.mxu0
        %1048 = vmatprep.mubr.bf16.mxu0 0
        %1049 = vmatmul.mubr.bf16.gmra.mxu0 %v636
        %v1050 = vpop.f32.mrf.mxu0
        %v1051 = vadd.f32 0.0, %v1050
        %v1052 = vpop.f32.mrf.mxu0
        %v1053 = vpop.f32.mrf.mxu0
        %v1054 = vadd.f32 0.0, %v1053
        %v1055 = vpop.f32.mrf.mxu0
        %1056 = vmatprep.mubr.bf16.mxu0 0
        %1057 = vmatmul.mubr.bf16.gmra.mxu0 %v637
        %v1058 = vpop.f32.mrf.mxu0
        %v1059 = vadd.f32 0.0, %v1058
        %v1060 = vpop.f32.mrf.mxu0
        %v1061 = vpop.f32.mrf.mxu0
        %v1062 = vadd.f32 0.0, %v1061
        %v1063 = vpop.f32.mrf.mxu0
        %1064 = vdwg.mxu0
        %v1065 = vadd.f32 %v944, %v1035
        %v1066 = vadd.f32 %v945, %v1038
        %v1067 = vadd.f32 %v946, %v1043
        %v1068 = vadd.f32 %v947, %v1046
        %v1069 = vadd.f32 %v948, %v1051
        %v1070 = vadd.f32 %v949, %v1054
        %v1071 = vadd.f32 %v950, %v1059
        %v1072 = vadd.f32 %v951, %v1062
        %1073 = vst [vmem:[#allocation2] sm:$0xff] %v1065
        %1074 = vst [vmem:[#allocation2 + $0x8] sm:$0xff] %v1066
        %1075 = vst [vmem:[#allocation2 + $0x10] sm:$0xff] %v1067
        %1076 = vst [vmem:[#allocation2 + $0x18] sm:$0xff] %v1068
        %1077 = vst [vmem:[#allocation2 + $0x20] sm:$0xff] %v1069
        %1078 = vst [vmem:[#allocation2 + $0x28] sm:$0xff] %v1070
        %1079 = vst [vmem:[#allocation2 + $0x30] sm:$0xff] %v1071
        %1080 = vst [vmem:[#allocation2 + $0x38] sm:$0xff] %v1072
        %p1081 = scmp.gt.s32.totalorder %s36, 0
        // Predicated region
        $region81: #{tpu_custom_call.1} parent=55 // pred_check
          %p1082 = pneg %p1081
        $region82: #{tpu_custom_call.1} parent=55 // pred_check_branch
          %1084 = sbr.rel (%p1082) target = $region84
        $region83: #{tpu_custom_call.1} parent=55 // pred_region
          %v1085 = vld [vmem:[%s457] sm:$0xf]
          %v1086 = vld [vmem:[%s457 + $0x4] sm:$0xf]
          %v1087 = vld [vmem:[%s457 + $0x8] sm:$0xf]
          %v1088 = vld [vmem:[%s457 + $0xc] sm:$0xf]
          %v1089 = vld [vmem:[%s457 + $0x10] sm:$0xf]
          %v1090 = vld [vmem:[%s457 + $0x14] sm:$0xf]
          %v1091 = vld [vmem:[%s457 + $0x18] sm:$0xf]
          %v1092 = vld [vmem:[%s457 + $0x1c] sm:$0xf]
          %v1093 = vld [vmem:[#allocation2] sm:$0xff]
          %v1094 = vld [vmem:[#allocation2 + $0x8] sm:$0xff]
          %v1095 = vld [vmem:[#allocation2 + $0x10] sm:$0xff]
          %v1096 = vld [vmem:[#allocation2 + $0x18] sm:$0xff]
          %v1097 = vld [vmem:[#allocation2 + $0x20] sm:$0xff]
          %v1098 = vld [vmem:[#allocation2 + $0x28] sm:$0xff]
          %v1099 = vld [vmem:[#allocation2 + $0x30] sm:$0xff]
          %v1100 = vld [vmem:[#allocation2 + $0x38] sm:$0xff]
          %v1109 = vunpack.c.l.b16 %v1085
          %v1110 = vunpack.c.l.b16 %v1086
          %v1111 = vunpack.c.l.b16 %v1087
          %v1112 = vunpack.c.l.b16 %v1088
          %v1113 = vunpack.c.l.b16 %v1089
          %v1114 = vunpack.c.l.b16 %v1090
          %v1115 = vunpack.c.l.b16 %v1091
          %v1116 = vunpack.c.l.b16 %v1092
          %v1117 = vpack.c.b16 %v1110, %v1109
          %v1118 = vpack.c.b16 %v1112, %v1111
          %v1119 = vpack.c.b16 %v1114, %v1113
          %v1120 = vpack.c.b16 %v1116, %v1115
          %1125 = vmatprep.subr.bf16.mxu0 0
          %1126 = vmatpush1.bf16.msra.mxu0 %v854
          %1127 = vmatprep.subr.bf16.mxu0 0
          %1128 = vmatpush1.bf16.msra.mxu0 %v853
          %1129 = vmatprep.subr.bf16.mxu0 0
          %1130 = vmatpush1.bf16.msra.mxu0 %v852
          %1131 = vmatprep.subr.bf16.mxu0 0
          %1132 = vmatpush1.bf16.msra.mxu0 %v851
          %1133 = vmatprep.subr.bf16.mxu0 0
          %1134 = vmatpush1.bf16.msra.mxu0 %v850
          %1135 = vmatprep.subr.bf16.mxu0 0
          %1136 = vmatpush1.bf16.msra.mxu0 %v849
          %1137 = vmatprep.subr.bf16.mxu0 0
          %1138 = vmatpush1.bf16.msra.mxu0 %v848
          %1139 = vmatprep.subr.bf16.mxu0 0
          %1140 = vmatpush1.bf16.msra.mxu0 %v847
          %1141 = vmatprep.subr.bf16.mxu0 0
          %1142 = vmatpush2.bf16.msra.mxu0 0
          %1143 = vmatprep.subr.bf16.mxu0 0
          %1144 = vmatpush2.bf16.msra.mxu0 0
          %1145 = vmatprep.subr.bf16.mxu0 0
          %1146 = vmatpush2.bf16.msra.mxu0 0
          %1147 = vmatprep.subr.bf16.mxu0 0
          %1148 = vmatpush2.bf16.msra.mxu0 0
          %1149 = vmatprep.subr.bf16.mxu0 0
          %1150 = vmatpush2.bf16.msra.mxu0 0
          %1151 = vmatprep.subr.bf16.mxu0 0
          %1152 = vmatpush2.bf16.msra.mxu0 0
          %1153 = vmatprep.subr.bf16.mxu0 0
          %1154 = vmatpush2.bf16.msra.mxu0 0
          %1155 = vmatprep.subr.bf16.mxu0 0
          %1156 = vmatpush2.bf16.msra.mxu0 0
          %1157 = vmatprep.mubr.bf16.mxu0 0
          %1158 = vmatmul.mubr.bf16.gmra.mxu0 %v1117
          %v1159 = vpop.f32.mrf.mxu0
          %v1160 = vadd.f32 0.0, %v1159
          %v1161 = vpop.f32.mrf.mxu0
          %v1162 = vpop.f32.mrf.mxu0
          %v1163 = vadd.f32 0.0, %v1162
          %v1164 = vpop.f32.mrf.mxu0
          %1165 = vmatprep.mubr.bf16.mxu0 0
          %1166 = vmatmul.mubr.bf16.gmra.mxu0 %v1118
          %v1167 = vpop.f32.mrf.mxu0
          %v1168 = vadd.f32 0.0, %v1167
          %v1169 = vpop.f32.mrf.mxu0
          %v1170 = vpop.f32.mrf.mxu0
          %v1171 = vadd.f32 0.0, %v1170
          %v1172 = vpop.f32.mrf.mxu0
          %1173 = vmatprep.mubr.bf16.mxu0 0
          %1174 = vmatmul.mubr.bf16.gmra.mxu0 %v1119
          %v1175 = vpop.f32.mrf.mxu0
          %v1176 = vadd.f32 0.0, %v1175
          %v1177 = vpop.f32.mrf.mxu0
          %v1178 = vpop.f32.mrf.mxu0
          %v1179 = vadd.f32 0.0, %v1178
          %v1180 = vpop.f32.mrf.mxu0
          %1181 = vmatprep.mubr.bf16.mxu0 0
          %1182 = vmatmul.mubr.bf16.gmra.mxu0 %v1120
          %v1183 = vpop.f32.mrf.mxu0
          %v1184 = vadd.f32 0.0, %v1183
          %v1185 = vpop.f32.mrf.mxu0
          %v1186 = vpop.f32.mrf.mxu0
          %v1187 = vadd.f32 0.0, %v1186
          %v1188 = vpop.f32.mrf.mxu0
          %1189 = vdwg.mxu0
          %v1190 = vadd.f32 %v1093, %v1160
          %v1191 = vadd.f32 %v1094, %v1163
          %v1192 = vadd.f32 %v1095, %v1168
          %v1193 = vadd.f32 %v1096, %v1171
          %v1194 = vadd.f32 %v1097, %v1176
          %v1195 = vadd.f32 %v1098, %v1179
          %v1196 = vadd.f32 %v1099, %v1184
          %v1197 = vadd.f32 %v1100, %v1187
          %1198 = vst [vmem:[#allocation2] sm:$0xff] %v1190
          %1199 = vst [vmem:[#allocation2 + $0x8] sm:$0xff] %v1191
          %1200 = vst [vmem:[#allocation2 + $0x10] sm:$0xff] %v1192
          %1201 = vst [vmem:[#allocation2 + $0x18] sm:$0xff] %v1193
          %1202 = vst [vmem:[#allocation2 + $0x20] sm:$0xff] %v1194
          %1203 = vst [vmem:[#allocation2 + $0x28] sm:$0xff] %v1195
          %1204 = vst [vmem:[#allocation2 + $0x30] sm:$0xff] %v1196
          %1205 = vst [vmem:[#allocation2 + $0x38] sm:$0xff] %v1197
        $region84: #{tpu_custom_call.1} parent=55 // pred_fallthru
          _
        %p1206 = scmp.lt.s32.totalorder %s36, 1
        // Predicated region
        $region85: #{tpu_custom_call.1} parent=55 // pred_check
          %p1207 = pneg %p1206
        $region86: #{tpu_custom_call.1} parent=55 // pred_check_branch
          %1209 = sbr.rel (%p1207) target = $region88
        $region87: #{tpu_custom_call.1} parent=55 // pred_region
          %v1210 = vld [vmem:[%s466] sm:$0xf]
          %v1211 = vld [vmem:[%s466 + $0x4] sm:$0xf]
          %v1212 = vld [vmem:[%s466 + $0x8] sm:$0xf]
          %v1213 = vld [vmem:[%s466 + $0xc] sm:$0xf]
          %v1214 = vld [vmem:[%s466 + $0x10] sm:$0xf]
          %v1215 = vld [vmem:[%s466 + $0x14] sm:$0xf]
          %v1216 = vld [vmem:[%s466 + $0x18] sm:$0xf]
          %v1217 = vld [vmem:[%s466 + $0x1c] sm:$0xf]
          %v1218 = vld [vmem:[#allocation2 + $0x40] sm:$0xff]
          %v1219 = vld [vmem:[#allocation2 + $0x48] sm:$0xff]
          %v1220 = vld [vmem:[#allocation2 + $0x50] sm:$0xff]
          %v1221 = vld [vmem:[#allocation2 + $0x58] sm:$0xff]
          %v1222 = vld [vmem:[#allocation2 + $0x60] sm:$0xff]
          %v1223 = vld [vmem:[#allocation2 + $0x68] sm:$0xff]
          %v1224 = vld [vmem:[#allocation2 + $0x70] sm:$0xff]
          %v1225 = vld [vmem:[#allocation2 + $0x78] sm:$0xff]
          %v1234 = vunpack.c.l.b16 %v1210
          %v1235 = vunpack.c.l.b16 %v1211
          %v1236 = vunpack.c.l.b16 %v1212
          %v1237 = vunpack.c.l.b16 %v1213
          %v1238 = vunpack.c.l.b16 %v1214
          %v1239 = vunpack.c.l.b16 %v1215
          %v1240 = vunpack.c.l.b16 %v1216
          %v1241 = vunpack.c.l.b16 %v1217
          %v1242 = vpack.c.b16 %v1235, %v1234
          %v1243 = vpack.c.b16 %v1237, %v1236
          %v1244 = vpack.c.b16 %v1239, %v1238
          %v1245 = vpack.c.b16 %v1241, %v1240
          %1250 = vmatprep.subr.bf16.mxu0 0
          %1251 = vmatpush1.bf16.msra.mxu0 %v991
          %1252 = vmatprep.subr.bf16.mxu0 0
          %1253 = vmatpush1.bf16.msra.mxu0 %v990
          %1254 = vmatprep.subr.bf16.mxu0 0
          %1255 = vmatpush1.bf16.msra.mxu0 %v989
          %1256 = vmatprep.subr.bf16.mxu0 0
          %1257 = vmatpush1.bf16.msra.mxu0 %v988
          %1258 = vmatprep.subr.bf16.mxu0 0
          %1259 = vmatpush1.bf16.msra.mxu0 %v987
          %1260 = vmatprep.subr.bf16.mxu0 0
          %1261 = vmatpush1.bf16.msra.mxu0 %v986
          %1262 = vmatprep.subr.bf16.mxu0 0
          %1263 = vmatpush1.bf16.msra.mxu0 %v985
          %1264 = vmatprep.subr.bf16.mxu0 0
          %1265 = vmatpush1.bf16.msra.mxu0 %v984
          %1266 = vmatprep.subr.bf16.mxu0 0
          %1267 = vmatpush2.bf16.msra.mxu0 0
          %1268 = vmatprep.subr.bf16.mxu0 0
          %1269 = vmatpush2.bf16.msra.mxu0 0
          %1270 = vmatprep.subr.bf16.mxu0 0
          %1271 = vmatpush2.bf16.msra.mxu0 0
          %1272 = vmatprep.subr.bf16.mxu0 0
          %1273 = vmatpush2.bf16.msra.mxu0 0
          %1274 = vmatprep.subr.bf16.mxu0 0
          %1275 = vmatpush2.bf16.msra.mxu0 0
          %1276 = vmatprep.subr.bf16.mxu0 0
          %1277 = vmatpush2.bf16.msra.mxu0 0
          %1278 = vmatprep.subr.bf16.mxu0 0
          %1279 = vmatpush2.bf16.msra.mxu0 0
          %1280 = vmatprep.subr.bf16.mxu0 0
          %1281 = vmatpush2.bf16.msra.mxu0 0
          %1282 = vmatprep.mubr.bf16.mxu0 0
          %1283 = vmatmul.mubr.bf16.gmra.mxu0 %v1242
          %v1284 = vpop.f32.mrf.mxu0
          %v1285 = vadd.f32 0.0, %v1284
          %v1286 = vpop.f32.mrf.mxu0
          %v1287 = vpop.f32.mrf.mxu0
          %v1288 = vadd.f32 0.0, %v1287
          %v1289 = vpop.f32.mrf.mxu0
          %1290 = vmatprep.mubr.bf16.mxu0 0
          %1291 = vmatmul.mubr.bf16.gmra.mxu0 %v1243
          %v1292 = vpop.f32.mrf.mxu0
          %v1293 = vadd.f32 0.0, %v1292
          %v1294 = vpop.f32.mrf.mxu0
          %v1295 = vpop.f32.mrf.mxu0
          %v1296 = vadd.f32 0.0, %v1295
          %v1297 = vpop.f32.mrf.mxu0
          %1298 = vmatprep.mubr.bf16.mxu0 0
          %1299 = vmatmul.mubr.bf16.gmra.mxu0 %v1244
          %v1300 = vpop.f32.mrf.mxu0
          %v1301 = vadd.f32 0.0, %v1300
          %v1302 = vpop.f32.mrf.mxu0
          %v1303 = vpop.f32.mrf.mxu0
          %v1304 = vadd.f32 0.0, %v1303
          %v1305 = vpop.f32.mrf.mxu0
          %1306 = vmatprep.mubr.bf16.mxu0 0
          %1307 = vmatmul.mubr.bf16.gmra.mxu0 %v1245
          %v1308 = vpop.f32.mrf.mxu0
          %v1309 = vadd.f32 0.0, %v1308
          %v1310 = vpop.f32.mrf.mxu0
          %v1311 = vpop.f32.mrf.mxu0
          %v1312 = vadd.f32 0.0, %v1311
          %v1313 = vpop.f32.mrf.mxu0
          %1314 = vdwg.mxu0
          %v1315 = vadd.f32 %v1218, %v1285
          %v1316 = vadd.f32 %v1219, %v1288
          %v1317 = vadd.f32 %v1220, %v1293
          %v1318 = vadd.f32 %v1221, %v1296
          %v1319 = vadd.f32 %v1222, %v1301
          %v1320 = vadd.f32 %v1223, %v1304
          %v1321 = vadd.f32 %v1224, %v1309
          %v1322 = vadd.f32 %v1225, %v1312
          %1323 = vst [vmem:[#allocation2 + $0x40] sm:$0xff] %v1315
          %1324 = vst [vmem:[#allocation2 + $0x48] sm:$0xff] %v1316
          %1325 = vst [vmem:[#allocation2 + $0x50] sm:$0xff] %v1317
          %1326 = vst [vmem:[#allocation2 + $0x58] sm:$0xff] %v1318
          %1327 = vst [vmem:[#allocation2 + $0x60] sm:$0xff] %v1319
          %1328 = vst [vmem:[#allocation2 + $0x68] sm:$0xff] %v1320
          %1329 = vst [vmem:[#allocation2 + $0x70] sm:$0xff] %v1321
          %1330 = vst [vmem:[#allocation2 + $0x78] sm:$0xff] %v1322
        $region88: #{tpu_custom_call.1} parent=55 // pred_fallthru
          _
        %v1331 = vld [vmem:[%s6] sm:$0x3]
        %v1332 = vld [vmem:[#allocation2] sm:$0xff]
        %v1333 = vld [vmem:[#allocation2 + $0x8] sm:$0xff]
        %v1334 = vld [vmem:[#allocation2 + $0x10] sm:$0xff]
        %v1335 = vld [vmem:[#allocation2 + $0x18] sm:$0xff]
        %v1336 = vld [vmem:[#allocation2 + $0x20] sm:$0xff]
        %v1337 = vld [vmem:[#allocation2 + $0x28] sm:$0xff]
        %v1338 = vld [vmem:[#allocation2 + $0x30] sm:$0xff]
        %v1339 = vld [vmem:[#allocation2 + $0x38] sm:$0xff]
        %v1340 = vld [vmem:[#allocation2 + $0x40] sm:$0xff]
        %v1341 = vld [vmem:[#allocation2 + $0x48] sm:$0xff]
        %v1342 = vld [vmem:[#allocation2 + $0x50] sm:$0xff]
        %v1343 = vld [vmem:[#allocation2 + $0x58] sm:$0xff]
        %v1344 = vld [vmem:[#allocation2 + $0x60] sm:$0xff]
        %v1345 = vld [vmem:[#allocation2 + $0x68] sm:$0xff]
        %v1346 = vld [vmem:[#allocation2 + $0x70] sm:$0xff]
        %v1347 = vld [vmem:[#allocation2 + $0x78] sm:$0xff]
        %v1348 = vlaneseq
        %v1349 = vshrl.u32 %v1348, 7
        %v1350 = vsub.s32 0, %v1349
        %v1351 = vrot.slane %v1331, %v1350
        %v1352 = vmul.f32 %v1332, %v1351
        %v1353 = vmul.f32 %v1333, %v1351
        %v1354 = vmul.f32 %v1334, %v1351
        %v1355 = vmul.f32 %v1335, %v1351
        %v1356 = vmul.f32 %v1336, %v1351
        %v1357 = vmul.f32 %v1337, %v1351
        %v1358 = vmul.f32 %v1338, %v1351
        %v1359 = vmul.f32 %v1339, %v1351
        %v1360 = vmul.f32 %v1340, %v1351
        %v1361 = vmul.f32 %v1341, %v1351
        %v1362 = vmul.f32 %v1342, %v1351
        %v1363 = vmul.f32 %v1343, %v1351
        %v1364 = vmul.f32 %v1344, %v1351
        %v1365 = vmul.f32 %v1345, %v1351
        %v1366 = vmul.f32 %v1346, %v1351
        %v1367 = vmul.f32 %v1347, %v1351
        %v1368 = vlaneseq
        %v1369 = vshrl.u32 %v1368, 7
        %v1370 = vsub.s32 1, %v1369
        %v1371 = vrot.slane %v1331, %v1370
        %v1372 = vadd.f32 %v1352, %v1371
        %v1373 = vadd.f32 %v1353, %v1371
        %v1374 = vadd.f32 %v1354, %v1371
        %v1375 = vadd.f32 %v1355, %v1371
        %v1376 = vadd.f32 %v1356, %v1371
        %v1377 = vadd.f32 %v1357, %v1371
        %v1378 = vadd.f32 %v1358, %v1371
        %v1379 = vadd.f32 %v1359, %v1371
        %v1380 = vadd.f32 %v1360, %v1371
        %v1381 = vadd.f32 %v1361, %v1371
        %v1382 = vadd.f32 %v1362, %v1371
        %v1383 = vadd.f32 %v1363, %v1371
        %v1384 = vadd.f32 %v1364, %v1371
        %v1385 = vadd.f32 %v1365, %v1371
        %v1386 = vadd.f32 %v1366, %v1371
        %v1387 = vadd.f32 %v1367, %v1371
        %v1388 = vmax.f32 %v1372, 0.0
        %v1389 = vmax.f32 %v1373, 0.0
        %v1390 = vmax.f32 %v1374, 0.0
        %v1391 = vmax.f32 %v1375, 0.0
        %v1392 = vmax.f32 %v1376, 0.0
        %v1393 = vmax.f32 %v1377, 0.0
        %v1394 = vmax.f32 %v1378, 0.0
        %v1395 = vmax.f32 %v1379, 0.0
        %v1396 = vmax.f32 %v1380, 0.0
        %v1397 = vmax.f32 %v1381, 0.0
        %v1398 = vmax.f32 %v1382, 0.0
        %v1399 = vmax.f32 %v1383, 0.0
        %v1400 = vmax.f32 %v1384, 0.0
        %v1401 = vmax.f32 %v1385, 0.0
        %v1402 = vmax.f32 %v1386, 0.0
        %v1403 = vmax.f32 %v1387, 0.0
        %v1404 = vpack.c.bf16 %v1389, %v1388
        %v1405 = vpack.c.bf16 %v1391, %v1390
        %v1406 = vpack.c.bf16 %v1393, %v1392
        %v1407 = vpack.c.bf16 %v1395, %v1394
        %v1408 = vpack.c.bf16 %v1397, %v1396
        %v1409 = vpack.c.bf16 %v1399, %v1398
        %v1410 = vpack.c.bf16 %v1401, %v1400
        %v1411 = vpack.c.bf16 %v1403, %v1402
        %v1420 = vunpack.c.l.b16 %v1404
        %v1421 = vunpack.c.h.b16 %v1404
        %v1422 = vunpack.c.l.b16 %v1405
        %v1423 = vunpack.c.h.b16 %v1405
        %v1424 = vunpack.c.l.b16 %v1406
        %v1425 = vunpack.c.h.b16 %v1406
        %v1426 = vunpack.c.l.b16 %v1407
        %v1427 = vunpack.c.h.b16 %v1407
        %v1428 = vunpack.c.l.b16 %v1408
        %v1429 = vunpack.c.h.b16 %v1408
        %v1430 = vunpack.c.l.b16 %v1409
        %v1431 = vunpack.c.h.b16 %v1409
        %v1432 = vunpack.c.l.b16 %v1410
        %v1433 = vunpack.c.h.b16 %v1410
        %v1434 = vunpack.c.l.b16 %v1411
        %v1435 = vunpack.c.h.b16 %v1411
        %v1436 = vpack.c.b16 %v1420, %v1420
        %v1437 = vpack.c.b16 %v1421, %v1421
        %v1438 = vpack.c.b16 %v1422, %v1422
        %v1439 = vpack.c.b16 %v1423, %v1423
        %v1440 = vpack.c.b16 %v1424, %v1424
        %v1441 = vpack.c.b16 %v1425, %v1425
        %v1442 = vpack.c.b16 %v1426, %v1426
        %v1443 = vpack.c.b16 %v1427, %v1427
        %v1444 = vpack.c.b16 %v1428, %v1428
        %v1445 = vpack.c.b16 %v1429, %v1429
        %v1446 = vpack.c.b16 %v1430, %v1430
        %v1447 = vpack.c.b16 %v1431, %v1431
        %v1448 = vpack.c.b16 %v1432, %v1432
        %v1449 = vpack.c.b16 %v1433, %v1433
        %v1450 = vpack.c.b16 %v1434, %v1434
        %v1451 = vpack.c.b16 %v1435, %v1435
        %1452 = vst [vmem:[#allocation3] sm:$0xf] 0
        %1453 = vst [vmem:[#allocation3 + $0x4] sm:$0xf] 0
        %1454 = vst [vmem:[#allocation3 + $0x50] sm:$0xf] 0
        %1455 = vst [vmem:[#allocation3 + $0x54] sm:$0xf] 0
        %s1456 = scalar_lea.vmem [#allocation3], 72
        %1457 = vst [vmem:[%s1456] sm:$0xf] 0
        %1458 = vst [vmem:[%s1456 + $0x4] sm:$0xf] 0
        %1459 = vst [vmem:[%s1456 + $0x50] sm:$0xf] 0
        %1460 = vst [vmem:[%s1456 + $0x54] sm:$0xf] 0
        %s1461 = scalar_lea.vmem [#allocation3], 8
        %vm1462 = vcmask 1040384
        %vm1463 = vsmask.f32 256
        %vm1464 = vmand %vm1462, %vm1463
        %v1465 = vld [vmem:[%s1461] sm:$0x1]
        %v1466 = vsel %vm1464, 0, %v1465
        %1467 = vst [vmem:[%s1461] sm:$0x1] %v1466
        %v1468 = vld [vmem:[%s1461 + $0x8] sm:$0x1]
        %v1469 = vsel %vm1464, 0, %v1468
        %1470 = vst [vmem:[%s1461 + $0x8] sm:$0x1] %v1469
        %v1471 = vld [vmem:[%s1461 + $0x10] sm:$0x1]
        %v1472 = vsel %vm1464, 0, %v1471
        %1473 = vst [vmem:[%s1461 + $0x10] sm:$0x1] %v1472
        %v1474 = vld [vmem:[%s1461 + $0x18] sm:$0x1]
        %v1475 = vsel %vm1464, 0, %v1474
        %1476 = vst [vmem:[%s1461 + $0x18] sm:$0x1] %v1475
        %v1477 = vld [vmem:[%s1461 + $0x20] sm:$0x1]
        %v1478 = vsel %vm1464, 0, %v1477
        %1479 = vst [vmem:[%s1461 + $0x20] sm:$0x1] %v1478
        %v1480 = vld [vmem:[%s1461 + $0x28] sm:$0x1]
        %v1481 = vsel %vm1464, 0, %v1480
        %1482 = vst [vmem:[%s1461 + $0x28] sm:$0x1] %v1481
        %v1483 = vld [vmem:[%s1461 + $0x30] sm:$0x1]
        %v1484 = vsel %vm1464, 0, %v1483
        %1485 = vst [vmem:[%s1461 + $0x30] sm:$0x1] %v1484
        %v1486 = vld [vmem:[%s1461 + $0x38] sm:$0x1]
        %v1487 = vsel %vm1464, 0, %v1486
        %1488 = vst [vmem:[%s1461 + $0x38] sm:$0x1] %v1487
        %v1489 = vld [vmem:[%s1461 + $0x50] sm:$0x1]
        %v1490 = vsel %vm1464, 0, %v1489
        %1491 = vst [vmem:[%s1461 + $0x50] sm:$0x1] %v1490
        %v1492 = vld [vmem:[%s1461 + $0x58] sm:$0x1]
        %v1493 = vsel %vm1464, 0, %v1492
        %1494 = vst [vmem:[%s1461 + $0x58] sm:$0x1] %v1493
        %v1495 = vld [vmem:[%s1461 + $0x60] sm:$0x1]
        %v1496 = vsel %vm1464, 0, %v1495
        %1497 = vst [vmem:[%s1461 + $0x60] sm:$0x1] %v1496
        %v1498 = vld [vmem:[%s1461 + $0x68] sm:$0x1]
        %v1499 = vsel %vm1464, 0, %v1498
        %1500 = vst [vmem:[%s1461 + $0x68] sm:$0x1] %v1499
        %v1501 = vld [vmem:[%s1461 + $0x70] sm:$0x1]
        %v1502 = vsel %vm1464, 0, %v1501
        %1503 = vst [vmem:[%s1461 + $0x70] sm:$0x1] %v1502
        %v1504 = vld [vmem:[%s1461 + $0x78] sm:$0x1]
        %v1505 = vsel %vm1464, 0, %v1504
        %1506 = vst [vmem:[%s1461 + $0x78] sm:$0x1] %v1505
        %v1507 = vld [vmem:[%s1461 + $0x80] sm:$0x1]
        %v1508 = vsel %vm1464, 0, %v1507
        %1509 = vst [vmem:[%s1461 + $0x80] sm:$0x1] %v1508
        %v1510 = vld [vmem:[%s1461 + $0x88] sm:$0x1]
        %v1511 = vsel %vm1464, 0, %v1510
        %1512 = vst [vmem:[%s1461 + $0x88] sm:$0x1] %v1511
        %vm1513 = vsmask.f32 7938
        %vm1514 = vmand %vm1462, %vm1513
        %v1515 = vld [vmem:[%s1461 + $0x4] sm:$0x1]
        %v1516 = vsel %vm1514, 0, %v1515
        %1517 = vst [vmem:[%s1461 + $0x4] sm:$0x1] %v1516
        %v1518 = vld [vmem:[%s1461 + $0xc] sm:$0x1]
        %v1519 = vsel %vm1514, 0, %v1518
        %1520 = vst [vmem:[%s1461 + $0xc] sm:$0x1] %v1519
        %v1521 = vld [vmem:[%s1461 + $0x14] sm:$0x1]
        %v1522 = vsel %vm1514, 0, %v1521
        %1523 = vst [vmem:[%s1461 + $0x14] sm:$0x1] %v1522
        %v1524 = vld [vmem:[%s1461 + $0x1c] sm:$0x1]
        %v1525 = vsel %vm1514, 0, %v1524
        %1526 = vst [vmem:[%s1461 + $0x1c] sm:$0x1] %v1525
        %v1527 = vld [vmem:[%s1461 + $0x24] sm:$0x1]
        %v1528 = vsel %vm1514, 0, %v1527
        %1529 = vst [vmem:[%s1461 + $0x24] sm:$0x1] %v1528
        %v1530 = vld [vmem:[%s1461 + $0x2c] sm:$0x1]
        %v1531 = vsel %vm1514, 0, %v1530
        %1532 = vst [vmem:[%s1461 + $0x2c] sm:$0x1] %v1531
        %v1533 = vld [vmem:[%s1461 + $0x34] sm:$0x1]
        %v1534 = vsel %vm1514, 0, %v1533
        %1535 = vst [vmem:[%s1461 + $0x34] sm:$0x1] %v1534
        %v1536 = vld [vmem:[%s1461 + $0x3c] sm:$0x1]
        %v1537 = vsel %vm1514, 0, %v1536
        %1538 = vst [vmem:[%s1461 + $0x3c] sm:$0x1] %v1537
        %v1539 = vld [vmem:[%s1461 + $0x54] sm:$0x1]
        %v1540 = vsel %vm1514, 0, %v1539
        %1541 = vst [vmem:[%s1461 + $0x54] sm:$0x1] %v1540
        %v1542 = vld [vmem:[%s1461 + $0x5c] sm:$0x1]
        %v1543 = vsel %vm1514, 0, %v1542
        %1544 = vst [vmem:[%s1461 + $0x5c] sm:$0x1] %v1543
        %v1545 = vld [vmem:[%s1461 + $0x64] sm:$0x1]
        %v1546 = vsel %vm1514, 0, %v1545
        %1547 = vst [vmem:[%s1461 + $0x64] sm:$0x1] %v1546
        %v1548 = vld [vmem:[%s1461 + $0x6c] sm:$0x1]
        %v1549 = vsel %vm1514, 0, %v1548
        %1550 = vst [vmem:[%s1461 + $0x6c] sm:$0x1] %v1549
        %v1551 = vld [vmem:[%s1461 + $0x74] sm:$0x1]
        %v1552 = vsel %vm1514, 0, %v1551
        %1553 = vst [vmem:[%s1461 + $0x74] sm:$0x1] %v1552
        %v1554 = vld [vmem:[%s1461 + $0x7c] sm:$0x1]
        %v1555 = vsel %vm1514, 0, %v1554
        %1556 = vst [vmem:[%s1461 + $0x7c] sm:$0x1] %v1555
        %v1557 = vld [vmem:[%s1461 + $0x84] sm:$0x1]
        %v1558 = vsel %vm1514, 0, %v1557
        %1559 = vst [vmem:[%s1461 + $0x84] sm:$0x1] %v1558
        %v1560 = vld [vmem:[%s1461 + $0x8c] sm:$0x1]
        %v1561 = vsel %vm1514, 0, %v1560
        %1562 = vst [vmem:[%s1461 + $0x8c] sm:$0x1] %v1561
        %v1564 = vshrl.u32 %v1436, 16
        %v1566 = vrot.slane %v1564, 7
        %v1567 = vshll.u32 %v1436, 16
        %v1569 = vor.u32 %v1566, %v1567
        %v1570 = vrot.slane %v1566, 4
        %v1572 = vshrl.u32 %v1437, 16
        %v1574 = vrot.slane %v1572, 7
        %v1575 = vshll.u32 %v1437, 16
        %v1577 = vor.u32 %v1574, %v1575
        %v1578 = vrot.slane %v1574, 4
        %v1580 = vshrl.u32 %v1438, 16
        %v1582 = vrot.slane %v1580, 7
        %v1583 = vshll.u32 %v1438, 16
        %v1585 = vor.u32 %v1582, %v1583
        %v1586 = vrot.slane %v1582, 4
        %v1588 = vshrl.u32 %v1439, 16
        %v1590 = vrot.slane %v1588, 7
        %v1591 = vshll.u32 %v1439, 16
        %v1593 = vor.u32 %v1590, %v1591
        %v1594 = vrot.slane %v1590, 4
        %v1596 = vshrl.u32 %v1440, 16
        %v1598 = vrot.slane %v1596, 7
        %v1599 = vshll.u32 %v1440, 16
        %v1601 = vor.u32 %v1598, %v1599
        %v1602 = vrot.slane %v1598, 4
        %v1604 = vshrl.u32 %v1441, 16
        %v1606 = vrot.slane %v1604, 7
        %v1607 = vshll.u32 %v1441, 16
        %v1609 = vor.u32 %v1606, %v1607
        %v1610 = vrot.slane %v1606, 4
        %v1612 = vshrl.u32 %v1442, 16
        %v1614 = vrot.slane %v1612, 7
        %v1615 = vshll.u32 %v1442, 16
        %v1617 = vor.u32 %v1614, %v1615
        %v1618 = vrot.slane %v1614, 4
        %v1620 = vshrl.u32 %v1443, 16
        %v1622 = vrot.slane %v1620, 7
        %v1623 = vshll.u32 %v1443, 16
        %v1625 = vor.u32 %v1622, %v1623
        %v1626 = vrot.slane %v1622, 4
        %v1628 = vshrl.u32 %v1444, 16
        %v1630 = vrot.slane %v1628, 7
        %v1631 = vshll.u32 %v1444, 16
        %v1633 = vor.u32 %v1630, %v1631
        %v1634 = vrot.slane %v1630, 4
        %v1636 = vshrl.u32 %v1445, 16
        %v1638 = vrot.slane %v1636, 7
        %v1639 = vshll.u32 %v1445, 16
        %v1641 = vor.u32 %v1638, %v1639
        %v1642 = vrot.slane %v1638, 4
        %v1644 = vshrl.u32 %v1446, 16
        %v1646 = vrot.slane %v1644, 7
        %v1647 = vshll.u32 %v1446, 16
        %v1649 = vor.u32 %v1646, %v1647
        %v1650 = vrot.slane %v1646, 4
        %v1652 = vshrl.u32 %v1447, 16
        %v1654 = vrot.slane %v1652, 7
        %v1655 = vshll.u32 %v1447, 16
        %v1657 = vor.u32 %v1654, %v1655
        %v1658 = vrot.slane %v1654, 4
        %v1660 = vshrl.u32 %v1448, 16
        %v1662 = vrot.slane %v1660, 7
        %v1663 = vshll.u32 %v1448, 16
        %v1665 = vor.u32 %v1662, %v1663
        %v1666 = vrot.slane %v1662, 4
        %v1668 = vshrl.u32 %v1449, 16
        %v1670 = vrot.slane %v1668, 7
        %v1671 = vshll.u32 %v1449, 16
        %v1673 = vor.u32 %v1670, %v1671
        %v1674 = vrot.slane %v1670, 4
        %v1676 = vshrl.u32 %v1450, 16
        %v1678 = vrot.slane %v1676, 7
        %v1679 = vshll.u32 %v1450, 16
        %v1681 = vor.u32 %v1678, %v1679
        %v1682 = vrot.slane %v1678, 4
        %v1684 = vshrl.u32 %v1451, 16
        %v1686 = vrot.slane %v1684, 7
        %v1687 = vshll.u32 %v1451, 16
        %v1689 = vor.u32 %v1686, %v1687
        %v1690 = vrot.slane %v1686, 4
        %vm1723 = vcmask 1043456
        %vm1724 = vmand %vm1723, %vm1513
        %v1725 = vld [vmem:[%s1461] sm:$0xf]
        %v1726 = vsel %vm1724, %v1569, %v1725
        %1727 = vst [vmem:[%s1461] sm:$0xf] %v1726
        %v1728 = vld [vmem:[%s1461 + $0x4] sm:$0x1]
        %v1729 = vsel %vm1464, %v1570, %v1728
        %1730 = vst [vmem:[%s1461 + $0x4] sm:$0x1] %v1729
        %v1731 = vld [vmem:[%s1461 + $0x8] sm:$0xf]
        %v1732 = vsel %vm1724, %v1577, %v1731
        %1733 = vst [vmem:[%s1461 + $0x8] sm:$0xf] %v1732
        %v1734 = vld [vmem:[%s1461 + $0xc] sm:$0x1]
        %v1735 = vsel %vm1464, %v1578, %v1734
        %1736 = vst [vmem:[%s1461 + $0xc] sm:$0x1] %v1735
        %v1737 = vld [vmem:[%s1461 + $0x10] sm:$0xf]
        %v1738 = vsel %vm1724, %v1585, %v1737
        %1739 = vst [vmem:[%s1461 + $0x10] sm:$0xf] %v1738
        %v1740 = vld [vmem:[%s1461 + $0x14] sm:$0x1]
        %v1741 = vsel %vm1464, %v1586, %v1740
        %1742 = vst [vmem:[%s1461 + $0x14] sm:$0x1] %v1741
        %v1743 = vld [vmem:[%s1461 + $0x18] sm:$0xf]
        %v1744 = vsel %vm1724, %v1593, %v1743
        %1745 = vst [vmem:[%s1461 + $0x18] sm:$0xf] %v1744
        %v1746 = vld [vmem:[%s1461 + $0x1c] sm:$0x1]
        %v1747 = vsel %vm1464, %v1594, %v1746
        %1748 = vst [vmem:[%s1461 + $0x1c] sm:$0x1] %v1747
        %v1749 = vld [vmem:[%s1461 + $0x20] sm:$0xf]
        %v1750 = vsel %vm1724, %v1601, %v1749
        %1751 = vst [vmem:[%s1461 + $0x20] sm:$0xf] %v1750
        %v1752 = vld [vmem:[%s1461 + $0x24] sm:$0x1]
        %v1753 = vsel %vm1464, %v1602, %v1752
        %1754 = vst [vmem:[%s1461 + $0x24] sm:$0x1] %v1753
        %v1755 = vld [vmem:[%s1461 + $0x28] sm:$0xf]
        %v1756 = vsel %vm1724, %v1609, %v1755
        %1757 = vst [vmem:[%s1461 + $0x28] sm:$0xf] %v1756
        %v1758 = vld [vmem:[%s1461 + $0x2c] sm:$0x1]
        %v1759 = vsel %vm1464, %v1610, %v1758
        %1760 = vst [vmem:[%s1461 + $0x2c] sm:$0x1] %v1759
        %v1761 = vld [vmem:[%s1461 + $0x30] sm:$0xf]
        %v1762 = vsel %vm1724, %v1617, %v1761
        %1763 = vst [vmem:[%s1461 + $0x30] sm:$0xf] %v1762
        %v1764 = vld [vmem:[%s1461 + $0x34] sm:$0x1]
        %v1765 = vsel %vm1464, %v1618, %v1764
        %1766 = vst [vmem:[%s1461 + $0x34] sm:$0x1] %v1765
        %v1767 = vld [vmem:[%s1461 + $0x38] sm:$0xf]
        %v1768 = vsel %vm1724, %v1625, %v1767
        %1769 = vst [vmem:[%s1461 + $0x38] sm:$0xf] %v1768
        %v1770 = vld [vmem:[%s1461 + $0x3c] sm:$0x1]
        %v1771 = vsel %vm1464, %v1626, %v1770
        %1772 = vst [vmem:[%s1461 + $0x3c] sm:$0x1] %v1771
        %v1773 = vld [vmem:[%s1461 + $0x50] sm:$0xf]
        %v1774 = vsel %vm1724, %v1633, %v1773
        %1775 = vst [vmem:[%s1461 + $0x50] sm:$0xf] %v1774
        %v1776 = vld [vmem:[%s1461 + $0x54] sm:$0x1]
        %v1777 = vsel %vm1464, %v1634, %v1776
        %1778 = vst [vmem:[%s1461 + $0x54] sm:$0x1] %v1777
        %v1779 = vld [vmem:[%s1461 + $0x58] sm:$0xf]
        %v1780 = vsel %vm1724, %v1641, %v1779
        %1781 = vst [vmem:[%s1461 + $0x58] sm:$0xf] %v1780
        %v1782 = vld [vmem:[%s1461 + $0x5c] sm:$0x1]
        %v1783 = vsel %vm1464, %v1642, %v1782
        %1784 = vst [vmem:[%s1461 + $0x5c] sm:$0x1] %v1783
        %v1785 = vld [vmem:[%s1461 + $0x60] sm:$0xf]
        %v1786 = vsel %vm1724, %v1649, %v1785
        %1787 = vst [vmem:[%s1461 + $0x60] sm:$0xf] %v1786
        %v1788 = vld [vmem:[%s1461 + $0x64] sm:$0x1]
        %v1789 = vsel %vm1464, %v1650, %v1788
        %1790 = vst [vmem:[%s1461 + $0x64] sm:$0x1] %v1789
        %v1791 = vld [vmem:[%s1461 + $0x68] sm:$0xf]
        %v1792 = vsel %vm1724, %v1657, %v1791
        %1793 = vst [vmem:[%s1461 + $0x68] sm:$0xf] %v1792
        %v1794 = vld [vmem:[%s1461 + $0x6c] sm:$0x1]
        %v1795 = vsel %vm1464, %v1658, %v1794
        %1796 = vst [vmem:[%s1461 + $0x6c] sm:$0x1] %v1795
        %v1797 = vld [vmem:[%s1461 + $0x70] sm:$0xf]
        %v1798 = vsel %vm1724, %v1665, %v1797
        %1799 = vst [vmem:[%s1461 + $0x70] sm:$0xf] %v1798
        %v1800 = vld [vmem:[%s1461 + $0x74] sm:$0x1]
        %v1801 = vsel %vm1464, %v1666, %v1800
        %1802 = vst [vmem:[%s1461 + $0x74] sm:$0x1] %v1801
        %v1803 = vld [vmem:[%s1461 + $0x78] sm:$0xf]
        %v1804 = vsel %vm1724, %v1673, %v1803
        %1805 = vst [vmem:[%s1461 + $0x78] sm:$0xf] %v1804
        %v1806 = vld [vmem:[%s1461 + $0x7c] sm:$0x1]
        %v1807 = vsel %vm1464, %v1674, %v1806
        %1808 = vst [vmem:[%s1461 + $0x7c] sm:$0x1] %v1807
        %v1809 = vld [vmem:[%s1461 + $0x80] sm:$0xf]
        %v1810 = vsel %vm1724, %v1681, %v1809
        %1811 = vst [vmem:[%s1461 + $0x80] sm:$0xf] %v1810
        %v1812 = vld [vmem:[%s1461 + $0x84] sm:$0x1]
        %v1813 = vsel %vm1464, %v1682, %v1812
        %1814 = vst [vmem:[%s1461 + $0x84] sm:$0x1] %v1813
        %v1815 = vld [vmem:[%s1461 + $0x88] sm:$0xf]
        %v1816 = vsel %vm1724, %v1689, %v1815
        %1817 = vst [vmem:[%s1461 + $0x88] sm:$0xf] %v1816
        %v1818 = vld [vmem:[%s1461 + $0x8c] sm:$0x1]
        %v1819 = vsel %vm1464, %v1690, %v1818
        %1820 = vst [vmem:[%s1461 + $0x8c] sm:$0x1] %v1819
        %v1821 = vld [vmem:[#allocation3] sm:$0xf]
        %v1822 = vld [vmem:[#allocation3 + $0x4] sm:$0xf]
        %v1823 = vld [vmem:[#allocation3 + $0x8] sm:$0xf]
        %v1824 = vld [vmem:[#allocation3 + $0xc] sm:$0xf]
        %v1825 = vld [vmem:[#allocation3 + $0x10] sm:$0xf]
        %v1826 = vld [vmem:[#allocation3 + $0x14] sm:$0xf]
        %v1827 = vld [vmem:[#allocation3 + $0x18] sm:$0xf]
        %v1828 = vld [vmem:[#allocation3 + $0x1c] sm:$0xf]
        %v1829 = vld [vmem:[#allocation3 + $0x20] sm:$0xf]
        %v1830 = vld [vmem:[#allocation3 + $0x24] sm:$0xf]
        %v1831 = vld [vmem:[#allocation3 + $0x28] sm:$0xf]
        %v1832 = vld [vmem:[#allocation3 + $0x2c] sm:$0xf]
        %v1833 = vld [vmem:[#allocation3 + $0x30] sm:$0xf]
        %v1834 = vld [vmem:[#allocation3 + $0x34] sm:$0xf]
        %v1835 = vld [vmem:[#allocation3 + $0x38] sm:$0xf]
        %v1836 = vld [vmem:[#allocation3 + $0x3c] sm:$0xf]
        %v1837 = vld [vmem:[#allocation3 + $0x50] sm:$0xf]
        %v1838 = vld [vmem:[#allocation3 + $0x54] sm:$0xf]
        %v1839 = vld [vmem:[#allocation3 + $0x58] sm:$0xf]
        %v1840 = vld [vmem:[#allocation3 + $0x5c] sm:$0xf]
        %v1841 = vld [vmem:[#allocation3 + $0x60] sm:$0xf]
        %v1842 = vld [vmem:[#allocation3 + $0x64] sm:$0xf]
        %v1843 = vld [vmem:[#allocation3 + $0x68] sm:$0xf]
        %v1844 = vld [vmem:[#allocation3 + $0x6c] sm:$0xf]
        %v1845 = vld [vmem:[#allocation3 + $0x70] sm:$0xf]
        %v1846 = vld [vmem:[#allocation3 + $0x74] sm:$0xf]
        %v1847 = vld [vmem:[#allocation3 + $0x78] sm:$0xf]
        %v1848 = vld [vmem:[#allocation3 + $0x7c] sm:$0xf]
        %v1849 = vld [vmem:[#allocation3 + $0x80] sm:$0xf]
        %v1850 = vld [vmem:[#allocation3 + $0x84] sm:$0xf]
        %v1851 = vld [vmem:[#allocation3 + $0x88] sm:$0xf]
        %v1852 = vld [vmem:[#allocation3 + $0x8c] sm:$0xf]
        %v1885 = vunpack.c.l.b16 %v1821
        %v1886 = vunpack.c.l.b16 %v1822
        %v1887 = vunpack.c.l.b16 %v1823
        %v1888 = vunpack.c.l.b16 %v1824
        %v1889 = vunpack.c.l.b16 %v1825
        %v1890 = vunpack.c.l.b16 %v1826
        %v1891 = vunpack.c.l.b16 %v1827
        %v1892 = vunpack.c.l.b16 %v1828
        %v1893 = vunpack.c.l.b16 %v1829
        %v1894 = vunpack.c.l.b16 %v1830
        %v1895 = vunpack.c.l.b16 %v1831
        %v1896 = vunpack.c.l.b16 %v1832
        %v1897 = vunpack.c.l.b16 %v1833
        %v1898 = vunpack.c.l.b16 %v1834
        %v1899 = vunpack.c.l.b16 %v1835
        %v1900 = vunpack.c.l.b16 %v1836
        %v1901 = vunpack.c.l.b16 %v1837
        %v1902 = vunpack.c.l.b16 %v1838
        %v1903 = vunpack.c.l.b16 %v1839
        %v1904 = vunpack.c.l.b16 %v1840
        %v1905 = vunpack.c.l.b16 %v1841
        %v1906 = vunpack.c.l.b16 %v1842
        %v1907 = vunpack.c.l.b16 %v1843
        %v1908 = vunpack.c.l.b16 %v1844
        %v1909 = vunpack.c.l.b16 %v1845
        %v1910 = vunpack.c.l.b16 %v1846
        %v1911 = vunpack.c.l.b16 %v1847
        %v1912 = vunpack.c.l.b16 %v1848
        %v1913 = vunpack.c.l.b16 %v1849
        %v1914 = vunpack.c.l.b16 %v1850
        %v1915 = vunpack.c.l.b16 %v1851
        %v1916 = vunpack.c.l.b16 %v1852
        %v1917 = vpack.c.b16 %v1886, %v1885
        %v1918 = vpack.c.b16 %v1888, %v1887
        %v1919 = vpack.c.b16 %v1890, %v1889
        %v1920 = vpack.c.b16 %v1892, %v1891
        %v1921 = vpack.c.b16 %v1894, %v1893
        %v1922 = vpack.c.b16 %v1896, %v1895
        %v1923 = vpack.c.b16 %v1898, %v1897
        %v1924 = vpack.c.b16 %v1900, %v1899
        %v1925 = vpack.c.b16 %v1902, %v1901
        %v1926 = vpack.c.b16 %v1904, %v1903
        %v1927 = vpack.c.b16 %v1906, %v1905
        %v1928 = vpack.c.b16 %v1908, %v1907
        %v1929 = vpack.c.b16 %v1910, %v1909
        %v1930 = vpack.c.b16 %v1912, %v1911
        %v1931 = vpack.c.b16 %v1914, %v1913
        %v1932 = vpack.c.b16 %v1916, %v1915
        %v1934 = vshrl.u32 %v1917, 16
        %v1936 = vshll.u32 %v1917, 16
        %v1938 = vrot.slane %v1936, 1
        %v1939 = vor.u32 %v1934, %v1938
        %v1941 = vshrl.u32 %v1918, 16
        %v1943 = vshll.u32 %v1918, 16
        %v1945 = vrot.slane %v1943, 1
        %v1946 = vor.u32 %v1941, %v1945
        %v1948 = vshrl.u32 %v1919, 16
        %v1950 = vshll.u32 %v1919, 16
        %v1952 = vrot.slane %v1950, 1
        %v1953 = vor.u32 %v1948, %v1952
        %v1955 = vshrl.u32 %v1920, 16
        %v1957 = vshll.u32 %v1920, 16
        %v1959 = vrot.slane %v1957, 1
        %v1960 = vor.u32 %v1955, %v1959
        %v1962 = vshrl.u32 %v1921, 16
        %v1964 = vshll.u32 %v1921, 16
        %v1966 = vrot.slane %v1964, 1
        %v1967 = vor.u32 %v1962, %v1966
        %v1969 = vshrl.u32 %v1922, 16
        %v1971 = vshll.u32 %v1922, 16
        %v1973 = vrot.slane %v1971, 1
        %v1974 = vor.u32 %v1969, %v1973
        %v1976 = vshrl.u32 %v1923, 16
        %v1978 = vshll.u32 %v1923, 16
        %v1980 = vrot.slane %v1978, 1
        %v1981 = vor.u32 %v1976, %v1980
        %v1983 = vshrl.u32 %v1924, 16
        %v1985 = vshll.u32 %v1924, 16
        %v1987 = vrot.slane %v1985, 1
        %v1988 = vor.u32 %v1983, %v1987
        %v1990 = vshrl.u32 %v1925, 16
        %v1992 = vshll.u32 %v1925, 16
        %v1994 = vrot.slane %v1992, 1
        %v1995 = vor.u32 %v1990, %v1994
        %v1997 = vshrl.u32 %v1926, 16
        %v1999 = vshll.u32 %v1926, 16
        %v2001 = vrot.slane %v1999, 1
        %v2002 = vor.u32 %v1997, %v2001
        %v2004 = vshrl.u32 %v1927, 16
        %v2006 = vshll.u32 %v1927, 16
        %v2008 = vrot.slane %v2006, 1
        %v2009 = vor.u32 %v2004, %v2008
        %v2011 = vshrl.u32 %v1928, 16
        %v2013 = vshll.u32 %v1928, 16
        %v2015 = vrot.slane %v2013, 1
        %v2016 = vor.u32 %v2011, %v2015
        %v2018 = vshrl.u32 %v1929, 16
        %v2020 = vshll.u32 %v1929, 16
        %v2022 = vrot.slane %v2020, 1
        %v2023 = vor.u32 %v2018, %v2022
        %v2025 = vshrl.u32 %v1930, 16
        %v2027 = vshll.u32 %v1930, 16
        %v2029 = vrot.slane %v2027, 1
        %v2030 = vor.u32 %v2025, %v2029
        %v2032 = vshrl.u32 %v1931, 16
        %v2034 = vshll.u32 %v1931, 16
        %v2036 = vrot.slane %v2034, 1
        %v2037 = vor.u32 %v2032, %v2036
        %v2039 = vshrl.u32 %v1932, 16
        %v2041 = vshll.u32 %v1932, 16
        %v2043 = vrot.slane %v2041, 1
        %v2044 = vor.u32 %v2039, %v2043
        %v2045 = vrot.slane %v1917, 1
        %v2046 = vrot.slane %v1918, 1
        %v2047 = vrot.slane %v1919, 1
        %v2048 = vrot.slane %v1920, 1
        %v2049 = vrot.slane %v1921, 1
        %v2050 = vrot.slane %v1922, 1
        %v2051 = vrot.slane %v1923, 1
        %v2052 = vrot.slane %v1924, 1
        %v2053 = vrot.slane %v1925, 1
        %v2054 = vrot.slane %v1926, 1
        %v2055 = vrot.slane %v1927, 1
        %v2056 = vrot.slane %v1928, 1
        %v2057 = vrot.slane %v1929, 1
        %v2058 = vrot.slane %v1930, 1
        %v2059 = vrot.slane %v1931, 1
        %v2060 = vrot.slane %v1932, 1
        %v2061 = vunpack.c.l.b16 %v1939
        %v2062 = vunpack.c.l.b16 %v2045
        %v2063 = vunpack.c.l.b16 %v1946
        %v2064 = vunpack.c.l.b16 %v2046
        %v2065 = vunpack.c.l.b16 %v1953
        %v2066 = vunpack.c.l.b16 %v2047
        %v2067 = vunpack.c.l.b16 %v1960
        %v2068 = vunpack.c.l.b16 %v2048
        %v2069 = vunpack.c.l.b16 %v1967
        %v2070 = vunpack.c.l.b16 %v2049
        %v2071 = vunpack.c.l.b16 %v1974
        %v2072 = vunpack.c.l.b16 %v2050
        %v2073 = vunpack.c.l.b16 %v1981
        %v2074 = vunpack.c.l.b16 %v2051
        %v2075 = vunpack.c.l.b16 %v1988
        %v2076 = vunpack.c.l.b16 %v2052
        %v2077 = vunpack.c.l.b16 %v1995
        %v2078 = vunpack.c.l.b16 %v2053
        %v2079 = vunpack.c.l.b16 %v2002
        %v2080 = vunpack.c.l.b16 %v2054
        %v2081 = vunpack.c.l.b16 %v2009
        %v2082 = vunpack.c.l.b16 %v2055
        %v2083 = vunpack.c.l.b16 %v2016
        %v2084 = vunpack.c.l.b16 %v2056
        %v2085 = vunpack.c.l.b16 %v2023
        %v2086 = vunpack.c.l.b16 %v2057
        %v2087 = vunpack.c.l.b16 %v2030
        %v2088 = vunpack.c.l.b16 %v2058
        %v2089 = vunpack.c.l.b16 %v2037
        %v2090 = vunpack.c.l.b16 %v2059
        %v2091 = vunpack.c.l.b16 %v2044
        %v2092 = vunpack.c.l.b16 %v2060
        %v2093 = vld [vmem:[#allocation12] sm:$0xf]
        %v2094 = vld [vmem:[#allocation12 + $0x4] sm:$0xf]
        %v2095 = vld [vmem:[#allocation12 + $0x8] sm:$0xf]
        %v2096 = vld [vmem:[#allocation12 + $0xc] sm:$0xf]
        %v2097 = vld [vmem:[#allocation12 + $0x10] sm:$0xf]
        %v2098 = vld [vmem:[#allocation12 + $0x14] sm:$0xf]
        %v2099 = vld [vmem:[#allocation12 + $0x18] sm:$0xf]
        %v2100 = vld [vmem:[#allocation12 + $0x1c] sm:$0xf]
        %v2101 = vld [vmem:[#allocation12 + $0x20] sm:$0xf]
        %v2102 = vld [vmem:[#allocation12 + $0x24] sm:$0xf]
        %v2103 = vld [vmem:[#allocation12 + $0x28] sm:$0xf]
        %v2104 = vld [vmem:[#allocation12 + $0x2c] sm:$0xf]
        %v2105 = vld [vmem:[#allocation12 + $0x30] sm:$0xf]
        %v2106 = vld [vmem:[#allocation12 + $0x34] sm:$0xf]
        %v2107 = vld [vmem:[#allocation12 + $0x38] sm:$0xf]
        %v2108 = vld [vmem:[#allocation12 + $0x3c] sm:$0xf]
        %v2109 = vld [vmem:[#allocation12 + $0x40] sm:$0xf]
        %v2110 = vld [vmem:[#allocation12 + $0x44] sm:$0xf]
        %v2111 = vld [vmem:[#allocation12 + $0x48] sm:$0xf]
        %v2112 = vld [vmem:[#allocation12 + $0x4c] sm:$0xf]
        %v2113 = vld [vmem:[#allocation12 + $0x50] sm:$0xf]
        %v2114 = vld [vmem:[#allocation12 + $0x54] sm:$0xf]
        %v2115 = vld [vmem:[#allocation12 + $0x58] sm:$0xf]
        %v2116 = vld [vmem:[#allocation12 + $0x5c] sm:$0xf]
        %v2117 = vld [vmem:[#allocation12 + $0x60] sm:$0xf]
        %v2118 = vld [vmem:[#allocation12 + $0x64] sm:$0xf]
        %v2119 = vld [vmem:[#allocation12 + $0x68] sm:$0xf]
        %v2120 = vld [vmem:[#allocation12 + $0x6c] sm:$0xf]
        %v2121 = vld [vmem:[#allocation12 + $0x70] sm:$0xf]
        %v2122 = vld [vmem:[#allocation12 + $0x74] sm:$0xf]
        %v2123 = vld [vmem:[#allocation12 + $0x78] sm:$0xf]
        %v2124 = vld [vmem:[#allocation12 + $0x7c] sm:$0xf]
        %v2125 = vld [vmem:[#allocation12 + $0x80] sm:$0xf]
        %v2126 = vld [vmem:[#allocation12 + $0x84] sm:$0xf]
        %v2127 = vld [vmem:[#allocation12 + $0x88] sm:$0xf]
        %v2128 = vld [vmem:[#allocation12 + $0x8c] sm:$0xf]
        %v2129 = vld [vmem:[#allocation12 + $0x90] sm:$0xf]
        %v2130 = vld [vmem:[#allocation12 + $0x94] sm:$0xf]
        %v2131 = vld [vmem:[#allocation12 + $0x98] sm:$0xf]
        %v2132 = vld [vmem:[#allocation12 + $0x9c] sm:$0xf]
        %v2133 = vld [vmem:[#allocation12 + $0xa0] sm:$0xf]
        %v2134 = vld [vmem:[#allocation12 + $0xa4] sm:$0xf]
        %v2135 = vld [vmem:[#allocation12 + $0xa8] sm:$0xf]
        %v2136 = vld [vmem:[#allocation12 + $0xac] sm:$0xf]
        %v2137 = vld [vmem:[#allocation12 + $0xb0] sm:$0xf]
        %v2138 = vld [vmem:[#allocation12 + $0xb4] sm:$0xf]
        %v2139 = vld [vmem:[#allocation12 + $0xb8] sm:$0xf]
        %v2140 = vld [vmem:[#allocation12 + $0xbc] sm:$0xf]
        %v2141 = vld [vmem:[%s1461] sm:$0xf]
        %v2142 = vld [vmem:[%s1461 + $0x4] sm:$0xf]
        %v2143 = vld [vmem:[%s1461 + $0x8] sm:$0xf]
        %v2144 = vld [vmem:[%s1461 + $0xc] sm:$0xf]
        %v2145 = vld [vmem:[%s1461 + $0x10] sm:$0xf]
        %v2146 = vld [vmem:[%s1461 + $0x14] sm:$0xf]
        %v2147 = vld [vmem:[%s1461 + $0x18] sm:$0xf]
        %v2148 = vld [vmem:[%s1461 + $0x1c] sm:$0xf]
        %v2149 = vld [vmem:[%s1461 + $0x20] sm:$0xf]
        %v2150 = vld [vmem:[%s1461 + $0x24] sm:$0xf]
        %v2151 = vld [vmem:[%s1461 + $0x28] sm:$0xf]
        %v2152 = vld [vmem:[%s1461 + $0x2c] sm:$0xf]
        %v2153 = vld [vmem:[%s1461 + $0x30] sm:$0xf]
        %v2154 = vld [vmem:[%s1461 + $0x34] sm:$0xf]
        %v2155 = vld [vmem:[%s1461 + $0x38] sm:$0xf]
        %v2156 = vld [vmem:[%s1461 + $0x3c] sm:$0xf]
        %v2157 = vld [vmem:[%s1461 + $0x50] sm:$0xf]
        %v2158 = vld [vmem:[%s1461 + $0x54] sm:$0xf]
        %v2159 = vld [vmem:[%s1461 + $0x58] sm:$0xf]
        %v2160 = vld [vmem:[%s1461 + $0x5c] sm:$0xf]
        %v2161 = vld [vmem:[%s1461 + $0x60] sm:$0xf]
        %v2162 = vld [vmem:[%s1461 + $0x64] sm:$0xf]
        %v2163 = vld [vmem:[%s1461 + $0x68] sm:$0xf]
        %v2164 = vld [vmem:[%s1461 + $0x6c] sm:$0xf]
        %v2165 = vld [vmem:[%s1461 + $0x70] sm:$0xf]
        %v2166 = vld [vmem:[%s1461 + $0x74] sm:$0xf]
        %v2167 = vld [vmem:[%s1461 + $0x78] sm:$0xf]
        %v2168 = vld [vmem:[%s1461 + $0x7c] sm:$0xf]
        %v2169 = vld [vmem:[%s1461 + $0x80] sm:$0xf]
        %v2170 = vld [vmem:[%s1461 + $0x84] sm:$0xf]
        %v2171 = vld [vmem:[%s1461 + $0x88] sm:$0xf]
        %v2172 = vld [vmem:[%s1461 + $0x8c] sm:$0xf]
        %v2205 = vunpack.c.l.b16 %v2141
        %v2206 = vunpack.c.l.b16 %v2142
        %v2207 = vunpack.c.l.b16 %v2143
        %v2208 = vunpack.c.l.b16 %v2144
        %v2209 = vunpack.c.l.b16 %v2145
        %v2210 = vunpack.c.l.b16 %v2146
        %v2211 = vunpack.c.l.b16 %v2147
        %v2212 = vunpack.c.l.b16 %v2148
        %v2213 = vunpack.c.l.b16 %v2149
        %v2214 = vunpack.c.l.b16 %v2150
        %v2215 = vunpack.c.l.b16 %v2151
        %v2216 = vunpack.c.l.b16 %v2152
        %v2217 = vunpack.c.l.b16 %v2153
        %v2218 = vunpack.c.l.b16 %v2154
        %v2219 = vunpack.c.l.b16 %v2155
        %v2220 = vunpack.c.l.b16 %v2156
        %v2221 = vunpack.c.l.b16 %v2157
        %v2222 = vunpack.c.l.b16 %v2158
        %v2223 = vunpack.c.l.b16 %v2159
        %v2224 = vunpack.c.l.b16 %v2160
        %v2225 = vunpack.c.l.b16 %v2161
        %v2226 = vunpack.c.l.b16 %v2162
        %v2227 = vunpack.c.l.b16 %v2163
        %v2228 = vunpack.c.l.b16 %v2164
        %v2229 = vunpack.c.l.b16 %v2165
        %v2230 = vunpack.c.l.b16 %v2166
        %v2231 = vunpack.c.l.b16 %v2167
        %v2232 = vunpack.c.l.b16 %v2168
        %v2233 = vunpack.c.l.b16 %v2169
        %v2234 = vunpack.c.l.b16 %v2170
        %v2235 = vunpack.c.l.b16 %v2171
        %v2236 = vunpack.c.l.b16 %v2172
        %v2237 = vpack.c.b16 %v2206, %v2205
        %v2238 = vpack.c.b16 %v2208, %v2207
        %v2239 = vpack.c.b16 %v2210, %v2209
        %v2240 = vpack.c.b16 %v2212, %v2211
        %v2241 = vpack.c.b16 %v2214, %v2213
        %v2242 = vpack.c.b16 %v2216, %v2215
        %v2243 = vpack.c.b16 %v2218, %v2217
        %v2244 = vpack.c.b16 %v2220, %v2219
        %v2245 = vpack.c.b16 %v2222, %v2221
        %v2246 = vpack.c.b16 %v2224, %v2223
        %v2247 = vpack.c.b16 %v2226, %v2225
        %v2248 = vpack.c.b16 %v2228, %v2227
        %v2249 = vpack.c.b16 %v2230, %v2229
        %v2250 = vpack.c.b16 %v2232, %v2231
        %v2251 = vpack.c.b16 %v2234, %v2233
        %v2252 = vpack.c.b16 %v2236, %v2235
        %v2254 = vshrl.u32 %v2237, 16
        %v2256 = vshll.u32 %v2237, 16
        %v2258 = vrot.slane %v2256, 1
        %v2259 = vor.u32 %v2254, %v2258
        %v2261 = vshrl.u32 %v2238, 16
        %v2263 = vshll.u32 %v2238, 16
        %v2265 = vrot.slane %v2263, 1
        %v2266 = vor.u32 %v2261, %v2265
        %v2268 = vshrl.u32 %v2239, 16
        %v2270 = vshll.u32 %v2239, 16
        %v2272 = vrot.slane %v2270, 1
        %v2273 = vor.u32 %v2268, %v2272
        %v2275 = vshrl.u32 %v2240, 16
        %v2277 = vshll.u32 %v2240, 16
        %v2279 = vrot.slane %v2277, 1
        %v2280 = vor.u32 %v2275, %v2279
        %v2282 = vshrl.u32 %v2241, 16
        %v2284 = vshll.u32 %v2241, 16
        %v2286 = vrot.slane %v2284, 1
        %v2287 = vor.u32 %v2282, %v2286
        %v2289 = vshrl.u32 %v2242, 16
        %v2291 = vshll.u32 %v2242, 16
        %v2293 = vrot.slane %v2291, 1
        %v2294 = vor.u32 %v2289, %v2293
        %v2296 = vshrl.u32 %v2243, 16
        %v2298 = vshll.u32 %v2243, 16
        %v2300 = vrot.slane %v2298, 1
        %v2301 = vor.u32 %v2296, %v2300
        %v2303 = vshrl.u32 %v2244, 16
        %v2305 = vshll.u32 %v2244, 16
        %v2307 = vrot.slane %v2305, 1
        %v2308 = vor.u32 %v2303, %v2307
        %v2310 = vshrl.u32 %v2245, 16
        %v2312 = vshll.u32 %v2245, 16
        %v2314 = vrot.slane %v2312, 1
        %v2315 = vor.u32 %v2310, %v2314
        %v2317 = vshrl.u32 %v2246, 16
        %v2319 = vshll.u32 %v2246, 16
        %v2321 = vrot.slane %v2319, 1
        %v2322 = vor.u32 %v2317, %v2321
        %v2324 = vshrl.u32 %v2247, 16
        %v2326 = vshll.u32 %v2247, 16
        %v2328 = vrot.slane %v2326, 1
        %v2329 = vor.u32 %v2324, %v2328
        %v2331 = vshrl.u32 %v2248, 16
        %v2333 = vshll.u32 %v2248, 16
        %v2335 = vrot.slane %v2333, 1
        %v2336 = vor.u32 %v2331, %v2335
        %v2338 = vshrl.u32 %v2249, 16
        %v2340 = vshll.u32 %v2249, 16
        %v2342 = vrot.slane %v2340, 1
        %v2343 = vor.u32 %v2338, %v2342
        %v2345 = vshrl.u32 %v2250, 16
        %v2347 = vshll.u32 %v2250, 16
        %v2349 = vrot.slane %v2347, 1
        %v2350 = vor.u32 %v2345, %v2349
        %v2352 = vshrl.u32 %v2251, 16
        %v2354 = vshll.u32 %v2251, 16
        %v2356 = vrot.slane %v2354, 1
        %v2357 = vor.u32 %v2352, %v2356
        %v2359 = vshrl.u32 %v2252, 16
        %v2361 = vshll.u32 %v2252, 16
        %v2363 = vrot.slane %v2361, 1
        %v2364 = vor.u32 %v2359, %v2363
        %v2365 = vrot.slane %v2237, 1
        %v2366 = vrot.slane %v2238, 1
        %v2367 = vrot.slane %v2239, 1
        %v2368 = vrot.slane %v2240, 1
        %v2369 = vrot.slane %v2241, 1
        %v2370 = vrot.slane %v2242, 1
        %v2371 = vrot.slane %v2243, 1
        %v2372 = vrot.slane %v2244, 1
        %v2373 = vrot.slane %v2245, 1
        %v2374 = vrot.slane %v2246, 1
        %v2375 = vrot.slane %v2247, 1
        %v2376 = vrot.slane %v2248, 1
        %v2377 = vrot.slane %v2249, 1
        %v2378 = vrot.slane %v2250, 1
        %v2379 = vrot.slane %v2251, 1
        %v2380 = vrot.slane %v2252, 1
        %v2381 = vunpack.c.l.b16 %v2259
        %v2382 = vunpack.c.l.b16 %v2365
        %v2383 = vunpack.c.l.b16 %v2266
        %v2384 = vunpack.c.l.b16 %v2366
        %v2385 = vunpack.c.l.b16 %v2273
        %v2386 = vunpack.c.l.b16 %v2367
        %v2387 = vunpack.c.l.b16 %v2280
        %v2388 = vunpack.c.l.b16 %v2368
        %v2389 = vunpack.c.l.b16 %v2287
        %v2390 = vunpack.c.l.b16 %v2369
        %v2391 = vunpack.c.l.b16 %v2294
        %v2392 = vunpack.c.l.b16 %v2370
        %v2393 = vunpack.c.l.b16 %v2301
        %v2394 = vunpack.c.l.b16 %v2371
        %v2395 = vunpack.c.l.b16 %v2308
        %v2396 = vunpack.c.l.b16 %v2372
        %v2397 = vunpack.c.l.b16 %v2315
        %v2398 = vunpack.c.l.b16 %v2373
        %v2399 = vunpack.c.l.b16 %v2322
        %v2400 = vunpack.c.l.b16 %v2374
        %v2401 = vunpack.c.l.b16 %v2329
        %v2402 = vunpack.c.l.b16 %v2375
        %v2403 = vunpack.c.l.b16 %v2336
        %v2404 = vunpack.c.l.b16 %v2376
        %v2405 = vunpack.c.l.b16 %v2343
        %v2406 = vunpack.c.l.b16 %v2377
        %v2407 = vunpack.c.l.b16 %v2350
        %v2408 = vunpack.c.l.b16 %v2378
        %v2409 = vunpack.c.l.b16 %v2357
        %v2410 = vunpack.c.l.b16 %v2379
        %v2411 = vunpack.c.l.b16 %v2364
        %v2412 = vunpack.c.l.b16 %v2380
        %v2413 = vld [vmem:[#allocation12 + $0xc0] sm:$0xf]
        %v2414 = vld [vmem:[#allocation12 + $0xc4] sm:$0xf]
        %v2415 = vld [vmem:[#allocation12 + $0xc8] sm:$0xf]
        %v2416 = vld [vmem:[#allocation12 + $0xcc] sm:$0xf]
        %v2417 = vld [vmem:[#allocation12 + $0xd0] sm:$0xf]
        %v2418 = vld [vmem:[#allocation12 + $0xd4] sm:$0xf]
        %v2419 = vld [vmem:[#allocation12 + $0xd8] sm:$0xf]
        %v2420 = vld [vmem:[#allocation12 + $0xdc] sm:$0xf]
        %v2421 = vld [vmem:[#allocation12 + $0xe0] sm:$0xf]
        %v2422 = vld [vmem:[#allocation12 + $0xe4] sm:$0xf]
        %v2423 = vld [vmem:[#allocation12 + $0xe8] sm:$0xf]
        %v2424 = vld [vmem:[#allocation12 + $0xec] sm:$0xf]
        %v2425 = vld [vmem:[#allocation12 + $0xf0] sm:$0xf]
        %v2426 = vld [vmem:[#allocation12 + $0xf4] sm:$0xf]
        %v2427 = vld [vmem:[#allocation12 + $0xf8] sm:$0xf]
        %v2428 = vld [vmem:[#allocation12 + $0xfc] sm:$0xf]
        %v2429 = vld [vmem:[#allocation12 + $0x100] sm:$0xf]
        %v2430 = vld [vmem:[#allocation12 + $0x104] sm:$0xf]
        %v2431 = vld [vmem:[#allocation12 + $0x108] sm:$0xf]
        %v2432 = vld [vmem:[#allocation12 + $0x10c] sm:$0xf]
        %v2433 = vld [vmem:[#allocation12 + $0x110] sm:$0xf]
        %v2434 = vld [vmem:[#allocation12 + $0x114] sm:$0xf]
        %v2435 = vld [vmem:[#allocation12 + $0x118] sm:$0xf]
        %v2436 = vld [vmem:[#allocation12 + $0x11c] sm:$0xf]
        %v2437 = vld [vmem:[#allocation12 + $0x120] sm:$0xf]
        %v2438 = vld [vmem:[#allocation12 + $0x124] sm:$0xf]
        %v2439 = vld [vmem:[#allocation12 + $0x128] sm:$0xf]
        %v2440 = vld [vmem:[#allocation12 + $0x12c] sm:$0xf]
        %v2441 = vld [vmem:[#allocation12 + $0x130] sm:$0xf]
        %v2442 = vld [vmem:[#allocation12 + $0x134] sm:$0xf]
        %v2443 = vld [vmem:[#allocation12 + $0x138] sm:$0xf]
        %v2444 = vld [vmem:[#allocation12 + $0x13c] sm:$0xf]
        %v2445 = vld [vmem:[#allocation12 + $0x140] sm:$0xf]
        %v2446 = vld [vmem:[#allocation12 + $0x144] sm:$0xf]
        %v2447 = vld [vmem:[#allocation12 + $0x148] sm:$0xf]
        %v2448 = vld [vmem:[#allocation12 + $0x14c] sm:$0xf]
        %v2449 = vld [vmem:[#allocation12 + $0x150] sm:$0xf]
        %v2450 = vld [vmem:[#allocation12 + $0x154] sm:$0xf]
        %v2451 = vld [vmem:[#allocation12 + $0x158] sm:$0xf]
        %v2452 = vld [vmem:[#allocation12 + $0x15c] sm:$0xf]
        %v2453 = vld [vmem:[#allocation12 + $0x160] sm:$0xf]
        %v2454 = vld [vmem:[#allocation12 + $0x164] sm:$0xf]
        %v2455 = vld [vmem:[#allocation12 + $0x168] sm:$0xf]
        %v2456 = vld [vmem:[#allocation12 + $0x16c] sm:$0xf]
        %v2457 = vld [vmem:[#allocation12 + $0x170] sm:$0xf]
        %v2458 = vld [vmem:[#allocation12 + $0x174] sm:$0xf]
        %v2459 = vld [vmem:[#allocation12 + $0x178] sm:$0xf]
        %v2460 = vld [vmem:[#allocation12 + $0x17c] sm:$0xf]
        %v2461 = vpack.c.b16 %v2207, %v2205
        %v2462 = vpack.c.b16 %v2383, %v2381
        %v2463 = vpack.c.b16 %v2384, %v2382
        %v2464 = vpack.c.b16 %v2211, %v2209
        %v2465 = vpack.c.b16 %v2387, %v2385
        %v2466 = vpack.c.b16 %v2388, %v2386
        %v2467 = vpack.c.b16 %v2215, %v2213
        %v2468 = vpack.c.b16 %v2391, %v2389
        %v2469 = vpack.c.b16 %v2392, %v2390
        %v2470 = vpack.c.b16 %v2219, %v2217
        %v2471 = vpack.c.b16 %v2395, %v2393
        %v2472 = vpack.c.b16 %v2396, %v2394
        %v2473 = vpack.c.b16 %v2223, %v2221
        %v2474 = vpack.c.b16 %v2399, %v2397
        %v2475 = vpack.c.b16 %v2400, %v2398
        %v2476 = vpack.c.b16 %v2227, %v2225
        %v2477 = vpack.c.b16 %v2403, %v2401
        %v2478 = vpack.c.b16 %v2404, %v2402
        %v2479 = vpack.c.b16 %v2231, %v2229
        %v2480 = vpack.c.b16 %v2407, %v2405
        %v2481 = vpack.c.b16 %v2408, %v2406
        %v2482 = vpack.c.b16 %v2235, %v2233
        %v2483 = vpack.c.b16 %v2411, %v2409
        %v2484 = vpack.c.b16 %v2412, %v2410
        %v2557 = vunpack.c.l.b16 %v2413
        %v2558 = vunpack.c.l.b16 %v2414
        %v2559 = vunpack.c.l.b16 %v2415
        %v2560 = vunpack.c.l.b16 %v2416
        %v2561 = vunpack.c.l.b16 %v2417
        %v2562 = vunpack.c.l.b16 %v2418
        %v2563 = vunpack.c.l.b16 %v2419
        %v2564 = vunpack.c.l.b16 %v2420
        %v2565 = vunpack.c.l.b16 %v2421
        %v2566 = vunpack.c.l.b16 %v2422
        %v2567 = vunpack.c.l.b16 %v2423
        %v2568 = vunpack.c.l.b16 %v2424
        %v2569 = vunpack.c.l.b16 %v2425
        %v2570 = vunpack.c.l.b16 %v2426
        %v2571 = vunpack.c.l.b16 %v2427
        %v2572 = vunpack.c.l.b16 %v2428
        %v2573 = vunpack.c.l.b16 %v2429
        %v2574 = vunpack.c.l.b16 %v2430
        %v2575 = vunpack.c.l.b16 %v2431
        %v2576 = vunpack.c.l.b16 %v2432
        %v2577 = vunpack.c.l.b16 %v2433
        %v2578 = vunpack.c.l.b16 %v2434
        %v2579 = vunpack.c.l.b16 %v2435
        %v2580 = vunpack.c.l.b16 %v2436
        %v2581 = vunpack.c.l.b16 %v2437
        %v2582 = vunpack.c.l.b16 %v2438
        %v2583 = vunpack.c.l.b16 %v2439
        %v2584 = vunpack.c.l.b16 %v2440
        %v2585 = vunpack.c.l.b16 %v2441
        %v2586 = vunpack.c.l.b16 %v2442
        %v2587 = vunpack.c.l.b16 %v2443
        %v2588 = vunpack.c.l.b16 %v2444
        %v2589 = vunpack.c.l.b16 %v2445
        %v2590 = vunpack.c.l.b16 %v2446
        %v2591 = vunpack.c.l.b16 %v2447
        %v2592 = vunpack.c.l.b16 %v2448
        %v2593 = vunpack.c.l.b16 %v2449
        %v2594 = vunpack.c.l.b16 %v2450
        %v2595 = vunpack.c.l.b16 %v2451
        %v2596 = vunpack.c.l.b16 %v2452
        %v2597 = vunpack.c.l.b16 %v2453
        %v2598 = vunpack.c.l.b16 %v2454
        %v2599 = vunpack.c.l.b16 %v2455
        %v2600 = vunpack.c.l.b16 %v2456
        %v2601 = vunpack.c.l.b16 %v2457
        %v2602 = vunpack.c.l.b16 %v2458
        %v2603 = vunpack.c.l.b16 %v2459
        %v2604 = vunpack.c.l.b16 %v2460
        %v2605 = vpack.c.b16 %v2558, %v2557
        %v2606 = vpack.c.b16 %v2560, %v2559
        %v2607 = vpack.c.b16 %v2562, %v2561
        %v2608 = vpack.c.b16 %v2564, %v2563
        %v2609 = vpack.c.b16 %v2566, %v2565
        %v2610 = vpack.c.b16 %v2568, %v2567
        %v2611 = vpack.c.b16 %v2570, %v2569
        %v2612 = vpack.c.b16 %v2572, %v2571
        %v2613 = vpack.c.b16 %v2574, %v2573
        %v2614 = vpack.c.b16 %v2576, %v2575
        %v2615 = vpack.c.b16 %v2578, %v2577
        %v2616 = vpack.c.b16 %v2580, %v2579
        %v2617 = vpack.c.b16 %v2582, %v2581
        %v2618 = vpack.c.b16 %v2584, %v2583
        %v2619 = vpack.c.b16 %v2586, %v2585
        %v2620 = vpack.c.b16 %v2588, %v2587
        %v2621 = vpack.c.b16 %v2590, %v2589
        %v2622 = vpack.c.b16 %v2592, %v2591
        %v2623 = vpack.c.b16 %v2594, %v2593
        %v2624 = vpack.c.b16 %v2596, %v2595
        %v2625 = vpack.c.b16 %v2598, %v2597
        %v2626 = vpack.c.b16 %v2600, %v2599
        %v2627 = vpack.c.b16 %v2602, %v2601
        %v2628 = vpack.c.b16 %v2604, %v2603
        %2653 = vmatprep.subr.bf16.mxu0 0
        %2654 = vmatpush1.bf16.msra.mxu0 %v2612
        %2655 = vmatprep.subr.bf16.mxu0 0
        %2656 = vmatpush1.bf16.msra.mxu0 %v2611
        %2657 = vmatprep.subr.bf16.mxu0 0
        %2658 = vmatpush1.bf16.msra.mxu0 %v2610
        %2659 = vmatprep.subr.bf16.mxu0 0
        %2660 = vmatpush1.bf16.msra.mxu0 %v2609
        %2661 = vmatprep.subr.bf16.mxu0 0
        %2662 = vmatpush1.bf16.msra.mxu0 %v2608
        %2663 = vmatprep.subr.bf16.mxu0 0
        %2664 = vmatpush1.bf16.msra.mxu0 %v2607
        %2665 = vmatprep.subr.bf16.mxu0 0
        %2666 = vmatpush1.bf16.msra.mxu0 %v2606
        %2667 = vmatprep.subr.bf16.mxu0 0
        %2668 = vmatpush1.bf16.msra.mxu0 %v2605
        %2669 = vmatprep.subr.bf16.mxu0 0
        %2670 = vmatpush2.bf16.msra.mxu0 %v2620
        %2671 = vmatprep.subr.bf16.mxu0 0
        %2672 = vmatpush2.bf16.msra.mxu0 %v2619
        %2673 = vmatprep.subr.bf16.mxu0 0
        %2674 = vmatpush2.bf16.msra.mxu0 %v2618
        %2675 = vmatprep.subr.bf16.mxu0 0
        %2676 = vmatpush2.bf16.msra.mxu0 %v2617
        %2677 = vmatprep.subr.bf16.mxu0 0
        %2678 = vmatpush2.bf16.msra.mxu0 %v2616
        %2679 = vmatprep.subr.bf16.mxu0 0
        %2680 = vmatpush2.bf16.msra.mxu0 %v2615
        %2681 = vmatprep.subr.bf16.mxu0 0
        %2682 = vmatpush2.bf16.msra.mxu0 %v2614
        %2683 = vmatprep.subr.bf16.mxu0 0
        %2684 = vmatpush2.bf16.msra.mxu0 %v2613
        %2685 = vmatprep.mubr.bf16.mxu0 %v2462
        %2686 = vmatmul.mubr.bf16.gmra.mxu0 %v2461
        %v2687 = vpop.f32.mrf.mxu0
        %v2688 = vadd.f32 0.0, %v2687
        %v2689 = vpop.f32.mrf.mxu0
        %v2690 = vpop.f32.mrf.mxu0
        %v2691 = vadd.f32 0.0, %v2690
        %v2692 = vpop.f32.mrf.mxu0
        %2693 = vmatprep.mubr.bf16.mxu0 %v2465
        %2694 = vmatmul.mubr.bf16.gmra.mxu0 %v2464
        %v2695 = vpop.f32.mrf.mxu0
        %v2696 = vadd.f32 0.0, %v2695
        %v2697 = vpop.f32.mrf.mxu0
        %v2698 = vpop.f32.mrf.mxu0
        %v2699 = vadd.f32 0.0, %v2698
        %v2700 = vpop.f32.mrf.mxu0
        %2701 = vmatprep.mubr.bf16.mxu0 %v2468
        %2702 = vmatmul.mubr.bf16.gmra.mxu0 %v2467
        %v2703 = vpop.f32.mrf.mxu0
        %v2704 = vadd.f32 0.0, %v2703
        %v2705 = vpop.f32.mrf.mxu0
        %v2706 = vpop.f32.mrf.mxu0
        %v2707 = vadd.f32 0.0, %v2706
        %v2708 = vpop.f32.mrf.mxu0
        %2709 = vmatprep.mubr.bf16.mxu0 %v2471
        %2710 = vmatmul.mubr.bf16.gmra.mxu0 %v2470
        %v2711 = vpop.f32.mrf.mxu0
        %v2712 = vadd.f32 0.0, %v2711
        %v2713 = vpop.f32.mrf.mxu0
        %v2714 = vpop.f32.mrf.mxu0
        %v2715 = vadd.f32 0.0, %v2714
        %v2716 = vpop.f32.mrf.mxu0
        %2717 = vmatprep.mubr.bf16.mxu0 %v2474
        %2718 = vmatmul.mubr.bf16.gmra.mxu0 %v2473
        %v2719 = vpop.f32.mrf.mxu0
        %v2720 = vadd.f32 0.0, %v2719
        %v2721 = vpop.f32.mrf.mxu0
        %v2722 = vpop.f32.mrf.mxu0
        %v2723 = vadd.f32 0.0, %v2722
        %v2724 = vpop.f32.mrf.mxu0
        %2725 = vmatprep.mubr.bf16.mxu0 %v2477
        %2726 = vmatmul.mubr.bf16.gmra.mxu0 %v2476
        %v2727 = vpop.f32.mrf.mxu0
        %v2728 = vadd.f32 0.0, %v2727
        %v2729 = vpop.f32.mrf.mxu0
        %v2730 = vpop.f32.mrf.mxu0
        %v2731 = vadd.f32 0.0, %v2730
        %v2732 = vpop.f32.mrf.mxu0
        %2733 = vmatprep.mubr.bf16.mxu0 %v2480
        %2734 = vmatmul.mubr.bf16.gmra.mxu0 %v2479
        %v2735 = vpop.f32.mrf.mxu0
        %v2736 = vadd.f32 0.0, %v2735
        %v2737 = vpop.f32.mrf.mxu0
        %v2738 = vpop.f32.mrf.mxu0
        %v2739 = vadd.f32 0.0, %v2738
        %v2740 = vpop.f32.mrf.mxu0
        %2741 = vmatprep.mubr.bf16.mxu0 %v2483
        %2742 = vmatmul.mubr.bf16.gmra.mxu0 %v2482
        %v2743 = vpop.f32.mrf.mxu0
        %v2744 = vadd.f32 0.0, %v2743
        %v2745 = vpop.f32.mrf.mxu0
        %v2746 = vpop.f32.mrf.mxu0
        %v2747 = vadd.f32 0.0, %v2746
        %v2748 = vpop.f32.mrf.mxu0
        %2749 = vdwg.mxu0
        %2750 = vmatprep.subr.bf16.mxu0 0
        %2751 = vmatpush1.bf16.msra.mxu0 %v2628
        %2752 = vmatprep.subr.bf16.mxu0 0
        %2753 = vmatpush1.bf16.msra.mxu0 %v2627
        %2754 = vmatprep.subr.bf16.mxu0 0
        %2755 = vmatpush1.bf16.msra.mxu0 %v2626
        %2756 = vmatprep.subr.bf16.mxu0 0
        %2757 = vmatpush1.bf16.msra.mxu0 %v2625
        %2758 = vmatprep.subr.bf16.mxu0 0
        %2759 = vmatpush1.bf16.msra.mxu0 %v2624
        %2760 = vmatprep.subr.bf16.mxu0 0
        %2761 = vmatpush1.bf16.msra.mxu0 %v2623
        %2762 = vmatprep.subr.bf16.mxu0 0
        %2763 = vmatpush1.bf16.msra.mxu0 %v2622
        %2764 = vmatprep.subr.bf16.mxu0 0
        %2765 = vmatpush1.bf16.msra.mxu0 %v2621
        %2766 = vmatprep.subr.bf16.mxu0 0
        %2767 = vmatpush2.bf16.msra.mxu0 0
        %2768 = vmatprep.subr.bf16.mxu0 0
        %2769 = vmatpush2.bf16.msra.mxu0 0
        %2770 = vmatprep.subr.bf16.mxu0 0
        %2771 = vmatpush2.bf16.msra.mxu0 0
        %2772 = vmatprep.subr.bf16.mxu0 0
        %2773 = vmatpush2.bf16.msra.mxu0 0
        %2774 = vmatprep.subr.bf16.mxu0 0
        %2775 = vmatpush2.bf16.msra.mxu0 0
        %2776 = vmatprep.subr.bf16.mxu0 0
        %2777 = vmatpush2.bf16.msra.mxu0 0
        %2778 = vmatprep.subr.bf16.mxu0 0
        %2779 = vmatpush2.bf16.msra.mxu0 0
        %2780 = vmatprep.subr.bf16.mxu0 0
        %2781 = vmatpush2.bf16.msra.mxu0 0
        %2782 = vmatprep.mubr.bf16.mxu0 0
        %2783 = vmatmul.mubr.bf16.gmra.mxu0 %v2463
        %v2784 = vpop.f32.mrf.mxu0
        %v2785 = vadd.f32 %v2688, %v2784
        %v2786 = vpop.f32.mrf.mxu0
        %v2787 = vpop.f32.mrf.mxu0
        %v2788 = vadd.f32 %v2691, %v2787
        %v2789 = vpop.f32.mrf.mxu0
        %2790 = vmatprep.mubr.bf16.mxu0 0
        %2791 = vmatmul.mubr.bf16.gmra.mxu0 %v2466
        %v2792 = vpop.f32.mrf.mxu0
        %v2793 = vadd.f32 %v2696, %v2792
        %v2794 = vpop.f32.mrf.mxu0
        %v2795 = vpop.f32.mrf.mxu0
        %v2796 = vadd.f32 %v2699, %v2795
        %v2797 = vpop.f32.mrf.mxu0
        %2798 = vmatprep.mubr.bf16.mxu0 0
        %2799 = vmatmul.mubr.bf16.gmra.mxu0 %v2469
        %v2800 = vpop.f32.mrf.mxu0
        %v2801 = vadd.f32 %v2704, %v2800
        %v2802 = vpop.f32.mrf.mxu0
        %v2803 = vpop.f32.mrf.mxu0
        %v2804 = vadd.f32 %v2707, %v2803
        %v2805 = vpop.f32.mrf.mxu0
        %2806 = vmatprep.mubr.bf16.mxu0 0
        %2807 = vmatmul.mubr.bf16.gmra.mxu0 %v2472
        %v2808 = vpop.f32.mrf.mxu0
        %v2809 = vadd.f32 %v2712, %v2808
        %v2810 = vpop.f32.mrf.mxu0
        %v2811 = vpop.f32.mrf.mxu0
        %v2812 = vadd.f32 %v2715, %v2811
        %v2813 = vpop.f32.mrf.mxu0
        %2814 = vmatprep.mubr.bf16.mxu0 0
        %2815 = vmatmul.mubr.bf16.gmra.mxu0 %v2475
        %v2816 = vpop.f32.mrf.mxu0
        %v2817 = vadd.f32 %v2720, %v2816
        %v2818 = vpop.f32.mrf.mxu0
        %v2819 = vpop.f32.mrf.mxu0
        %v2820 = vadd.f32 %v2723, %v2819
        %v2821 = vpop.f32.mrf.mxu0
        %2822 = vmatprep.mubr.bf16.mxu0 0
        %2823 = vmatmul.mubr.bf16.gmra.mxu0 %v2478
        %v2824 = vpop.f32.mrf.mxu0
        %v2825 = vadd.f32 %v2728, %v2824
        %v2826 = vpop.f32.mrf.mxu0
        %v2827 = vpop.f32.mrf.mxu0
        %v2828 = vadd.f32 %v2731, %v2827
        %v2829 = vpop.f32.mrf.mxu0
        %2830 = vmatprep.mubr.bf16.mxu0 0
        %2831 = vmatmul.mubr.bf16.gmra.mxu0 %v2481
        %v2832 = vpop.f32.mrf.mxu0
        %v2833 = vadd.f32 %v2736, %v2832
        %v2834 = vpop.f32.mrf.mxu0
        %v2835 = vpop.f32.mrf.mxu0
        %v2836 = vadd.f32 %v2739, %v2835
        %v2837 = vpop.f32.mrf.mxu0
        %2838 = vmatprep.mubr.bf16.mxu0 0
        %2839 = vmatmul.mubr.bf16.gmra.mxu0 %v2484
        %v2840 = vpop.f32.mrf.mxu0
        %v2841 = vadd.f32 %v2744, %v2840
        %v2842 = vpop.f32.mrf.mxu0
        %v2843 = vpop.f32.mrf.mxu0
        %v2844 = vadd.f32 %v2747, %v2843
        %v2845 = vpop.f32.mrf.mxu0
        %2846 = vdwg.mxu0
        %v2847 = vpack.c.b16 %v1887, %v1885
        %v2848 = vpack.c.b16 %v2063, %v2061
        %v2849 = vpack.c.b16 %v2064, %v2062
        %v2850 = vpack.c.b16 %v1891, %v1889
        %v2851 = vpack.c.b16 %v2067, %v2065
        %v2852 = vpack.c.b16 %v2068, %v2066
        %v2853 = vpack.c.b16 %v1895, %v1893
        %v2854 = vpack.c.b16 %v2071, %v2069
        %v2855 = vpack.c.b16 %v2072, %v2070
        %v2856 = vpack.c.b16 %v1899, %v1897
        %v2857 = vpack.c.b16 %v2075, %v2073
        %v2858 = vpack.c.b16 %v2076, %v2074
        %v2859 = vpack.c.b16 %v1903, %v1901
        %v2860 = vpack.c.b16 %v2079, %v2077
        %v2861 = vpack.c.b16 %v2080, %v2078
        %v2862 = vpack.c.b16 %v1907, %v1905
        %v2863 = vpack.c.b16 %v2083, %v2081
        %v2864 = vpack.c.b16 %v2084, %v2082
        %v2865 = vpack.c.b16 %v1911, %v1909
        %v2866 = vpack.c.b16 %v2087, %v2085
        %v2867 = vpack.c.b16 %v2088, %v2086
        %v2868 = vpack.c.b16 %v1915, %v1913
        %v2869 = vpack.c.b16 %v2091, %v2089
        %v2870 = vpack.c.b16 %v2092, %v2090
        %v2943 = vunpack.c.l.b16 %v2093
        %v2944 = vunpack.c.l.b16 %v2094
        %v2945 = vunpack.c.l.b16 %v2095
        %v2946 = vunpack.c.l.b16 %v2096
        %v2947 = vunpack.c.l.b16 %v2097
        %v2948 = vunpack.c.l.b16 %v2098
        %v2949 = vunpack.c.l.b16 %v2099
        %v2950 = vunpack.c.l.b16 %v2100
        %v2951 = vunpack.c.l.b16 %v2101
        %v2952 = vunpack.c.l.b16 %v2102
        %v2953 = vunpack.c.l.b16 %v2103
        %v2954 = vunpack.c.l.b16 %v2104
        %v2955 = vunpack.c.l.b16 %v2105
        %v2956 = vunpack.c.l.b16 %v2106
        %v2957 = vunpack.c.l.b16 %v2107
        %v2958 = vunpack.c.l.b16 %v2108
        %v2959 = vunpack.c.l.b16 %v2109
        %v2960 = vunpack.c.l.b16 %v2110
        %v2961 = vunpack.c.l.b16 %v2111
        %v2962 = vunpack.c.l.b16 %v2112
        %v2963 = vunpack.c.l.b16 %v2113
        %v2964 = vunpack.c.l.b16 %v2114
        %v2965 = vunpack.c.l.b16 %v2115
        %v2966 = vunpack.c.l.b16 %v2116
        %v2967 = vunpack.c.l.b16 %v2117
        %v2968 = vunpack.c.l.b16 %v2118
        %v2969 = vunpack.c.l.b16 %v2119
        %v2970 = vunpack.c.l.b16 %v2120
        %v2971 = vunpack.c.l.b16 %v2121
        %v2972 = vunpack.c.l.b16 %v2122
        %v2973 = vunpack.c.l.b16 %v2123
        %v2974 = vunpack.c.l.b16 %v2124
        %v2975 = vunpack.c.l.b16 %v2125
        %v2976 = vunpack.c.l.b16 %v2126
        %v2977 = vunpack.c.l.b16 %v2127
        %v2978 = vunpack.c.l.b16 %v2128
        %v2979 = vunpack.c.l.b16 %v2129
        %v2980 = vunpack.c.l.b16 %v2130
        %v2981 = vunpack.c.l.b16 %v2131
        %v2982 = vunpack.c.l.b16 %v2132
        %v2983 = vunpack.c.l.b16 %v2133
        %v2984 = vunpack.c.l.b16 %v2134
        %v2985 = vunpack.c.l.b16 %v2135
        %v2986 = vunpack.c.l.b16 %v2136
        %v2987 = vunpack.c.l.b16 %v2137
        %v2988 = vunpack.c.l.b16 %v2138
        %v2989 = vunpack.c.l.b16 %v2139
        %v2990 = vunpack.c.l.b16 %v2140
        %v2991 = vpack.c.b16 %v2944, %v2943
        %v2992 = vpack.c.b16 %v2946, %v2945
        %v2993 = vpack.c.b16 %v2948, %v2947
        %v2994 = vpack.c.b16 %v2950, %v2949
        %v2995 = vpack.c.b16 %v2952, %v2951
        %v2996 = vpack.c.b16 %v2954, %v2953
        %v2997 = vpack.c.b16 %v2956, %v2955
        %v2998 = vpack.c.b16 %v2958, %v2957
        %v2999 = vpack.c.b16 %v2960, %v2959
        %v3000 = vpack.c.b16 %v2962, %v2961
        %v3001 = vpack.c.b16 %v2964, %v2963
        %v3002 = vpack.c.b16 %v2966, %v2965
        %v3003 = vpack.c.b16 %v2968, %v2967
        %v3004 = vpack.c.b16 %v2970, %v2969
        %v3005 = vpack.c.b16 %v2972, %v2971
        %v3006 = vpack.c.b16 %v2974, %v2973
        %v3007 = vpack.c.b16 %v2976, %v2975
        %v3008 = vpack.c.b16 %v2978, %v2977
        %v3009 = vpack.c.b16 %v2980, %v2979
        %v3010 = vpack.c.b16 %v2982, %v2981
        %v3011 = vpack.c.b16 %v2984, %v2983
        %v3012 = vpack.c.b16 %v2986, %v2985
        %v3013 = vpack.c.b16 %v2988, %v2987
        %v3014 = vpack.c.b16 %v2990, %v2989
        %3039 = vmatprep.subr.bf16.mxu0 0
        %3040 = vmatpush1.bf16.msra.mxu0 %v2998
        %3041 = vmatprep.subr.bf16.mxu0 0
        %3042 = vmatpush1.bf16.msra.mxu0 %v2997
        %3043 = vmatprep.subr.bf16.mxu0 0
        %3044 = vmatpush1.bf16.msra.mxu0 %v2996
        %3045 = vmatprep.subr.bf16.mxu0 0
        %3046 = vmatpush1.bf16.msra.mxu0 %v2995
        %3047 = vmatprep.subr.bf16.mxu0 0
        %3048 = vmatpush1.bf16.msra.mxu0 %v2994
        %3049 = vmatprep.subr.bf16.mxu0 0
        %3050 = vmatpush1.bf16.msra.mxu0 %v2993
        %3051 = vmatprep.subr.bf16.mxu0 0
        %3052 = vmatpush1.bf16.msra.mxu0 %v2992
        %3053 = vmatprep.subr.bf16.mxu0 0
        %3054 = vmatpush1.bf16.msra.mxu0 %v2991
        %3055 = vmatprep.subr.bf16.mxu0 0
        %3056 = vmatpush2.bf16.msra.mxu0 %v3006
        %3057 = vmatprep.subr.bf16.mxu0 0
        %3058 = vmatpush2.bf16.msra.mxu0 %v3005
        %3059 = vmatprep.subr.bf16.mxu0 0
        %3060 = vmatpush2.bf16.msra.mxu0 %v3004
        %3061 = vmatprep.subr.bf16.mxu0 0
        %3062 = vmatpush2.bf16.msra.mxu0 %v3003
        %3063 = vmatprep.subr.bf16.mxu0 0
        %3064 = vmatpush2.bf16.msra.mxu0 %v3002
        %3065 = vmatprep.subr.bf16.mxu0 0
        %3066 = vmatpush2.bf16.msra.mxu0 %v3001
        %3067 = vmatprep.subr.bf16.mxu0 0
        %3068 = vmatpush2.bf16.msra.mxu0 %v3000
        %3069 = vmatprep.subr.bf16.mxu0 0
        %3070 = vmatpush2.bf16.msra.mxu0 %v2999
        %3071 = vmatprep.mubr.bf16.mxu0 %v2848
        %3072 = vmatmul.mubr.bf16.gmra.mxu0 %v2847
        %v3073 = vpop.f32.mrf.mxu0
        %v3074 = vadd.f32 %v2785, %v3073
        %v3075 = vpop.f32.mrf.mxu0
        %v3076 = vpop.f32.mrf.mxu0
        %v3077 = vadd.f32 %v2788, %v3076
        %v3078 = vpop.f32.mrf.mxu0
        %3079 = vmatprep.mubr.bf16.mxu0 %v2851
        %3080 = vmatmul.mubr.bf16.gmra.mxu0 %v2850
        %v3081 = vpop.f32.mrf.mxu0
        %v3082 = vadd.f32 %v2793, %v3081
        %v3083 = vpop.f32.mrf.mxu0
        %v3084 = vpop.f32.mrf.mxu0
        %v3085 = vadd.f32 %v2796, %v3084
        %v3086 = vpop.f32.mrf.mxu0
        %3087 = vmatprep.mubr.bf16.mxu0 %v2854
        %3088 = vmatmul.mubr.bf16.gmra.mxu0 %v2853
        %v3089 = vpop.f32.mrf.mxu0
        %v3090 = vadd.f32 %v2801, %v3089
        %v3091 = vpop.f32.mrf.mxu0
        %v3092 = vpop.f32.mrf.mxu0
        %v3093 = vadd.f32 %v2804, %v3092
        %v3094 = vpop.f32.mrf.mxu0
        %3095 = vmatprep.mubr.bf16.mxu0 %v2857
        %3096 = vmatmul.mubr.bf16.gmra.mxu0 %v2856
        %v3097 = vpop.f32.mrf.mxu0
        %v3098 = vadd.f32 %v2809, %v3097
        %v3099 = vpop.f32.mrf.mxu0
        %v3100 = vpop.f32.mrf.mxu0
        %v3101 = vadd.f32 %v2812, %v3100
        %v3102 = vpop.f32.mrf.mxu0
        %3103 = vmatprep.mubr.bf16.mxu0 %v2860
        %3104 = vmatmul.mubr.bf16.gmra.mxu0 %v2859
        %v3105 = vpop.f32.mrf.mxu0
        %v3106 = vadd.f32 %v2817, %v3105
        %v3107 = vpop.f32.mrf.mxu0
        %v3108 = vpop.f32.mrf.mxu0
        %v3109 = vadd.f32 %v2820, %v3108
        %v3110 = vpop.f32.mrf.mxu0
        %3111 = vmatprep.mubr.bf16.mxu0 %v2863
        %3112 = vmatmul.mubr.bf16.gmra.mxu0 %v2862
        %v3113 = vpop.f32.mrf.mxu0
        %v3114 = vadd.f32 %v2825, %v3113
        %v3115 = vpop.f32.mrf.mxu0
        %v3116 = vpop.f32.mrf.mxu0
        %v3117 = vadd.f32 %v2828, %v3116
        %v3118 = vpop.f32.mrf.mxu0
        %3119 = vmatprep.mubr.bf16.mxu0 %v2866
        %3120 = vmatmul.mubr.bf16.gmra.mxu0 %v2865
        %v3121 = vpop.f32.mrf.mxu0
        %v3122 = vadd.f32 %v2833, %v3121
        %v3123 = vpop.f32.mrf.mxu0
        %v3124 = vpop.f32.mrf.mxu0
        %v3125 = vadd.f32 %v2836, %v3124
        %v3126 = vpop.f32.mrf.mxu0
        %3127 = vmatprep.mubr.bf16.mxu0 %v2869
        %3128 = vmatmul.mubr.bf16.gmra.mxu0 %v2868
        %v3129 = vpop.f32.mrf.mxu0
        %v3130 = vadd.f32 %v2841, %v3129
        %v3131 = vpop.f32.mrf.mxu0
        %v3132 = vpop.f32.mrf.mxu0
        %v3133 = vadd.f32 %v2844, %v3132
        %v3134 = vpop.f32.mrf.mxu0
        %3135 = vdwg.mxu0
        %3136 = vmatprep.subr.bf16.mxu0 0
        %3137 = vmatpush1.bf16.msra.mxu0 %v3014
        %3138 = vmatprep.subr.bf16.mxu0 0
        %3139 = vmatpush1.bf16.msra.mxu0 %v3013
        %3140 = vmatprep.subr.bf16.mxu0 0
        %3141 = vmatpush1.bf16.msra.mxu0 %v3012
        %3142 = vmatprep.subr.bf16.mxu0 0
        %3143 = vmatpush1.bf16.msra.mxu0 %v3011
        %3144 = vmatprep.subr.bf16.mxu0 0
        %3145 = vmatpush1.bf16.msra.mxu0 %v3010
        %3146 = vmatprep.subr.bf16.mxu0 0
        %3147 = vmatpush1.bf16.msra.mxu0 %v3009
        %3148 = vmatprep.subr.bf16.mxu0 0
        %3149 = vmatpush1.bf16.msra.mxu0 %v3008
        %3150 = vmatprep.subr.bf16.mxu0 0
        %3151 = vmatpush1.bf16.msra.mxu0 %v3007
        %3152 = vmatprep.subr.bf16.mxu0 0
        %3153 = vmatpush2.bf16.msra.mxu0 0
        %3154 = vmatprep.subr.bf16.mxu0 0
        %3155 = vmatpush2.bf16.msra.mxu0 0
        %3156 = vmatprep.subr.bf16.mxu0 0
        %3157 = vmatpush2.bf16.msra.mxu0 0
        %3158 = vmatprep.subr.bf16.mxu0 0
        %3159 = vmatpush2.bf16.msra.mxu0 0
        %3160 = vmatprep.subr.bf16.mxu0 0
        %3161 = vmatpush2.bf16.msra.mxu0 0
        %3162 = vmatprep.subr.bf16.mxu0 0
        %3163 = vmatpush2.bf16.msra.mxu0 0
        %3164 = vmatprep.subr.bf16.mxu0 0
        %3165 = vmatpush2.bf16.msra.mxu0 0
        %3166 = vmatprep.subr.bf16.mxu0 0
        %3167 = vmatpush2.bf16.msra.mxu0 0
        %3168 = vmatprep.mubr.bf16.mxu0 0
        %3169 = vmatmul.mubr.bf16.gmra.mxu0 %v2849
        %v3170 = vpop.f32.mrf.mxu0
        %v3171 = vadd.f32 %v3074, %v3170
        %v3172 = vpop.f32.mrf.mxu0
        %v3173 = vpop.f32.mrf.mxu0
        %v3174 = vadd.f32 %v3077, %v3173
        %v3175 = vpop.f32.mrf.mxu0
        %3176 = vmatprep.mubr.bf16.mxu0 0
        %3177 = vmatmul.mubr.bf16.gmra.mxu0 %v2852
        %v3178 = vpop.f32.mrf.mxu0
        %v3179 = vadd.f32 %v3082, %v3178
        %v3180 = vpop.f32.mrf.mxu0
        %v3181 = vpop.f32.mrf.mxu0
        %v3182 = vadd.f32 %v3085, %v3181
        %v3183 = vpop.f32.mrf.mxu0
        %3184 = vmatprep.mubr.bf16.mxu0 0
        %3185 = vmatmul.mubr.bf16.gmra.mxu0 %v2855
        %v3186 = vpop.f32.mrf.mxu0
        %v3187 = vadd.f32 %v3090, %v3186
        %v3188 = vpop.f32.mrf.mxu0
        %v3189 = vpop.f32.mrf.mxu0
        %v3190 = vadd.f32 %v3093, %v3189
        %v3191 = vpop.f32.mrf.mxu0
        %3192 = vmatprep.mubr.bf16.mxu0 0
        %3193 = vmatmul.mubr.bf16.gmra.mxu0 %v2858
        %v3194 = vpop.f32.mrf.mxu0
        %v3195 = vadd.f32 %v3098, %v3194
        %v3196 = vpop.f32.mrf.mxu0
        %v3197 = vpop.f32.mrf.mxu0
        %v3198 = vadd.f32 %v3101, %v3197
        %v3199 = vpop.f32.mrf.mxu0
        %3200 = vmatprep.mubr.bf16.mxu0 0
        %3201 = vmatmul.mubr.bf16.gmra.mxu0 %v2861
        %v3202 = vpop.f32.mrf.mxu0
        %v3203 = vadd.f32 %v3106, %v3202
        %v3204 = vpop.f32.mrf.mxu0
        %v3205 = vpop.f32.mrf.mxu0
        %v3206 = vadd.f32 %v3109, %v3205
        %v3207 = vpop.f32.mrf.mxu0
        %3208 = vmatprep.mubr.bf16.mxu0 0
        %3209 = vmatmul.mubr.bf16.gmra.mxu0 %v2864
        %v3210 = vpop.f32.mrf.mxu0
        %v3211 = vadd.f32 %v3114, %v3210
        %v3212 = vpop.f32.mrf.mxu0
        %v3213 = vpop.f32.mrf.mxu0
        %v3214 = vadd.f32 %v3117, %v3213
        %v3215 = vpop.f32.mrf.mxu0
        %3216 = vmatprep.mubr.bf16.mxu0 0
        %3217 = vmatmul.mubr.bf16.gmra.mxu0 %v2867
        %v3218 = vpop.f32.mrf.mxu0
        %v3219 = vadd.f32 %v3122, %v3218
        %v3220 = vpop.f32.mrf.mxu0
        %v3221 = vpop.f32.mrf.mxu0
        %v3222 = vadd.f32 %v3125, %v3221
        %v3223 = vpop.f32.mrf.mxu0
        %3224 = vmatprep.mubr.bf16.mxu0 0
        %3225 = vmatmul.mubr.bf16.gmra.mxu0 %v2870
        %v3226 = vpop.f32.mrf.mxu0
        %v3227 = vadd.f32 %v3130, %v3226
        %v3228 = vpop.f32.mrf.mxu0
        %v3229 = vpop.f32.mrf.mxu0
        %v3230 = vadd.f32 %v3133, %v3229
        %v3231 = vpop.f32.mrf.mxu0
        %3232 = vdwg.mxu0
        %s3233 = scalar_lea.vmem [#allocation3], 16
        %v3234 = vld [vmem:[%s3233] sm:$0xf]
        %v3235 = vld [vmem:[%s3233 + $0x4] sm:$0xf]
        %v3236 = vld [vmem:[%s3233 + $0x8] sm:$0xf]
        %v3237 = vld [vmem:[%s3233 + $0xc] sm:$0xf]
        %v3238 = vld [vmem:[%s3233 + $0x10] sm:$0xf]
        %v3239 = vld [vmem:[%s3233 + $0x14] sm:$0xf]
        %v3240 = vld [vmem:[%s3233 + $0x18] sm:$0xf]
        %v3241 = vld [vmem:[%s3233 + $0x1c] sm:$0xf]
        %v3242 = vld [vmem:[%s3233 + $0x20] sm:$0xf]
        %v3243 = vld [vmem:[%s3233 + $0x24] sm:$0xf]
        %v3244 = vld [vmem:[%s3233 + $0x28] sm:$0xf]
        %v3245 = vld [vmem:[%s3233 + $0x2c] sm:$0xf]
        %v3246 = vld [vmem:[%s3233 + $0x30] sm:$0xf]
        %v3247 = vld [vmem:[%s3233 + $0x34] sm:$0xf]
        %v3248 = vld [vmem:[%s3233 + $0x38] sm:$0xf]
        %v3249 = vld [vmem:[%s3233 + $0x3c] sm:$0xf]
        %v3250 = vld [vmem:[%s3233 + $0x50] sm:$0xf]
        %v3251 = vld [vmem:[%s3233 + $0x54] sm:$0xf]
        %v3252 = vld [vmem:[%s3233 + $0x58] sm:$0xf]
        %v3253 = vld [vmem:[%s3233 + $0x5c] sm:$0xf]
        %v3254 = vld [vmem:[%s3233 + $0x60] sm:$0xf]
        %v3255 = vld [vmem:[%s3233 + $0x64] sm:$0xf]
        %v3256 = vld [vmem:[%s3233 + $0x68] sm:$0xf]
        %v3257 = vld [vmem:[%s3233 + $0x6c] sm:$0xf]
        %v3258 = vld [vmem:[%s3233 + $0x70] sm:$0xf]
        %v3259 = vld [vmem:[%s3233 + $0x74] sm:$0xf]
        %v3260 = vld [vmem:[%s3233 + $0x78] sm:$0xf]
        %v3261 = vld [vmem:[%s3233 + $0x7c] sm:$0xf]
        %v3262 = vld [vmem:[%s3233 + $0x80] sm:$0xf]
        %v3263 = vld [vmem:[%s3233 + $0x84] sm:$0xf]
        %v3264 = vld [vmem:[%s3233 + $0x88] sm:$0xf]
        %v3265 = vld [vmem:[%s3233 + $0x8c] sm:$0xf]
        %v3298 = vunpack.c.l.b16 %v3234
        %v3299 = vunpack.c.l.b16 %v3235
        %v3300 = vunpack.c.l.b16 %v3236
        %v3301 = vunpack.c.l.b16 %v3237
        %v3302 = vunpack.c.l.b16 %v3238
        %v3303 = vunpack.c.l.b16 %v3239
        %v3304 = vunpack.c.l.b16 %v3240
        %v3305 = vunpack.c.l.b16 %v3241
        %v3306 = vunpack.c.l.b16 %v3242
        %v3307 = vunpack.c.l.b16 %v3243
        %v3308 = vunpack.c.l.b16 %v3244
        %v3309 = vunpack.c.l.b16 %v3245
        %v3310 = vunpack.c.l.b16 %v3246
        %v3311 = vunpack.c.l.b16 %v3247
        %v3312 = vunpack.c.l.b16 %v3248
        %v3313 = vunpack.c.l.b16 %v3249
        %v3314 = vunpack.c.l.b16 %v3250
        %v3315 = vunpack.c.l.b16 %v3251
        %v3316 = vunpack.c.l.b16 %v3252
        %v3317 = vunpack.c.l.b16 %v3253
        %v3318 = vunpack.c.l.b16 %v3254
        %v3319 = vunpack.c.l.b16 %v3255
        %v3320 = vunpack.c.l.b16 %v3256
        %v3321 = vunpack.c.l.b16 %v3257
        %v3322 = vunpack.c.l.b16 %v3258
        %v3323 = vunpack.c.l.b16 %v3259
        %v3324 = vunpack.c.l.b16 %v3260
        %v3325 = vunpack.c.l.b16 %v3261
        %v3326 = vunpack.c.l.b16 %v3262
        %v3327 = vunpack.c.l.b16 %v3263
        %v3328 = vunpack.c.l.b16 %v3264
        %v3329 = vunpack.c.l.b16 %v3265
        %v3330 = vpack.c.b16 %v3299, %v3298
        %v3331 = vpack.c.b16 %v3301, %v3300
        %v3332 = vpack.c.b16 %v3303, %v3302
        %v3333 = vpack.c.b16 %v3305, %v3304
        %v3334 = vpack.c.b16 %v3307, %v3306
        %v3335 = vpack.c.b16 %v3309, %v3308
        %v3336 = vpack.c.b16 %v3311, %v3310
        %v3337 = vpack.c.b16 %v3313, %v3312
        %v3338 = vpack.c.b16 %v3315, %v3314
        %v3339 = vpack.c.b16 %v3317, %v3316
        %v3340 = vpack.c.b16 %v3319, %v3318
        %v3341 = vpack.c.b16 %v3321, %v3320
        %v3342 = vpack.c.b16 %v3323, %v3322
        %v3343 = vpack.c.b16 %v3325, %v3324
        %v3344 = vpack.c.b16 %v3327, %v3326
        %v3345 = vpack.c.b16 %v3329, %v3328
        %v3347 = vshrl.u32 %v3330, 16
        %v3349 = vshll.u32 %v3330, 16
        %v3351 = vrot.slane %v3349, 1
        %v3352 = vor.u32 %v3347, %v3351
        %v3354 = vshrl.u32 %v3331, 16
        %v3356 = vshll.u32 %v3331, 16
        %v3358 = vrot.slane %v3356, 1
        %v3359 = vor.u32 %v3354, %v3358
        %v3361 = vshrl.u32 %v3332, 16
        %v3363 = vshll.u32 %v3332, 16
        %v3365 = vrot.slane %v3363, 1
        %v3366 = vor.u32 %v3361, %v3365
        %v3368 = vshrl.u32 %v3333, 16
        %v3370 = vshll.u32 %v3333, 16
        %v3372 = vrot.slane %v3370, 1
        %v3373 = vor.u32 %v3368, %v3372
        %v3375 = vshrl.u32 %v3334, 16
        %v3377 = vshll.u32 %v3334, 16
        %v3379 = vrot.slane %v3377, 1
        %v3380 = vor.u32 %v3375, %v3379
        %v3382 = vshrl.u32 %v3335, 16
        %v3384 = vshll.u32 %v3335, 16
        %v3386 = vrot.slane %v3384, 1
        %v3387 = vor.u32 %v3382, %v3386
        %v3389 = vshrl.u32 %v3336, 16
        %v3391 = vshll.u32 %v3336, 16
        %v3393 = vrot.slane %v3391, 1
        %v3394 = vor.u32 %v3389, %v3393
        %v3396 = vshrl.u32 %v3337, 16
        %v3398 = vshll.u32 %v3337, 16
        %v3400 = vrot.slane %v3398, 1
        %v3401 = vor.u32 %v3396, %v3400
        %v3403 = vshrl.u32 %v3338, 16
        %v3405 = vshll.u32 %v3338, 16
        %v3407 = vrot.slane %v3405, 1
        %v3408 = vor.u32 %v3403, %v3407
        %v3410 = vshrl.u32 %v3339, 16
        %v3412 = vshll.u32 %v3339, 16
        %v3414 = vrot.slane %v3412, 1
        %v3415 = vor.u32 %v3410, %v3414
        %v3417 = vshrl.u32 %v3340, 16
        %v3419 = vshll.u32 %v3340, 16
        %v3421 = vrot.slane %v3419, 1
        %v3422 = vor.u32 %v3417, %v3421
        %v3424 = vshrl.u32 %v3341, 16
        %v3426 = vshll.u32 %v3341, 16
        %v3428 = vrot.slane %v3426, 1
        %v3429 = vor.u32 %v3424, %v3428
        %v3431 = vshrl.u32 %v3342, 16
        %v3433 = vshll.u32 %v3342, 16
        %v3435 = vrot.slane %v3433, 1
        %v3436 = vor.u32 %v3431, %v3435
        %v3438 = vshrl.u32 %v3343, 16
        %v3440 = vshll.u32 %v3343, 16
        %v3442 = vrot.slane %v3440, 1
        %v3443 = vor.u32 %v3438, %v3442
        %v3445 = vshrl.u32 %v3344, 16
        %v3447 = vshll.u32 %v3344, 16
        %v3449 = vrot.slane %v3447, 1
        %v3450 = vor.u32 %v3445, %v3449
        %v3452 = vshrl.u32 %v3345, 16
        %v3454 = vshll.u32 %v3345, 16
        %v3456 = vrot.slane %v3454, 1
        %v3457 = vor.u32 %v3452, %v3456
        %v3458 = vrot.slane %v3330, 1
        %v3459 = vrot.slane %v3331, 1
        %v3460 = vrot.slane %v3332, 1
        %v3461 = vrot.slane %v3333, 1
        %v3462 = vrot.slane %v3334, 1
        %v3463 = vrot.slane %v3335, 1
        %v3464 = vrot.slane %v3336, 1
        %v3465 = vrot.slane %v3337, 1
        %v3466 = vrot.slane %v3338, 1
        %v3467 = vrot.slane %v3339, 1
        %v3468 = vrot.slane %v3340, 1
        %v3469 = vrot.slane %v3341, 1
        %v3470 = vrot.slane %v3342, 1
        %v3471 = vrot.slane %v3343, 1
        %v3472 = vrot.slane %v3344, 1
        %v3473 = vrot.slane %v3345, 1
        %v3474 = vunpack.c.l.b16 %v3352
        %v3475 = vunpack.c.l.b16 %v3458
        %v3476 = vunpack.c.l.b16 %v3359
        %v3477 = vunpack.c.l.b16 %v3459
        %v3478 = vunpack.c.l.b16 %v3366
        %v3479 = vunpack.c.l.b16 %v3460
        %v3480 = vunpack.c.l.b16 %v3373
        %v3481 = vunpack.c.l.b16 %v3461
        %v3482 = vunpack.c.l.b16 %v3380
        %v3483 = vunpack.c.l.b16 %v3462
        %v3484 = vunpack.c.l.b16 %v3387
        %v3485 = vunpack.c.l.b16 %v3463
        %v3486 = vunpack.c.l.b16 %v3394
        %v3487 = vunpack.c.l.b16 %v3464
        %v3488 = vunpack.c.l.b16 %v3401
        %v3489 = vunpack.c.l.b16 %v3465
        %v3490 = vunpack.c.l.b16 %v3408
        %v3491 = vunpack.c.l.b16 %v3466
        %v3492 = vunpack.c.l.b16 %v3415
        %v3493 = vunpack.c.l.b16 %v3467
        %v3494 = vunpack.c.l.b16 %v3422
        %v3495 = vunpack.c.l.b16 %v3468
        %v3496 = vunpack.c.l.b16 %v3429
        %v3497 = vunpack.c.l.b16 %v3469
        %v3498 = vunpack.c.l.b16 %v3436
        %v3499 = vunpack.c.l.b16 %v3470
        %v3500 = vunpack.c.l.b16 %v3443
        %v3501 = vunpack.c.l.b16 %v3471
        %v3502 = vunpack.c.l.b16 %v3450
        %v3503 = vunpack.c.l.b16 %v3472
        %v3504 = vunpack.c.l.b16 %v3457
        %v3505 = vunpack.c.l.b16 %v3473
        %v3506 = vld [vmem:[#allocation12 + $0x180] sm:$0xf]
        %v3507 = vld [vmem:[#allocation12 + $0x184] sm:$0xf]
        %v3508 = vld [vmem:[#allocation12 + $0x188] sm:$0xf]
        %v3509 = vld [vmem:[#allocation12 + $0x18c] sm:$0xf]
        %v3510 = vld [vmem:[#allocation12 + $0x190] sm:$0xf]
        %v3511 = vld [vmem:[#allocation12 + $0x194] sm:$0xf]
        %v3512 = vld [vmem:[#allocation12 + $0x198] sm:$0xf]
        %v3513 = vld [vmem:[#allocation12 + $0x19c] sm:$0xf]
        %v3514 = vld [vmem:[#allocation12 + $0x1a0] sm:$0xf]
        %v3515 = vld [vmem:[#allocation12 + $0x1a4] sm:$0xf]
        %v3516 = vld [vmem:[#allocation12 + $0x1a8] sm:$0xf]
        %v3517 = vld [vmem:[#allocation12 + $0x1ac] sm:$0xf]
        %v3518 = vld [vmem:[#allocation12 + $0x1b0] sm:$0xf]
        %v3519 = vld [vmem:[#allocation12 + $0x1b4] sm:$0xf]
        %v3520 = vld [vmem:[#allocation12 + $0x1b8] sm:$0xf]
        %v3521 = vld [vmem:[#allocation12 + $0x1bc] sm:$0xf]
        %v3522 = vld [vmem:[#allocation12 + $0x1c0] sm:$0xf]
        %v3523 = vld [vmem:[#allocation12 + $0x1c4] sm:$0xf]
        %v3524 = vld [vmem:[#allocation12 + $0x1c8] sm:$0xf]
        %v3525 = vld [vmem:[#allocation12 + $0x1cc] sm:$0xf]
        %v3526 = vld [vmem:[#allocation12 + $0x1d0] sm:$0xf]
        %v3527 = vld [vmem:[#allocation12 + $0x1d4] sm:$0xf]
        %v3528 = vld [vmem:[#allocation12 + $0x1d8] sm:$0xf]
        %v3529 = vld [vmem:[#allocation12 + $0x1dc] sm:$0xf]
        %v3530 = vld [vmem:[#allocation12 + $0x1e0] sm:$0xf]
        %v3531 = vld [vmem:[#allocation12 + $0x1e4] sm:$0xf]
        %v3532 = vld [vmem:[#allocation12 + $0x1e8] sm:$0xf]
        %v3533 = vld [vmem:[#allocation12 + $0x1ec] sm:$0xf]
        %v3534 = vld [vmem:[#allocation12 + $0x1f0] sm:$0xf]
        %v3535 = vld [vmem:[#allocation12 + $0x1f4] sm:$0xf]
        %v3536 = vld [vmem:[#allocation12 + $0x1f8] sm:$0xf]
        %v3537 = vld [vmem:[#allocation12 + $0x1fc] sm:$0xf]
        %v3538 = vld [vmem:[#allocation12 + $0x200] sm:$0xf]
        %v3539 = vld [vmem:[#allocation12 + $0x204] sm:$0xf]
        %v3540 = vld [vmem:[#allocation12 + $0x208] sm:$0xf]
        %v3541 = vld [vmem:[#allocation12 + $0x20c] sm:$0xf]
        %v3542 = vld [vmem:[#allocation12 + $0x210] sm:$0xf]
        %v3543 = vld [vmem:[#allocation12 + $0x214] sm:$0xf]
        %v3544 = vld [vmem:[#allocation12 + $0x218] sm:$0xf]
        %v3545 = vld [vmem:[#allocation12 + $0x21c] sm:$0xf]
        %v3546 = vld [vmem:[#allocation12 + $0x220] sm:$0xf]
        %v3547 = vld [vmem:[#allocation12 + $0x224] sm:$0xf]
        %v3548 = vld [vmem:[#allocation12 + $0x228] sm:$0xf]
        %v3549 = vld [vmem:[#allocation12 + $0x22c] sm:$0xf]
        %v3550 = vld [vmem:[#allocation12 + $0x230] sm:$0xf]
        %v3551 = vld [vmem:[#allocation12 + $0x234] sm:$0xf]
        %v3552 = vld [vmem:[#allocation12 + $0x238] sm:$0xf]
        %v3553 = vld [vmem:[#allocation12 + $0x23c] sm:$0xf]
        %v3554 = vpack.c.b16 %v3300, %v3298
        %v3555 = vpack.c.b16 %v3476, %v3474
        %v3556 = vpack.c.b16 %v3477, %v3475
        %v3557 = vpack.c.b16 %v3304, %v3302
        %v3558 = vpack.c.b16 %v3480, %v3478
        %v3559 = vpack.c.b16 %v3481, %v3479
        %v3560 = vpack.c.b16 %v3308, %v3306
        %v3561 = vpack.c.b16 %v3484, %v3482
        %v3562 = vpack.c.b16 %v3485, %v3483
        %v3563 = vpack.c.b16 %v3312, %v3310
        %v3564 = vpack.c.b16 %v3488, %v3486
        %v3565 = vpack.c.b16 %v3489, %v3487
        %v3566 = vpack.c.b16 %v3316, %v3314
        %v3567 = vpack.c.b16 %v3492, %v3490
        %v3568 = vpack.c.b16 %v3493, %v3491
        %v3569 = vpack.c.b16 %v3320, %v3318
        %v3570 = vpack.c.b16 %v3496, %v3494
        %v3571 = vpack.c.b16 %v3497, %v3495
        %v3572 = vpack.c.b16 %v3324, %v3322
        %v3573 = vpack.c.b16 %v3500, %v3498
        %v3574 = vpack.c.b16 %v3501, %v3499
        %v3575 = vpack.c.b16 %v3328, %v3326
        %v3576 = vpack.c.b16 %v3504, %v3502
        %v3577 = vpack.c.b16 %v3505, %v3503
        %v3650 = vunpack.c.l.b16 %v3506
        %v3651 = vunpack.c.l.b16 %v3507
        %v3652 = vunpack.c.l.b16 %v3508
        %v3653 = vunpack.c.l.b16 %v3509
        %v3654 = vunpack.c.l.b16 %v3510
        %v3655 = vunpack.c.l.b16 %v3511
        %v3656 = vunpack.c.l.b16 %v3512
        %v3657 = vunpack.c.l.b16 %v3513
        %v3658 = vunpack.c.l.b16 %v3514
        %v3659 = vunpack.c.l.b16 %v3515
        %v3660 = vunpack.c.l.b16 %v3516
        %v3661 = vunpack.c.l.b16 %v3517
        %v3662 = vunpack.c.l.b16 %v3518
        %v3663 = vunpack.c.l.b16 %v3519
        %v3664 = vunpack.c.l.b16 %v3520
        %v3665 = vunpack.c.l.b16 %v3521
        %v3666 = vunpack.c.l.b16 %v3522
        %v3667 = vunpack.c.l.b16 %v3523
        %v3668 = vunpack.c.l.b16 %v3524
        %v3669 = vunpack.c.l.b16 %v3525
        %v3670 = vunpack.c.l.b16 %v3526
        %v3671 = vunpack.c.l.b16 %v3527
        %v3672 = vunpack.c.l.b16 %v3528
        %v3673 = vunpack.c.l.b16 %v3529
        %v3674 = vunpack.c.l.b16 %v3530
        %v3675 = vunpack.c.l.b16 %v3531
        %v3676 = vunpack.c.l.b16 %v3532
        %v3677 = vunpack.c.l.b16 %v3533
        %v3678 = vunpack.c.l.b16 %v3534
        %v3679 = vunpack.c.l.b16 %v3535
        %v3680 = vunpack.c.l.b16 %v3536
        %v3681 = vunpack.c.l.b16 %v3537
        %v3682 = vunpack.c.l.b16 %v3538
        %v3683 = vunpack.c.l.b16 %v3539
        %v3684 = vunpack.c.l.b16 %v3540
        %v3685 = vunpack.c.l.b16 %v3541
        %v3686 = vunpack.c.l.b16 %v3542
        %v3687 = vunpack.c.l.b16 %v3543
        %v3688 = vunpack.c.l.b16 %v3544
        %v3689 = vunpack.c.l.b16 %v3545
        %v3690 = vunpack.c.l.b16 %v3546
        %v3691 = vunpack.c.l.b16 %v3547
        %v3692 = vunpack.c.l.b16 %v3548
        %v3693 = vunpack.c.l.b16 %v3549
        %v3694 = vunpack.c.l.b16 %v3550
        %v3695 = vunpack.c.l.b16 %v3551
        %v3696 = vunpack.c.l.b16 %v3552
        %v3697 = vunpack.c.l.b16 %v3553
        %v3698 = vpack.c.b16 %v3651, %v3650
        %v3699 = vpack.c.b16 %v3653, %v3652
        %v3700 = vpack.c.b16 %v3655, %v3654
        %v3701 = vpack.c.b16 %v3657, %v3656
        %v3702 = vpack.c.b16 %v3659, %v3658
        %v3703 = vpack.c.b16 %v3661, %v3660
        %v3704 = vpack.c.b16 %v3663, %v3662
        %v3705 = vpack.c.b16 %v3665, %v3664
        %v3706 = vpack.c.b16 %v3667, %v3666
        %v3707 = vpack.c.b16 %v3669, %v3668
        %v3708 = vpack.c.b16 %v3671, %v3670
        %v3709 = vpack.c.b16 %v3673, %v3672
        %v3710 = vpack.c.b16 %v3675, %v3674
        %v3711 = vpack.c.b16 %v3677, %v3676
        %v3712 = vpack.c.b16 %v3679, %v3678
        %v3713 = vpack.c.b16 %v3681, %v3680
        %v3714 = vpack.c.b16 %v3683, %v3682
        %v3715 = vpack.c.b16 %v3685, %v3684
        %v3716 = vpack.c.b16 %v3687, %v3686
        %v3717 = vpack.c.b16 %v3689, %v3688
        %v3718 = vpack.c.b16 %v3691, %v3690
        %v3719 = vpack.c.b16 %v3693, %v3692
        %v3720 = vpack.c.b16 %v3695, %v3694
        %v3721 = vpack.c.b16 %v3697, %v3696
        %3746 = vmatprep.subr.bf16.mxu0 0
        %3747 = vmatpush1.bf16.msra.mxu0 %v3705
        %3748 = vmatprep.subr.bf16.mxu0 0
        %3749 = vmatpush1.bf16.msra.mxu0 %v3704
        %3750 = vmatprep.subr.bf16.mxu0 0
        %3751 = vmatpush1.bf16.msra.mxu0 %v3703
        %3752 = vmatprep.subr.bf16.mxu0 0
        %3753 = vmatpush1.bf16.msra.mxu0 %v3702
        %3754 = vmatprep.subr.bf16.mxu0 0
        %3755 = vmatpush1.bf16.msra.mxu0 %v3701
        %3756 = vmatprep.subr.bf16.mxu0 0
        %3757 = vmatpush1.bf16.msra.mxu0 %v3700
        %3758 = vmatprep.subr.bf16.mxu0 0
        %3759 = vmatpush1.bf16.msra.mxu0 %v3699
        %3760 = vmatprep.subr.bf16.mxu0 0
        %3761 = vmatpush1.bf16.msra.mxu0 %v3698
        %3762 = vmatprep.subr.bf16.mxu0 0
        %3763 = vmatpush2.bf16.msra.mxu0 %v3713
        %3764 = vmatprep.subr.bf16.mxu0 0
        %3765 = vmatpush2.bf16.msra.mxu0 %v3712
        %3766 = vmatprep.subr.bf16.mxu0 0
        %3767 = vmatpush2.bf16.msra.mxu0 %v3711
        %3768 = vmatprep.subr.bf16.mxu0 0
        %3769 = vmatpush2.bf16.msra.mxu0 %v3710
        %3770 = vmatprep.subr.bf16.mxu0 0
        %3771 = vmatpush2.bf16.msra.mxu0 %v3709
        %3772 = vmatprep.subr.bf16.mxu0 0
        %3773 = vmatpush2.bf16.msra.mxu0 %v3708
        %3774 = vmatprep.subr.bf16.mxu0 0
        %3775 = vmatpush2.bf16.msra.mxu0 %v3707
        %3776 = vmatprep.subr.bf16.mxu0 0
        %3777 = vmatpush2.bf16.msra.mxu0 %v3706
        %3778 = vmatprep.mubr.bf16.mxu0 %v3555
        %3779 = vmatmul.mubr.bf16.gmra.mxu0 %v3554
        %v3780 = vpop.f32.mrf.mxu0
        %v3781 = vadd.f32 0.0, %v3780
        %v3782 = vpop.f32.mrf.mxu0
        %v3783 = vpop.f32.mrf.mxu0
        %v3784 = vadd.f32 0.0, %v3783
        %v3785 = vpop.f32.mrf.mxu0
        %3786 = vmatprep.mubr.bf16.mxu0 %v3558
        %3787 = vmatmul.mubr.bf16.gmra.mxu0 %v3557
        %v3788 = vpop.f32.mrf.mxu0
        %v3789 = vadd.f32 0.0, %v3788
        %v3790 = vpop.f32.mrf.mxu0
        %v3791 = vpop.f32.mrf.mxu0
        %v3792 = vadd.f32 0.0, %v3791
        %v3793 = vpop.f32.mrf.mxu0
        %3794 = vmatprep.mubr.bf16.mxu0 %v3561
        %3795 = vmatmul.mubr.bf16.gmra.mxu0 %v3560
        %v3796 = vpop.f32.mrf.mxu0
        %v3797 = vadd.f32 0.0, %v3796
        %v3798 = vpop.f32.mrf.mxu0
        %v3799 = vpop.f32.mrf.mxu0
        %v3800 = vadd.f32 0.0, %v3799
        %v3801 = vpop.f32.mrf.mxu0
        %3802 = vmatprep.mubr.bf16.mxu0 %v3564
        %3803 = vmatmul.mubr.bf16.gmra.mxu0 %v3563
        %v3804 = vpop.f32.mrf.mxu0
        %v3805 = vadd.f32 0.0, %v3804
        %v3806 = vpop.f32.mrf.mxu0
        %v3807 = vpop.f32.mrf.mxu0
        %v3808 = vadd.f32 0.0, %v3807
        %v3809 = vpop.f32.mrf.mxu0
        %3810 = vmatprep.mubr.bf16.mxu0 %v3567
        %3811 = vmatmul.mubr.bf16.gmra.mxu0 %v3566
        %v3812 = vpop.f32.mrf.mxu0
        %v3813 = vadd.f32 0.0, %v3812
        %v3814 = vpop.f32.mrf.mxu0
        %v3815 = vpop.f32.mrf.mxu0
        %v3816 = vadd.f32 0.0, %v3815
        %v3817 = vpop.f32.mrf.mxu0
        %3818 = vmatprep.mubr.bf16.mxu0 %v3570
        %3819 = vmatmul.mubr.bf16.gmra.mxu0 %v3569
        %v3820 = vpop.f32.mrf.mxu0
        %v3821 = vadd.f32 0.0, %v3820
        %v3822 = vpop.f32.mrf.mxu0
        %v3823 = vpop.f32.mrf.mxu0
        %v3824 = vadd.f32 0.0, %v3823
        %v3825 = vpop.f32.mrf.mxu0
        %3826 = vmatprep.mubr.bf16.mxu0 %v3573
        %3827 = vmatmul.mubr.bf16.gmra.mxu0 %v3572
        %v3828 = vpop.f32.mrf.mxu0
        %v3829 = vadd.f32 0.0, %v3828
        %v3830 = vpop.f32.mrf.mxu0
        %v3831 = vpop.f32.mrf.mxu0
        %v3832 = vadd.f32 0.0, %v3831
        %v3833 = vpop.f32.mrf.mxu0
        %3834 = vmatprep.mubr.bf16.mxu0 %v3576
        %3835 = vmatmul.mubr.bf16.gmra.mxu0 %v3575
        %v3836 = vpop.f32.mrf.mxu0
        %v3837 = vadd.f32 0.0, %v3836
        %v3838 = vpop.f32.mrf.mxu0
        %v3839 = vpop.f32.mrf.mxu0
        %v3840 = vadd.f32 0.0, %v3839
        %v3841 = vpop.f32.mrf.mxu0
        %3842 = vdwg.mxu0
        %3843 = vmatprep.subr.bf16.mxu0 0
        %3844 = vmatpush1.bf16.msra.mxu0 %v3721
        %3845 = vmatprep.subr.bf16.mxu0 0
        %3846 = vmatpush1.bf16.msra.mxu0 %v3720
        %3847 = vmatprep.subr.bf16.mxu0 0
        %3848 = vmatpush1.bf16.msra.mxu0 %v3719
        %3849 = vmatprep.subr.bf16.mxu0 0
        %3850 = vmatpush1.bf16.msra.mxu0 %v3718
        %3851 = vmatprep.subr.bf16.mxu0 0
        %3852 = vmatpush1.bf16.msra.mxu0 %v3717
        %3853 = vmatprep.subr.bf16.mxu0 0
        %3854 = vmatpush1.bf16.msra.mxu0 %v3716
        %3855 = vmatprep.subr.bf16.mxu0 0
        %3856 = vmatpush1.bf16.msra.mxu0 %v3715
        %3857 = vmatprep.subr.bf16.mxu0 0
        %3858 = vmatpush1.bf16.msra.mxu0 %v3714
        %3859 = vmatprep.subr.bf16.mxu0 0
        %3860 = vmatpush2.bf16.msra.mxu0 0
        %3861 = vmatprep.subr.bf16.mxu0 0
        %3862 = vmatpush2.bf16.msra.mxu0 0
        %3863 = vmatprep.subr.bf16.mxu0 0
        %3864 = vmatpush2.bf16.msra.mxu0 0
        %3865 = vmatprep.subr.bf16.mxu0 0
        %3866 = vmatpush2.bf16.msra.mxu0 0
        %3867 = vmatprep.subr.bf16.mxu0 0
        %3868 = vmatpush2.bf16.msra.mxu0 0
        %3869 = vmatprep.subr.bf16.mxu0 0
        %3870 = vmatpush2.bf16.msra.mxu0 0
        %3871 = vmatprep.subr.bf16.mxu0 0
        %3872 = vmatpush2.bf16.msra.mxu0 0
        %3873 = vmatprep.subr.bf16.mxu0 0
        %3874 = vmatpush2.bf16.msra.mxu0 0
        %3875 = vmatprep.mubr.bf16.mxu0 0
        %3876 = vmatmul.mubr.bf16.gmra.mxu0 %v3556
        %v3877 = vpop.f32.mrf.mxu0
        %v3878 = vadd.f32 %v3781, %v3877
        %v3879 = vpop.f32.mrf.mxu0
        %v3880 = vpop.f32.mrf.mxu0
        %v3881 = vadd.f32 %v3784, %v3880
        %v3882 = vpop.f32.mrf.mxu0
        %3883 = vmatprep.mubr.bf16.mxu0 0
        %3884 = vmatmul.mubr.bf16.gmra.mxu0 %v3559
        %v3885 = vpop.f32.mrf.mxu0
        %v3886 = vadd.f32 %v3789, %v3885
        %v3887 = vpop.f32.mrf.mxu0
        %v3888 = vpop.f32.mrf.mxu0
        %v3889 = vadd.f32 %v3792, %v3888
        %v3890 = vpop.f32.mrf.mxu0
        %3891 = vmatprep.mubr.bf16.mxu0 0
        %3892 = vmatmul.mubr.bf16.gmra.mxu0 %v3562
        %v3893 = vpop.f32.mrf.mxu0
        %v3894 = vadd.f32 %v3797, %v3893
        %v3895 = vpop.f32.mrf.mxu0
        %v3896 = vpop.f32.mrf.mxu0
        %v3897 = vadd.f32 %v3800, %v3896
        %v3898 = vpop.f32.mrf.mxu0
        %3899 = vmatprep.mubr.bf16.mxu0 0
        %3900 = vmatmul.mubr.bf16.gmra.mxu0 %v3565
        %v3901 = vpop.f32.mrf.mxu0
        %v3902 = vadd.f32 %v3805, %v3901
        %v3903 = vpop.f32.mrf.mxu0
        %v3904 = vpop.f32.mrf.mxu0
        %v3905 = vadd.f32 %v3808, %v3904
        %v3906 = vpop.f32.mrf.mxu0
        %3907 = vmatprep.mubr.bf16.mxu0 0
        %3908 = vmatmul.mubr.bf16.gmra.mxu0 %v3568
        %v3909 = vpop.f32.mrf.mxu0
        %v3910 = vadd.f32 %v3813, %v3909
        %v3911 = vpop.f32.mrf.mxu0
        %v3912 = vpop.f32.mrf.mxu0
        %v3913 = vadd.f32 %v3816, %v3912
        %v3914 = vpop.f32.mrf.mxu0
        %3915 = vmatprep.mubr.bf16.mxu0 0
        %3916 = vmatmul.mubr.bf16.gmra.mxu0 %v3571
        %v3917 = vpop.f32.mrf.mxu0
        %v3918 = vadd.f32 %v3821, %v3917
        %v3919 = vpop.f32.mrf.mxu0
        %v3920 = vpop.f32.mrf.mxu0
        %v3921 = vadd.f32 %v3824, %v3920
        %v3922 = vpop.f32.mrf.mxu0
        %3923 = vmatprep.mubr.bf16.mxu0 0
        %3924 = vmatmul.mubr.bf16.gmra.mxu0 %v3574
        %v3925 = vpop.f32.mrf.mxu0
        %v3926 = vadd.f32 %v3829, %v3925
        %v3927 = vpop.f32.mrf.mxu0
        %v3928 = vpop.f32.mrf.mxu0
        %v3929 = vadd.f32 %v3832, %v3928
        %v3930 = vpop.f32.mrf.mxu0
        %3931 = vmatprep.mubr.bf16.mxu0 0
        %3932 = vmatmul.mubr.bf16.gmra.mxu0 %v3577
        %v3933 = vpop.f32.mrf.mxu0
        %v3934 = vadd.f32 %v3837, %v3933
        %v3935 = vpop.f32.mrf.mxu0
        %v3936 = vpop.f32.mrf.mxu0
        %v3937 = vadd.f32 %v3840, %v3936
        %v3938 = vpop.f32.mrf.mxu0
        %3939 = vdwg.mxu0
        %v3940 = vadd.f32 %v3171, %v3878
        %v3941 = vadd.f32 %v3174, %v3881
        %v3942 = vadd.f32 %v3179, %v3886
        %v3943 = vadd.f32 %v3182, %v3889
        %v3944 = vadd.f32 %v3187, %v3894
        %v3945 = vadd.f32 %v3190, %v3897
        %v3946 = vadd.f32 %v3195, %v3902
        %v3947 = vadd.f32 %v3198, %v3905
        %v3948 = vadd.f32 %v3203, %v3910
        %v3949 = vadd.f32 %v3206, %v3913
        %v3950 = vadd.f32 %v3211, %v3918
        %v3951 = vadd.f32 %v3214, %v3921
        %v3952 = vadd.f32 %v3219, %v3926
        %v3953 = vadd.f32 %v3222, %v3929
        %v3954 = vadd.f32 %v3227, %v3934
        %v3955 = vadd.f32 %v3230, %v3937
        %v3956 = vld [vmem:[%s7] sm:$0x3]
        %v3957 = vlaneseq
        %v3958 = vshrl.u32 %v3957, 7
        %v3959 = vsub.s32 0, %v3958
        %v3960 = vrot.slane %v3956, %v3959
        %v3961 = vmul.f32 %v3940, %v3960
        %v3962 = vmul.f32 %v3941, %v3960
        %v3963 = vmul.f32 %v3942, %v3960
        %v3964 = vmul.f32 %v3943, %v3960
        %v3965 = vmul.f32 %v3944, %v3960
        %v3966 = vmul.f32 %v3945, %v3960
        %v3967 = vmul.f32 %v3946, %v3960
        %v3968 = vmul.f32 %v3947, %v3960
        %v3969 = vmul.f32 %v3948, %v3960
        %v3970 = vmul.f32 %v3949, %v3960
        %v3971 = vmul.f32 %v3950, %v3960
        %v3972 = vmul.f32 %v3951, %v3960
        %v3973 = vmul.f32 %v3952, %v3960
        %v3974 = vmul.f32 %v3953, %v3960
        %v3975 = vmul.f32 %v3954, %v3960
        %v3976 = vmul.f32 %v3955, %v3960
        %v3977 = vlaneseq
        %v3978 = vshrl.u32 %v3977, 7
        %v3979 = vsub.s32 1, %v3978
        %v3980 = vrot.slane %v3956, %v3979
        %v3981 = vadd.f32 %v3961, %v3980
        %v3982 = vadd.f32 %v3962, %v3980
        %v3983 = vadd.f32 %v3963, %v3980
        %v3984 = vadd.f32 %v3964, %v3980
        %v3985 = vadd.f32 %v3965, %v3980
        %v3986 = vadd.f32 %v3966, %v3980
        %v3987 = vadd.f32 %v3967, %v3980
        %v3988 = vadd.f32 %v3968, %v3980
        %v3989 = vadd.f32 %v3969, %v3980
        %v3990 = vadd.f32 %v3970, %v3980
        %v3991 = vadd.f32 %v3971, %v3980
        %v3992 = vadd.f32 %v3972, %v3980
        %v3993 = vadd.f32 %v3973, %v3980
        %v3994 = vadd.f32 %v3974, %v3980
        %v3995 = vadd.f32 %v3975, %v3980
        %v3996 = vadd.f32 %v3976, %v3980
        %v3997 = vmax.f32 %v3981, 0.0
        %v3998 = vmax.f32 %v3982, 0.0
        %v3999 = vmax.f32 %v3983, 0.0
        %v4000 = vmax.f32 %v3984, 0.0
        %v4001 = vmax.f32 %v3985, 0.0
        %v4002 = vmax.f32 %v3986, 0.0
        %v4003 = vmax.f32 %v3987, 0.0
        %v4004 = vmax.f32 %v3988, 0.0
        %v4005 = vmax.f32 %v3989, 0.0
        %v4006 = vmax.f32 %v3990, 0.0
        %v4007 = vmax.f32 %v3991, 0.0
        %v4008 = vmax.f32 %v3992, 0.0
        %v4009 = vmax.f32 %v3993, 0.0
        %v4010 = vmax.f32 %v3994, 0.0
        %v4011 = vmax.f32 %v3995, 0.0
        %v4012 = vmax.f32 %v3996, 0.0
        %v4013 = vpack.c.bf16 %v3998, %v3997
        %v4014 = vpack.c.bf16 %v4000, %v3999
        %v4015 = vpack.c.bf16 %v4002, %v4001
        %v4016 = vpack.c.bf16 %v4004, %v4003
        %v4017 = vpack.c.bf16 %v4006, %v4005
        %v4018 = vpack.c.bf16 %v4008, %v4007
        %v4019 = vpack.c.bf16 %v4010, %v4009
        %v4020 = vpack.c.bf16 %v4012, %v4011
        %v4021 = vld [vmem:[#allocation13] sm:$0xf]
        %v4022 = vld [vmem:[#allocation13 + $0x4] sm:$0xf]
        %v4023 = vld [vmem:[#allocation13 + $0x8] sm:$0xf]
        %v4024 = vld [vmem:[#allocation13 + $0xc] sm:$0xf]
        %v4025 = vld [vmem:[#allocation13 + $0x10] sm:$0xf]
        %v4026 = vld [vmem:[#allocation13 + $0x14] sm:$0xf]
        %v4027 = vld [vmem:[#allocation13 + $0x18] sm:$0xf]
        %v4028 = vld [vmem:[#allocation13 + $0x1c] sm:$0xf]
        %v4029 = vld [vmem:[#allocation13 + $0x20] sm:$0xf]
        %v4030 = vld [vmem:[#allocation13 + $0x24] sm:$0xf]
        %v4031 = vld [vmem:[#allocation13 + $0x28] sm:$0xf]
        %v4032 = vld [vmem:[#allocation13 + $0x2c] sm:$0xf]
        %v4033 = vld [vmem:[#allocation13 + $0x30] sm:$0xf]
        %v4034 = vld [vmem:[#allocation13 + $0x34] sm:$0xf]
        %v4035 = vld [vmem:[#allocation13 + $0x38] sm:$0xf]
        %v4036 = vld [vmem:[#allocation13 + $0x3c] sm:$0xf]
        %v4053 = vunpack.c.l.b16 %v4021
        %v4054 = vunpack.c.l.b16 %v4022
        %v4055 = vunpack.c.l.b16 %v4023
        %v4056 = vunpack.c.l.b16 %v4024
        %v4057 = vunpack.c.l.b16 %v4025
        %v4058 = vunpack.c.l.b16 %v4026
        %v4059 = vunpack.c.l.b16 %v4027
        %v4060 = vunpack.c.l.b16 %v4028
        %v4061 = vunpack.c.l.b16 %v4029
        %v4062 = vunpack.c.l.b16 %v4030
        %v4063 = vunpack.c.l.b16 %v4031
        %v4064 = vunpack.c.l.b16 %v4032
        %v4065 = vunpack.c.l.b16 %v4033
        %v4066 = vunpack.c.l.b16 %v4034
        %v4067 = vunpack.c.l.b16 %v4035
        %v4068 = vunpack.c.l.b16 %v4036
        %v4069 = vpack.c.b16 %v4054, %v4053
        %v4070 = vpack.c.b16 %v4056, %v4055
        %v4071 = vpack.c.b16 %v4058, %v4057
        %v4072 = vpack.c.b16 %v4060, %v4059
        %v4073 = vpack.c.b16 %v4062, %v4061
        %v4074 = vpack.c.b16 %v4064, %v4063
        %v4075 = vpack.c.b16 %v4066, %v4065
        %v4076 = vpack.c.b16 %v4068, %v4067
        %4085 = vmatprep.subr.bf16.mxu0 0
        %4086 = vmatpush1.bf16.msra.mxu0 %v4076
        %4087 = vmatprep.subr.bf16.mxu0 0
        %4088 = vmatpush1.bf16.msra.mxu0 %v4075
        %4089 = vmatprep.subr.bf16.mxu0 0
        %4090 = vmatpush1.bf16.msra.mxu0 %v4074
        %4091 = vmatprep.subr.bf16.mxu0 0
        %4092 = vmatpush1.bf16.msra.mxu0 %v4073
        %4093 = vmatprep.subr.bf16.mxu0 0
        %4094 = vmatpush1.bf16.msra.mxu0 %v4072
        %4095 = vmatprep.subr.bf16.mxu0 0
        %4096 = vmatpush1.bf16.msra.mxu0 %v4071
        %4097 = vmatprep.subr.bf16.mxu0 0
        %4098 = vmatpush1.bf16.msra.mxu0 %v4070
        %4099 = vmatprep.subr.bf16.mxu0 0
        %4100 = vmatpush1.bf16.msra.mxu0 %v4069
        %4101 = vmatprep.subr.bf16.mxu0 0
        %4102 = vmatpush2.bf16.msra.mxu0 0
        %4103 = vmatprep.subr.bf16.mxu0 0
        %4104 = vmatpush2.bf16.msra.mxu0 0
        %4105 = vmatprep.subr.bf16.mxu0 0
        %4106 = vmatpush2.bf16.msra.mxu0 0
        %4107 = vmatprep.subr.bf16.mxu0 0
        %4108 = vmatpush2.bf16.msra.mxu0 0
        %4109 = vmatprep.subr.bf16.mxu0 0
        %4110 = vmatpush2.bf16.msra.mxu0 0
        %4111 = vmatprep.subr.bf16.mxu0 0
        %4112 = vmatpush2.bf16.msra.mxu0 0
        %4113 = vmatprep.subr.bf16.mxu0 0
        %4114 = vmatpush2.bf16.msra.mxu0 0
        %4115 = vmatprep.subr.bf16.mxu0 0
        %4116 = vmatpush2.bf16.msra.mxu0 0
        %4117 = vmatprep.mubr.bf16.mxu0 0
        %4118 = vmatmul.mubr.bf16.gmra.mxu0 %v4013
        %v4119 = vpop.f32.mrf.mxu0
        %v4120 = vadd.f32 0.0, %v4119
        %v4121 = vpop.f32.mrf.mxu0
        %v4122 = vpop.f32.mrf.mxu0
        %v4123 = vadd.f32 0.0, %v4122
        %v4124 = vpop.f32.mrf.mxu0
        %4125 = vmatprep.mubr.bf16.mxu0 0
        %4126 = vmatmul.mubr.bf16.gmra.mxu0 %v4014
        %v4127 = vpop.f32.mrf.mxu0
        %v4128 = vadd.f32 0.0, %v4127
        %v4129 = vpop.f32.mrf.mxu0
        %v4130 = vpop.f32.mrf.mxu0
        %v4131 = vadd.f32 0.0, %v4130
        %v4132 = vpop.f32.mrf.mxu0
        %4133 = vmatprep.mubr.bf16.mxu0 0
        %4134 = vmatmul.mubr.bf16.gmra.mxu0 %v4015
        %v4135 = vpop.f32.mrf.mxu0
        %v4136 = vadd.f32 0.0, %v4135
        %v4137 = vpop.f32.mrf.mxu0
        %v4138 = vpop.f32.mrf.mxu0
        %v4139 = vadd.f32 0.0, %v4138
        %v4140 = vpop.f32.mrf.mxu0
        %4141 = vmatprep.mubr.bf16.mxu0 0
        %4142 = vmatmul.mubr.bf16.gmra.mxu0 %v4016
        %v4143 = vpop.f32.mrf.mxu0
        %v4144 = vadd.f32 0.0, %v4143
        %v4145 = vpop.f32.mrf.mxu0
        %v4146 = vpop.f32.mrf.mxu0
        %v4147 = vadd.f32 0.0, %v4146
        %v4148 = vpop.f32.mrf.mxu0
        %4149 = vmatprep.mubr.bf16.mxu0 0
        %4150 = vmatmul.mubr.bf16.gmra.mxu0 %v4017
        %v4151 = vpop.f32.mrf.mxu0
        %v4152 = vadd.f32 0.0, %v4151
        %v4153 = vpop.f32.mrf.mxu0
        %v4154 = vpop.f32.mrf.mxu0
        %v4155 = vadd.f32 0.0, %v4154
        %v4156 = vpop.f32.mrf.mxu0
        %4157 = vmatprep.mubr.bf16.mxu0 0
        %4158 = vmatmul.mubr.bf16.gmra.mxu0 %v4018
        %v4159 = vpop.f32.mrf.mxu0
        %v4160 = vadd.f32 0.0, %v4159
        %v4161 = vpop.f32.mrf.mxu0
        %v4162 = vpop.f32.mrf.mxu0
        %v4163 = vadd.f32 0.0, %v4162
        %v4164 = vpop.f32.mrf.mxu0
        %4165 = vmatprep.mubr.bf16.mxu0 0
        %4166 = vmatmul.mubr.bf16.gmra.mxu0 %v4019
        %v4167 = vpop.f32.mrf.mxu0
        %v4168 = vadd.f32 0.0, %v4167
        %v4169 = vpop.f32.mrf.mxu0
        %v4170 = vpop.f32.mrf.mxu0
        %v4171 = vadd.f32 0.0, %v4170
        %v4172 = vpop.f32.mrf.mxu0
        %4173 = vmatprep.mubr.bf16.mxu0 0
        %4174 = vmatmul.mubr.bf16.gmra.mxu0 %v4020
        %v4175 = vpop.f32.mrf.mxu0
        %v4176 = vadd.f32 0.0, %v4175
        %v4177 = vpop.f32.mrf.mxu0
        %v4178 = vpop.f32.mrf.mxu0
        %v4179 = vadd.f32 0.0, %v4178
        %v4180 = vpop.f32.mrf.mxu0
        %4181 = vdwg.mxu0
        %v4182 = vld [vmem:[%s8] sm:$0x3]
        %v4183 = vlaneseq
        %v4184 = vshrl.u32 %v4183, 7
        %v4185 = vsub.s32 0, %v4184
        %v4186 = vrot.slane %v4182, %v4185
        %v4187 = vmul.f32 %v4120, %v4186
        %v4188 = vmul.f32 %v4123, %v4186
        %v4189 = vmul.f32 %v4128, %v4186
        %v4190 = vmul.f32 %v4131, %v4186
        %v4191 = vmul.f32 %v4136, %v4186
        %v4192 = vmul.f32 %v4139, %v4186
        %v4193 = vmul.f32 %v4144, %v4186
        %v4194 = vmul.f32 %v4147, %v4186
        %v4195 = vmul.f32 %v4152, %v4186
        %v4196 = vmul.f32 %v4155, %v4186
        %v4197 = vmul.f32 %v4160, %v4186
        %v4198 = vmul.f32 %v4163, %v4186
        %v4199 = vmul.f32 %v4168, %v4186
        %v4200 = vmul.f32 %v4171, %v4186
        %v4201 = vmul.f32 %v4176, %v4186
        %v4202 = vmul.f32 %v4179, %v4186
        %v4203 = vlaneseq
        %v4204 = vshrl.u32 %v4203, 7
        %v4205 = vsub.s32 1, %v4204
        %v4206 = vrot.slane %v4182, %v4205
        %v4207 = vadd.f32 %v4187, %v4206
        %v4208 = vadd.f32 %v4188, %v4206
        %v4209 = vadd.f32 %v4189, %v4206
        %v4210 = vadd.f32 %v4190, %v4206
        %v4211 = vadd.f32 %v4191, %v4206
        %v4212 = vadd.f32 %v4192, %v4206
        %v4213 = vadd.f32 %v4193, %v4206
        %v4214 = vadd.f32 %v4194, %v4206
        %v4215 = vadd.f32 %v4195, %v4206
        %v4216 = vadd.f32 %v4196, %v4206
        %v4217 = vadd.f32 %v4197, %v4206
        %v4218 = vadd.f32 %v4198, %v4206
        %v4219 = vadd.f32 %v4199, %v4206
        %v4220 = vadd.f32 %v4200, %v4206
        %v4221 = vadd.f32 %v4201, %v4206
        %v4222 = vadd.f32 %v4202, %v4206
        %v4223 = vunpack.c.l.bf16 %v534
        %v4224 = vunpack.c.l.bf16 %v535
        %v4225 = vunpack.c.l.bf16 %v536
        %v4226 = vunpack.c.l.bf16 %v537
        %v4227 = vunpack.c.l.bf16 %v538
        %v4228 = vunpack.c.l.bf16 %v539
        %v4229 = vunpack.c.l.bf16 %v540
        %v4230 = vunpack.c.l.bf16 %v541
        %v4231 = vunpack.c.l.bf16 %v542
        %v4232 = vunpack.c.l.bf16 %v543
        %v4233 = vunpack.c.l.bf16 %v544
        %v4234 = vunpack.c.l.bf16 %v545
        %v4235 = vunpack.c.l.bf16 %v546
        %v4236 = vunpack.c.l.bf16 %v547
        %v4237 = vunpack.c.l.bf16 %v548
        %v4238 = vunpack.c.l.bf16 %v549
        %v4239 = vadd.f32 %v4207, %v4223
        %v4240 = vadd.f32 %v4208, %v4224
        %v4241 = vadd.f32 %v4209, %v4225
        %v4242 = vadd.f32 %v4210, %v4226
        %v4243 = vadd.f32 %v4211, %v4227
        %v4244 = vadd.f32 %v4212, %v4228
        %v4245 = vadd.f32 %v4213, %v4229
        %v4246 = vadd.f32 %v4214, %v4230
        %v4247 = vadd.f32 %v4215, %v4231
        %v4248 = vadd.f32 %v4216, %v4232
        %v4249 = vadd.f32 %v4217, %v4233
        %v4250 = vadd.f32 %v4218, %v4234
        %v4251 = vadd.f32 %v4219, %v4235
        %v4252 = vadd.f32 %v4220, %v4236
        %v4253 = vadd.f32 %v4221, %v4237
        %v4254 = vadd.f32 %v4222, %v4238
        %v4255 = vmax.f32 %v4239, 0.0
        %v4256 = vmax.f32 %v4240, 0.0
        %v4257 = vmax.f32 %v4241, 0.0
        %v4258 = vmax.f32 %v4242, 0.0
        %v4259 = vmax.f32 %v4243, 0.0
        %v4260 = vmax.f32 %v4244, 0.0
        %v4261 = vmax.f32 %v4245, 0.0
        %v4262 = vmax.f32 %v4246, 0.0
        %v4263 = vmax.f32 %v4247, 0.0
        %v4264 = vmax.f32 %v4248, 0.0
        %v4265 = vmax.f32 %v4249, 0.0
        %v4266 = vmax.f32 %v4250, 0.0
        %v4267 = vmax.f32 %v4251, 0.0
        %v4268 = vmax.f32 %v4252, 0.0
        %v4269 = vmax.f32 %v4253, 0.0
        %v4270 = vmax.f32 %v4254, 0.0
        %v4271 = vpack.c.bf16 %v4255, %v4255
        %v4272 = vpack.c.bf16 %v4256, %v4256
        %v4273 = vpack.c.bf16 %v4257, %v4257
        %v4274 = vpack.c.bf16 %v4258, %v4258
        %v4275 = vpack.c.bf16 %v4259, %v4259
        %v4276 = vpack.c.bf16 %v4260, %v4260
        %v4277 = vpack.c.bf16 %v4261, %v4261
        %v4278 = vpack.c.bf16 %v4262, %v4262
        %v4279 = vpack.c.bf16 %v4263, %v4263
        %v4280 = vpack.c.bf16 %v4264, %v4264
        %v4281 = vpack.c.bf16 %v4265, %v4265
        %v4282 = vpack.c.bf16 %v4266, %v4266
        %v4283 = vpack.c.bf16 %v4267, %v4267
        %v4284 = vpack.c.bf16 %v4268, %v4268
        %v4285 = vpack.c.bf16 %v4269, %v4269
        %v4286 = vpack.c.bf16 %v4270, %v4270
        %4287 = vst [vmem:[%s522] sm:$0xf] %v4271
        %4288 = vst [vmem:[%s522 + $0x4] sm:$0xf] %v4272
        %4289 = vst [vmem:[%s522 + $0x8] sm:$0xf] %v4273
        %4290 = vst [vmem:[%s522 + $0xc] sm:$0xf] %v4274
        %4291 = vst [vmem:[%s522 + $0x10] sm:$0xf] %v4275
        %4292 = vst [vmem:[%s522 + $0x14] sm:$0xf] %v4276
        %4293 = vst [vmem:[%s522 + $0x18] sm:$0xf] %v4277
        %4294 = vst [vmem:[%s522 + $0x1c] sm:$0xf] %v4278
        %4295 = vst [vmem:[%s522 + $0x20] sm:$0xf] %v4279
        %4296 = vst [vmem:[%s522 + $0x24] sm:$0xf] %v4280
        %4297 = vst [vmem:[%s522 + $0x28] sm:$0xf] %v4281
        %4298 = vst [vmem:[%s522 + $0x2c] sm:$0xf] %v4282
        %4299 = vst [vmem:[%s522 + $0x30] sm:$0xf] %v4283
        %4300 = vst [vmem:[%s522 + $0x34] sm:$0xf] %v4284
        %4301 = vst [vmem:[%s522 + $0x38] sm:$0xf] %v4285
        %4302 = vst [vmem:[%s522 + $0x3c] sm:$0xf] %v4286
        %s4303 = sand.u32 %s279, 1
        %s4304 = scalar_lea.sflag [#allocation6], %s4303
        %s4305 = sand.u32 %s279, 1
        %s4306 = smul.addr %s4305, 64
        %s4307 = scalar_lea.vmem [#allocation15], %s4306
        // Predicated region
        $region89: #{tpu_custom_call.1} parent=55 // pred_check
          %p4308 = pneg %p289
        $region90: #{tpu_custom_call.1} parent=55 // pred_check_branch
          %4310 = sbr.rel (%p4308) target = $region92
        $region91: #{tpu_custom_call.1} parent=55 // pred_region
          %s4311 = smul.u32 2, %s36
          %s4313 = ssub.s32 1024, 1024
          %4314 = vsyncadd %s4304, %s4313
          %s4315 = smul.addr %s4311, 8
          %s4316 = smul.addr %s35, 32
          %s4317 = sadd.s32 %s4315, %s4316
          %s4318 = smul.addr %s4317, 64
          %s4319 = scalar_lea.hbm %s9, %s4318
          %s4320 = sshll.u32 %s4307, 4
          %s4321 = int_to_ptr.vmem [resolvable:$true] %s4320
          %4326 = dma.vmem_to_hbm [thread:$0]  %s4321, 1024, %s4319, %s4304, 64, 64, 4
        $region92: #{tpu_custom_call.1} parent=55 // pred_fallthru
          _
      $region56: #{tpu_custom_call.1} parent=5 // pred_fallthru
        _
      %p4327 = scmp.le.s32.totalorder 2, %s26
      // Predicated region
      $region93: #{tpu_custom_call.1} parent=5 // pred_check
        %p4328 = pneg %p4327
      $region94: #{tpu_custom_call.1} parent=5 // pred_check_branch
        %4330 = sbr.rel (%p4328) target = $region96
      $region95: #{tpu_custom_call.1} parent=5 // pred_region
        %s4331 = ssub.s32 %s26, 2
        // Predicated region
        $region97: #{tpu_custom_call.1} parent=95 // pred_check
          %p4332 = pneg %p295
        $region98: #{tpu_custom_call.1} parent=95 // pred_check_branch
          %4334 = sbr.rel (%p4332) target = $region100
        $region99: #{tpu_custom_call.1} parent=95 // pred_region
          %s4335 = sand.u32 %s280, 1
          %s4336 = scalar_lea.sflag [#allocation6], %s4335
          %s4337 = sand.u32 %s280, 1
          %s4338 = smul.addr %s4337, 64
          %s4339 = scalar_lea.vmem [#allocation15], %s4338
          %4340 = dma.done %s4336, 1024
        $region100: #{tpu_custom_call.1} parent=95 // pred_fallthru
          _
      $region96: #{tpu_custom_call.1} parent=5 // pred_fallthru
        _
    $region6: #{tpu_custom_call.1} parent=1 // loop_footer
      %s30 = sadd.s32 1, %s26
    $region7: #{tpu_custom_call.1} parent=1 // loop_footer_branch
      %25 = sbr.rel target = $region3
    $region8: #{tpu_custom_call.1} parent=1 // loop_exit
      _
    %4341 = vsyncpa [#allocation5], 1
    %s4342 = scalar_lea.sflag [#allocation5], 1
    %4343 = vsyncpa %s4342, 1
    %4344 = vsyncpa [#allocation8], 1
    %s4345 = scalar_lea.sflag [#allocation8], 1
    %4346 = vsyncpa %s4345, 1
    %4347 = vsyncpa [#allocation11], 1
    %4348 = vsyncpa [#allocation14], 1
    %4349 = vsyncpa [#allocation6], 1
    %s4350 = scalar_lea.sflag [#allocation6], 1
    %4351 = vsyncpa %s4350, 1

</llo_original>
